<compile_context>
chip_gen: v7x
topology: tpu7x:2x2x1
jax: 0.10.0
libtpu: 0.0.40
codegen_flags: <defaults>
</compile_context>

<pallas_src>
import functools

import jax
import jax.numpy as jnp
from jax import lax
from jax.experimental import pallas as pl
from jax.experimental.pallas import tpu as pltpu


def _sigmoid(x):
    # One EUP transcendental (tanh) instead of exp + VPU divide.
    return 0.5 * (jnp.tanh(0.5 * x) + 1.0)


# ----------------------------------------------------------------------------------
# Fused bidirectional masked LSTM (== Encoder: sort + pack + LSTM + unpack + unsort)
# ----------------------------------------------------------------------------------

def _bilstm_kernel(x_ref, m_ref, wih_ref, whh_ref, b_ref, o_ref,
                   gx_scr, h_scr, c_scr):
    """One grid step = one direction (d=0 forward, d=1 backward) of a masked LSTM.

    x_ref:  (T*B, I)  time-major inputs flattened over (T, B)
    m_ref:  (T, B, 1) 1.0 where t < length[b] else 0.0
    wih:    (I, 4H), whh: (H, 4H), b: (1, 4H)   gate order i, f, g, o (PyTorch)
    o_ref:  (T, B, H) outputs (zero at padded positions, like pad_packed_sequence)

    Backward direction walks t = T-1 .. 0.  Because masked (padded) steps freeze the
    zero initial state and emit zeros, this is exactly per-sequence reversal.
    """
    T, B, H = o_ref.shape
    d = pl.program_id(0)

    # Hoisted input projection: one big MXU matmul outside the serial recurrence.
    gx_scr[...] = (jnp.dot(x_ref[...], wih_ref[...],
                           preferred_element_type=jnp.float32) + b_ref[...])

    h_scr[...] = jnp.zeros_like(h_scr)
    c_scr[...] = jnp.zeros_like(c_scr)

    def step(s, carry):
        t = jnp.where(d == 0, s, T - 1 - s)
        start = t * B
        if B % 8 == 0:                      # trace-time: alignment hint when valid
            start = pl.multiple_of(start, 8)
        m_t = m_ref[t]                                            # (B, 1)
        gates = (gx_scr[pl.ds(start, B), :]
                 + jnp.dot(h_scr[...], whh_ref[...],
                           preferred_element_type=jnp.float32))   # (B, 4H)
        # TODO(synk): for large H, pad each gate block to a 128-lane multiple.
        i_g = _sigmoid(gates[:, 0 * H:1 * H])
        f_g = _sigmoid(gates[:, 1 * H:2 * H])
        g_g = jnp.tanh(gates[:, 2 * H:3 * H])
        o_g = _sigmoid(gates[:, 3 * H:4 * H])
        c_new = f_g * c_scr[...] + i_g * g_g
        h_new = o_g * jnp.tanh(c_new)
        # Freeze state at padded steps, zero padded outputs (packed-sequence semantics).
        c_scr[...] = m_t * c_new + (1.0 - m_t) * c_scr[...]
        h_scr[...] = m_t * h_new + (1.0 - m_t) * h_scr[...]
        o_ref[t] = m_t * h_new
        return carry

    lax.fori_loop(0, T, step, 0, unroll=(T <= 16))


def bilstm(x_tbi, mask_tb1, params_fwd, params_bwd):
    """x_tbi: (T, B, I) time-major; mask_tb1: (T, B, 1) -> (T, B, 2H)."""
    T, B, I = x_tbi.shape
    w_ih = jnp.stack([params_fwd[0], params_bwd[0]])                  # (2, I, 4H)
    w_hh = jnp.stack([params_fwd[1], params_bwd[1]])                  # (2, H, 4H)
    b = jnp.stack([params_fwd[2].reshape(1, -1),
                   params_bwd[2].reshape(1, -1)])                     # (2, 1, 4H)
    H = w_hh.shape[1]
    x2 = x_tbi.reshape(T * B, I)

    out = pl.pallas_call(
        _bilstm_kernel,
        grid=(2,),
        in_specs=[
            pl.BlockSpec((T * B, I), lambda d: (0, 0)),
            pl.BlockSpec((T, B, 1), lambda d: (0, 0, 0)),
            pl.BlockSpec((None, I, 4 * H), lambda d: (d, 0, 0)),
            pl.BlockSpec((None, H, 4 * H), lambda d: (d, 0, 0)),
            pl.BlockSpec((None, 1, 4 * H), lambda d: (d, 0, 0)),
        ],
        out_specs=pl.BlockSpec((None, T, B, H), lambda d: (d, 0, 0, 0)),
        out_shape=jax.ShapeDtypeStruct((2, T, B, H), jnp.float32),
        scratch_shapes=[
            pltpu.VMEM((T * B, 4 * H), jnp.float32),   # hoisted x @ W_ih + b
            pltpu.VMEM((B, H), jnp.float32),           # h
            pltpu.VMEM((B, H), jnp.float32),           # c
        ],
        compiler_params=pltpu.CompilerParams(
            dimension_semantics=("parallel",),         # one direction per TC on v7x
            vmem_limit_bytes=64 * 1024 * 1024),
    )(x2, mask_tb1, w_ih, w_hh, b)
    # PyTorch bidirectional output = concat([forward, backward], feature)
    return jnp.concatenate([out[0], out[1]], axis=-1)                 # (T, B, 2H)


# ----------------------------------------------------------------------------------
# Attentive pooling (blocked over sequences)
# ----------------------------------------------------------------------------------

def _masked_pool(mem, h, mask, u_row):
    """mem, h: (T, Nb, D); mask: (T, Nb, 1); u_row: (1, D) -> pooled (Nb, D)."""
    # Score via VPU multiply + lane reduce (avoids a lane-width-1 MXU matvec).
    score = jnp.sum(h * u_row, axis=-1, keepdims=True)               # (T, Nb, 1)
    score = jnp.where(mask < 0.5, -1.0e9, score)
    score = score - jnp.max(score, axis=0, keepdims=True)
    e = jnp.exp(score)
    alpha = e * pl.reciprocal(jnp.sum(e, axis=0, keepdims=True), approx=True)
    return jnp.sum(alpha * mem, axis=0)                              # (Nb, D)


def _attn_pool_kernel(mem_ref, mask_ref, w_ref, b_ref, u_ref, o_ref):
    mem = mem_ref[...]                                               # (T, Nb, D)
    T, Nb, D = mem.shape
    h = jnp.tanh(jnp.dot(mem.reshape(T * Nb, D), w_ref[...],
                         preferred_element_type=jnp.float32) + b_ref[...])
    o_ref[...] = _masked_pool(mem, h.reshape(T, Nb, D), mask_ref[...], u_ref[...])


def attn_pool(memory, mask, w, b, u, block_n=8):
    """memory: (T, N, D) time-major, mask: (T, N, 1) -> (N, D)."""
    T, N, D = memory.shape
    nb = block_n
    pad = (-N) % nb
    if pad:
        memory = jnp.pad(memory, ((0, 0), (0, pad), (0, 0)))
        mask = jnp.pad(mask, ((0, 0), (0, pad), (0, 0)))
    Np = N + pad
    out = pl.pallas_call(
        _attn_pool_kernel,
        grid=(Np // nb,),
        in_specs=[
            pl.BlockSpec((T, nb, D), lambda n: (0, n, 0)),
            pl.BlockSpec((T, nb, 1), lambda n: (0, n, 0)),
            pl.BlockSpec((D, D), lambda n: (0, 0)),
            pl.BlockSpec((1, D), lambda n: (0, 0)),
            pl.BlockSpec((1, D), lambda n: (0, 0)),
        ],
        out_specs=pl.BlockSpec((nb, D), lambda n: (n, 0)),
        out_shape=jax.ShapeDtypeStruct((Np, D), jnp.float32),
        compiler_params=pltpu.CompilerParams(dimension_semantics=("parallel",)),
    )(memory, mask, w, b.reshape(1, D), u.reshape(1, D))
    return out[:N]


def _proj_attn_pool_kernel(mem_ref, mask_ref, wc_ref, w_ref, b_ref, u_ref,
                           proj_ref, pool_ref):
    """w_context projection fused with sentence-level attentive pooling."""
    T, Nb, Din = mem_ref.shape
    Dh = wc_ref.shape[1]
    proj2 = jnp.dot(mem_ref[...].reshape(T * Nb, Din), wc_ref[...],
                    preferred_element_type=jnp.float32)              # (T*Nb, Dh)
    proj = proj2.reshape(T, Nb, Dh)
    proj_ref[...] = proj
    h = jnp.tanh(jnp.dot(proj2, w_ref[...],
                         preferred_element_type=jnp.float32) + b_ref[...])
    pool_ref[...] = _masked_pool(proj, h.reshape(T, Nb, Dh), mask_ref[...], u_ref[...])


def proj_attn_pool(memory, mask, wc, w, b, u, block_n=8):
    """memory: (T, N, Din); returns (proj (T, N, Dh), pooled (N, Dh))."""
    T, N, Din = memory.shape
    Dh = wc.shape[1]
    nb = block_n
    pad = (-N) % nb
    if pad:
        memory = jnp.pad(memory, ((0, 0), (0, pad), (0, 0)))
        mask = jnp.pad(mask, ((0, 0), (0, pad), (0, 0)))
    Np = N + pad
    proj, pooled = pl.pallas_call(
        _proj_attn_pool_kernel,
        grid=(Np // nb,),
        in_specs=[
            pl.BlockSpec((T, nb, Din), lambda n: (0, n, 0)),
            pl.BlockSpec((T, nb, 1), lambda n: (0, n, 0)),
            pl.BlockSpec((Din, Dh), lambda n: (0, 0)),
            pl.BlockSpec((Dh, Dh), lambda n: (0, 0)),
            pl.BlockSpec((1, Dh), lambda n: (0, 0)),
            pl.BlockSpec((1, Dh), lambda n: (0, 0)),
        ],
        out_specs=(
            pl.BlockSpec((T, nb, Dh), lambda n: (0, n, 0)),
            pl.BlockSpec((nb, Dh), lambda n: (n, 0)),
        ),
        out_shape=(
            jax.ShapeDtypeStruct((T, Np, Dh), jnp.float32),
            jax.ShapeDtypeStruct((Np, Dh), jnp.float32),
        ),
        compiler_params=pltpu.CompilerParams(dimension_semantics=("parallel",)),
    )(memory, mask, wc, w, b.reshape(1, Dh), u.reshape(1, Dh))
    return proj[:, :N, :], pooled[:N]


# ----------------------------------------------------------------------------------
# Dense + tanh (state_wc & state_wh fused into one matmul)
# ----------------------------------------------------------------------------------

def _dense_tanh_kernel(x_ref, w_ref, b_ref, o_ref):
    o_ref[...] = jnp.tanh(jnp.dot(x_ref[...], w_ref[...],
                                  preferred_element_type=jnp.float32) + b_ref[...])


def dense_tanh(x, w, b):
    M = x.shape[0]
    N = w.shape[1]
    return pl.pallas_call(
        _dense_tanh_kernel,
        out_shape=jax.ShapeDtypeStruct((M, N), jnp.float32),
    )(x, w, b.reshape(1, N))


# ----------------------------------------------------------------------------------
# hierarchical_attention forward (encode + build_init_state)
# ----------------------------------------------------------------------------------

@functools.partial(jax.jit, static_argnums=(5,))
def hierarchical_attention_forward(params, contents, contents_mask,
                                   contents_length, sent_mask, num_layers):
    """contents: (B, S, L) int32 tokens; contents_mask: (B, S, L) {0,1};
    contents_length: (B,) #sentences per doc; sent_mask: (B, S) {0,1}."""
    B, S, L = contents.shape
    E = params["embedding"].shape[1]
    NS = S * B   # sentences processed in s-major order (so reshapes below are free)

    # --- word level (time-major) ---
    tokens_sb = jnp.transpose(contents, (1, 0, 2)).reshape(NS, L)          # (S*B, L)
    emb = jnp.take(params["embedding"], tokens_sb.T, axis=0)               # (L, S*B, E)
    word_len = jnp.sum(contents_mask, axis=-1).astype(jnp.int32)           # (B, S)
    word_len = jnp.transpose(word_len, (1, 0)).reshape(NS)
    lstm_wmask = (jnp.arange(L, dtype=jnp.int32)[:, None]
                  < word_len[None, :]).astype(jnp.float32)[:, :, None]     # (L, S*B, 1)
    pool_wmask = jnp.transpose(contents_mask, (2, 1, 0)
                               ).reshape(L, NS, 1).astype(jnp.float32)

    word_ctx = bilstm(emb, lstm_wmask,
                      params["word_enc_f"], params["word_enc_b"])          # (L, S*B, 2E)
    sent_vec = attn_pool(word_ctx, pool_wmask, *params["word_pool"])       # (S*B, 2E)

    # pad_sequence: padded sentence slots become zero vectors
    sent_mask_t = jnp.transpose(sent_mask, (1, 0)).astype(jnp.float32)     # (S, B)
    sent_vec = sent_vec.reshape(S, B, 2 * E) * sent_mask_t[:, :, None]     # (S, B, 2E)

    # --- sentence level ---
    lstm_smask = (jnp.arange(S, dtype=jnp.int32)[:, None]
                  < contents_length[None, :].astype(jnp.int32)
                  ).astype(jnp.float32)[:, :, None]                        # (S, B, 1)
    sent_hidden = bilstm(sent_vec, lstm_smask,
                         params["sent_enc_f"], params["sent_enc_b"])       # (S, B, 4E)
    context_t, state = proj_attn_pool(sent_hidden, sent_mask_t[:, :, None],
                                      params["w_context"], *params["sent_pool"])
    Dh = params["w_context"].shape[1]                                      # = 2E
    context = jnp.transpose(context_t, (1, 0, 2))                          # (B, S, Dh)

    # --- build_init_state (state_wc + state_wh fused) ---
    wc, bc = params["state_wc"]
    wh, bh = params["state_wh"]
    ch = dense_tanh(state, jnp.concatenate([wc, wh], axis=1),
                    jnp.concatenate([bc, bh], axis=0))                     # (B, 2*Dh*nl)
    half = Dh * num_layers
    c0 = ch[:, :half].reshape(B, num_layers, Dh).transpose(1, 0, 2)
    h0 = ch[:, half:].reshape(B, num_layers, Dh).transpose(1, 0, 2)

    # TODO(synk): decoder (models.rnn_decoder) + final softmax not translatable (external).
    return context, state, c0, h0


# ----------------------------------------------------------------------------------
# Deterministic parameter init
# ----------------------------------------------------------------------------------

def _uniform(key, shape, scale=0.1):
    return jax.random.uniform(key, shape, jnp.float32, -scale, scale)


def init_lstm_dir(key, input_size, hidden_size):
    k1, k2, k3 = jax.random.split(key, 3)
    w_ih = _uniform(k1, (input_size, 4 * hidden_size))
    w_hh = _uniform(k2, (hidden_size, 4 * hidden_size))
    b = _uniform(k3, (4 * hidden_size,))      # b_ih + b_hh combined at load time
    return (w_ih, w_hh, b)


def init_attn_pool(key, hidden_size):
    k1, k2, k3 = jax.random.split(key, 3)
    w = _uniform(k1, (hidden_size, hidden_size))
    b = _uniform(k2, (hidden_size,))
    u = _uniform(k3, (hidden_size, 1))
    return (w, b, u)


def init_params(key, vocab_size, emb_size, num_layers):
    dec_hidden = 2 * emb_size                 # decoder_hidden_size must equal 2 * emb_size
    keys = jax.random.split(key, 12)
    params = {
        "embedding": _uniform(keys[0], (vocab_size, emb_size), 0.5),
        "word_enc_f": init_lstm_dir(keys[1], emb_size, emb_size),
        "word_enc_b": init_lstm_dir(keys[2], emb_size, emb_size),
        "word_pool": init_attn_pool(keys[3], 2 * emb_size),
        "sent_enc_f": init_lstm_dir(keys[4], 2 * emb_size, 2 * emb_size),
        "sent_enc_b": init_lstm_dir(keys[5], 2 * emb_size, 2 * emb_size),
        "w_context": _uniform(keys[6], (2 * dec_hidden, dec_hidden)),   # bias=False
        "sent_pool": init_attn_pool(keys[7], dec_hidden),
        "state_wc": (_uniform(keys[8], (dec_hidden, dec_hidden * num_layers)),
                     _uniform(keys[9], (dec_hidden * num_layers,))),
        "state_wh": (_uniform(keys[10], (dec_hidden, dec_hidden * num_layers)),
                     _uniform(keys[11], (dec_hidden * num_layers,))),
    }
    return params


# ----------------------------------------------------------------------------------
# Main
# ----------------------------------------------------------------------------------

if __name__ == "__main__":
    key = jax.random.PRNGKey(0)

    # config: emb_size=16, num_layers=1, dropout=0.0, bidirec=True, decoder_hidden=32
    VOCAB = 50
    EMB = 16
    NUM_LAYERS = 1
    B, S, L = 2, 4, 8        # 2 docs, up to 4 sentences each, up to 8 words per sentence

    k_param, k_tok = jax.random.split(key)
    params = init_params(k_param, VOCAB, EMB, NUM_LAYERS)

    contents = jax.random.randint(k_tok, (B, S, L), 1, VOCAB, dtype=jnp.int32)

    # per-sentence word lengths (doc 2 has only 3 real sentences)
    word_lengths = jnp.array([[8, 5, 7, 3],
                              [6, 8, 4, 0]], dtype=jnp.int32)
    contents_mask = (jnp.arange(L, dtype=jnp.int32)[None, None, :]
                     < word_lengths[:, :, None]).astype(jnp.float32)     # (B, S, L)
    contents_length = jnp.array([4, 3], dtype=jnp.int32)                 # sentences per doc
    sent_mask = (jnp.arange(S, dtype=jnp.int32)[None, :]
                 < contents_length[:, None]).astype(jnp.float32)         # (B, S)

    outs = hierarchical_attention_forward(
        params, contents, contents_mask, contents_length, sent_mask, NUM_LAYERS)
    jax.block_until_ready(outs)

    context, state, c0, h0 = outs
    assert context.shape == (B, S, 2 * EMB)
    assert state.shape == (B, 2 * EMB)
    assert c0.shape == (NUM_LAYERS, B, 2 * EMB)
    assert h0.shape == (NUM_LAYERS, B, 2 * EMB)

    print("KERNEL_OK")
</pallas_src>

<mosaic_0001>
module attributes {stable_mosaic.version = 11 : i64} {
  func.func @_attn_pool_kernel(%arg0: i32, %arg1: memref<8x8x32xf32, #tpu.memory_space<vmem>>, %arg2: memref<8x8x1xf32, #tpu.memory_space<vmem>>, %arg3: memref<32x32xf32, #tpu.memory_space<vmem>>, %arg4: memref<1x32xf32, #tpu.memory_space<vmem>>, %arg5: memref<1x32xf32, #tpu.memory_space<vmem>>, %arg6: memref<8x32xf32, #tpu.memory_space<vmem>>) attributes {dimension_semantics = [#tpu.dimension_semantics<parallel>], iteration_bounds = array<i64: 1>, scalar_prefetch = 0 : i64, scratch_operands = 0 : i64, tpu.core_type = #tpu.core_type<tc>, window_params = [{transform_indices = @transform_0, window_bounds = array<i64: 8, 8, 32>}, {transform_indices = @transform_1, window_bounds = array<i64: 8, 8, 1>}, {pipeline_mode = #tpu.pipeline_mode<synchronous>, transform_indices = @transform_2, window_bounds = array<i64: 32, 32>}, {pipeline_mode = #tpu.pipeline_mode<synchronous>, transform_indices = @transform_3, window_bounds = array<i64: 1, 32>}, {pipeline_mode = #tpu.pipeline_mode<synchronous>, transform_indices = @transform_4, window_bounds = array<i64: 1, 32>}, {transform_indices = @transform_5, window_bounds = array<i64: 8, 32>}]} {
    %c0 = arith.constant 0 : index
    %c0_0 = arith.constant 0 : index
    %c0_1 = arith.constant 0 : index
    %0 = vector.load %arg1[%c0, %c0_0, %c0_1] : memref<8x8x32xf32, #tpu.memory_space<vmem>>, vector<8x8x32xf32>
    %1 = vector.shape_cast %0 : vector<8x8x32xf32> to vector<64x32xf32>
    %c0_2 = arith.constant 0 : index
    %c0_3 = arith.constant 0 : index
    %2 = vector.load %arg3[%c0_2, %c0_3] : memref<32x32xf32, #tpu.memory_space<vmem>>, vector<32x32xf32>
    %cst = arith.constant dense<0.000000e+00> : vector<64x32xf32>
    %3 = tpu.matmul %1, %2, %cst {dimension_numbers = #tpu.dot_dimension_numbers<[1], [0], [0], [1], [0, 0, 1, 1], [], []>} : vector<64x32xf32>, vector<32x32xf32>, vector<64x32xf32> -> vector<64x32xf32>
    %c0_4 = arith.constant 0 : index
    %c0_5 = arith.constant 0 : index
    %4 = vector.load %arg4[%c0_4, %c0_5] : memref<1x32xf32, #tpu.memory_space<vmem>>, vector<1x32xf32>
    %5 = vector.broadcast %4 : vector<1x32xf32> to vector<64x32xf32>
    %6 = arith.addf %3, %5 : vector<64x32xf32>
    %7 = math.tanh %6 : vector<64x32xf32>
    %8 = vector.shape_cast %7 : vector<64x32xf32> to vector<8x8x32xf32>
    %c0_6 = arith.constant 0 : index
    %c0_7 = arith.constant 0 : index
    %c0_8 = arith.constant 0 : index
    %9 = vector.load %arg2[%c0_6, %c0_7, %c0_8] : memref<8x8x1xf32, #tpu.memory_space<vmem>>, vector<8x8x1xf32>
    %c0_9 = arith.constant 0 : index
    %c0_10 = arith.constant 0 : index
    %10 = vector.load %arg5[%c0_9, %c0_10] : memref<1x32xf32, #tpu.memory_space<vmem>>, vector<1x32xf32>
    %11 = vector.shape_cast %10 : vector<1x32xf32> to vector<1x1x32xf32>
    %12 = vector.broadcast %11 : vector<1x1x32xf32> to vector<8x8x32xf32>
    %13 = arith.mulf %8, %12 : vector<8x8x32xf32>
    %cst_11 = arith.constant dense<0.000000e+00> : vector<8x8xf32>
    %14 = vector.multi_reduction <add>, %13, %cst_11 [2] : vector<8x8x32xf32> to vector<8x8xf32>
    %15 = vector.shape_cast %14 : vector<8x8xf32> to vector<8x8x1xf32>
    %cst_12 = arith.constant 5.000000e-01 : f32
    %16 = vector.broadcast %cst_12 : f32 to vector<8x8x1xf32>
    %17 = arith.cmpf olt, %9, %16 : vector<8x8x1xf32>
    %cst_13 = arith.constant -1.000000e+09 : f32
    %18 = vector.broadcast %cst_13 : f32 to vector<8x8x1xf32>
    %19 = arith.select %17, %18, %15 : vector<8x8x1xi1>, vector<8x8x1xf32>
    %cst_14 = arith.constant dense<0xFF800000> : vector<8x1xf32>
    %20 = vector.multi_reduction <maximumf>, %19, %cst_14 [0] : vector<8x8x1xf32> to vector<8x1xf32>
    %21 = vector.shape_cast %20 : vector<8x1xf32> to vector<1x8x1xf32>
    %22 = vector.broadcast %21 : vector<1x8x1xf32> to vector<8x8x1xf32>
    %23 = arith.subf %19, %22 : vector<8x8x1xf32>
    %24 = math.exp %23 : vector<8x8x1xf32>
    %cst_15 = arith.constant dense<0.000000e+00> : vector<8x1xf32>
    %25 = vector.multi_reduction <add>, %24, %cst_15 [0] : vector<8x8x1xf32> to vector<8x1xf32>
    %26 = vector.shape_cast %25 : vector<8x1xf32> to vector<1x8x1xf32>
    %27 = tpu.reciprocal %26 {approx = true} : vector<1x8x1xf32> -> vector<1x8x1xf32>
    %28 = vector.broadcast %27 : vector<1x8x1xf32> to vector<8x8x1xf32>
    %29 = arith.mulf %24, %28 : vector<8x8x1xf32>
    %30 = vector.broadcast %29 : vector<8x8x1xf32> to vector<8x8x32xf32>
    %31 = arith.mulf %30, %0 : vector<8x8x32xf32>
    %cst_16 = arith.constant dense<0.000000e+00> : vector<8x32xf32>
    %32 = vector.multi_reduction <add>, %31, %cst_16 [0] : vector<8x8x32xf32> to vector<8x32xf32>
    %c0_17 = arith.constant 0 : index
    %c0_18 = arith.constant 0 : index
    %33 = vector.load %arg6[%c0_17, %c0_18] : memref<8x32xf32, #tpu.memory_space<vmem>>, vector<8x32xf32>
    tpu.vector_store %arg6[%c0_17, %c0_18], %32 {strides = array<i32>} : memref<8x32xf32, #tpu.memory_space<vmem>>, vector<8x32xf32>,
    return
  }
  func.func @transform_0(%arg0: i32) -> (i32, i32, i32) {
    %c0_i32 = arith.constant 0 : i32
    %c0_i32_0 = arith.constant 0 : i32
    %c0_i32_1 = arith.constant 0 : i32
    return %c0_i32, %arg0, %c0_i32_0 : i32, i32, i32
  }
  func.func @transform_1(%arg0: i32) -> (i32, i32, i32) {
    %c0_i32 = arith.constant 0 : i32
    %c0_i32_0 = arith.constant 0 : i32
    %c0_i32_1 = arith.constant 0 : i32
    return %c0_i32, %arg0, %c0_i32_0 : i32, i32, i32
  }
  func.func @transform_2(%arg0: i32) -> (i32, i32) {
    %c0_i32 = arith.constant 0 : i32
    %c0_i32_0 = arith.constant 0 : i32
    %c0_i32_1 = arith.constant 0 : i32
    return %c0_i32, %c0_i32_0 : i32, i32
  }
  func.func @transform_3(%arg0: i32) -> (i32, i32) {
    %c0_i32 = arith.constant 0 : i32
    %c0_i32_0 = arith.constant 0 : i32
    %c0_i32_1 = arith.constant 0 : i32
    return %c0_i32, %c0_i32_0 : i32, i32
  }
  func.func @transform_4(%arg0: i32) -> (i32, i32) {
    %c0_i32 = arith.constant 0 : i32
    %c0_i32_0 = arith.constant 0 : i32
    %c0_i32_1 = arith.constant 0 : i32
    return %c0_i32, %c0_i32_0 : i32, i32
  }
  func.func @transform_5(%arg0: i32) -> (i32, i32) {
    %c0_i32 = arith.constant 0 : i32
    %c0_i32_0 = arith.constant 0 : i32
    return %arg0, %c0_i32 : i32, i32
  }
}

module attributes {stable_mosaic.version = 11 : i64} {
  func.func @_bilstm_kernel(%arg0: i32, %arg1: memref<64x16xf32, #tpu.memory_space<vmem>>, %arg2: memref<8x8x1xf32, #tpu.memory_space<vmem>>, %arg3: memref<1x16x64xf32, #tpu.memory_space<vmem>>, %arg4: memref<1x16x64xf32, #tpu.memory_space<vmem>>, %arg5: memref<1x1x64xf32, #tpu.memory_space<vmem>>, %arg6: memref<1x8x8x16xf32, #tpu.memory_space<vmem>>, %arg7: memref<64x64xf32, #tpu.memory_space<vmem>>, %arg8: memref<8x16xf32, #tpu.memory_space<vmem>>, %arg9: memref<8x16xf32, #tpu.memory_space<vmem>>) attributes {dimension_semantics = [#tpu.dimension_semantics<parallel>], iteration_bounds = array<i64: 2>, scalar_prefetch = 0 : i64, scratch_operands = 3 : i64, tpu.core_type = #tpu.core_type<tc>, window_params = [{pipeline_mode = #tpu.pipeline_mode<synchronous>, transform_indices = @transform_0, window_bounds = array<i64: 64, 16>}, {pipeline_mode = #tpu.pipeline_mode<synchronous>, transform_indices = @transform_1, window_bounds = array<i64: 8, 8, 1>}, {transform_indices = @transform_2, window_bounds = array<i64: 1, 16, 64>}, {transform_indices = @transform_3, window_bounds = array<i64: 1, 16, 64>}, {transform_indices = @transform_4, window_bounds = array<i64: 1, 1, 64>}, {transform_indices = @transform_5, window_bounds = array<i64: 1, 8, 8, 16>}]} {
    %c0 = arith.constant 0 : index
    %c0_0 = arith.constant 0 : index
    %0 = vector.load %arg1[%c0, %c0_0] : memref<64x16xf32, #tpu.memory_space<vmem>>, vector<64x16xf32>
    %c0_1 = arith.constant 0 : index
    %c0_2 = arith.constant 0 : index
    %c0_3 = arith.constant 0 : index
    %1 = vector.load %arg3[%c0_1, %c0_2, %c0_3] : memref<1x16x64xf32, #tpu.memory_space<vmem>>, vector<1x16x64xf32>
    %2 = vector.shape_cast %1 : vector<1x16x64xf32> to vector<16x64xf32>
    %cst = arith.constant dense<0.000000e+00> : vector<64x64xf32>
    %3 = tpu.matmul %0, %2, %cst {dimension_numbers = #tpu.dot_dimension_numbers<[1], [0], [0], [1], [0, 0, 1, 1], [], []>} : vector<64x16xf32>, vector<16x64xf32>, vector<64x64xf32> -> vector<64x64xf32>
    %c0_4 = arith.constant 0 : index
    %c0_5 = arith.constant 0 : index
    %c0_6 = arith.constant 0 : index
    %4 = vector.load %arg5[%c0_4, %c0_5, %c0_6] : memref<1x1x64xf32, #tpu.memory_space<vmem>>, vector<1x1x64xf32>
    %5 = vector.shape_cast %4 : vector<1x1x64xf32> to vector<1x64xf32>
    %6 = vector.broadcast %5 : vector<1x64xf32> to vector<64x64xf32>
    %7 = arith.addf %3, %6 : vector<64x64xf32>
    %c0_7 = arith.constant 0 : index
    %c0_8 = arith.constant 0 : index
    %8 = vector.load %arg7[%c0_7, %c0_8] : memref<64x64xf32, #tpu.memory_space<vmem>>, vector<64x64xf32>
    tpu.vector_store %arg7[%c0_7, %c0_8], %7 {strides = array<i32>} : memref<64x64xf32, #tpu.memory_space<vmem>>, vector<64x64xf32>,
    %cst_9 = arith.constant 0.000000e+00 : f32
    %9 = vector.broadcast %cst_9 : f32 to vector<8x16xf32>
    %c0_10 = arith.constant 0 : index
    %c0_11 = arith.constant 0 : index
    %10 = vector.load %arg8[%c0_10, %c0_11] : memref<8x16xf32, #tpu.memory_space<vmem>>, vector<8x16xf32>
    tpu.vector_store %arg8[%c0_10, %c0_11], %9 {strides = array<i32>} : memref<8x16xf32, #tpu.memory_space<vmem>>, vector<8x16xf32>,
    %cst_12 = arith.constant 0.000000e+00 : f32
    %11 = vector.broadcast %cst_12 : f32 to vector<8x16xf32>
    %c0_13 = arith.constant 0 : index
    %c0_14 = arith.constant 0 : index
    %12 = vector.load %arg9[%c0_13, %c0_14] : memref<8x16xf32, #tpu.memory_space<vmem>>, vector<8x16xf32>
    tpu.vector_store %arg9[%c0_13, %c0_14], %11 {strides = array<i32>} : memref<8x16xf32, #tpu.memory_space<vmem>>, vector<8x16xf32>,
    %c0_i32 = arith.constant 0 : i32
    %c0_i32_15 = arith.constant 0 : i32
    %13 = arith.cmpi eq, %arg0, %c0_i32_15 : i32
    %c7_i32 = arith.constant 7 : i32
    %14 = arith.subi %c7_i32, %c0_i32 : i32
    %15 = arith.select %13, %c0_i32, %14 : i32
    %c8_i32 = arith.constant 8 : i32
    %16 = arith.muli %15, %c8_i32 : i32
    %17 = tpu.assume_multiple %16, 8 : i32
    %18 = arith.index_cast %15 : i32 to index
    %c0_16 = arith.constant 0 : index
    %c0_17 = arith.constant 0 : index
    %19 = vector.load %arg2[%18, %c0_16, %c0_17] : memref<8x8x1xf32, #tpu.memory_space<vmem>>, vector<1x8x1xf32>
    %20 = vector.shape_cast %19 : vector<1x8x1xf32> to vector<8x1xf32>
    %21 = arith.index_cast %17 : i32 to index
    %c0_18 = arith.constant 0 : index
    %22 = vector.load %arg7[%21, %c0_18] : memref<64x64xf32, #tpu.memory_space<vmem>>, vector<8x64xf32>
    %c0_19 = arith.constant 0 : index
    %c0_20 = arith.constant 0 : index
    %23 = vector.load %arg8[%c0_19, %c0_20] : memref<8x16xf32, #tpu.memory_space<vmem>>, vector<8x16xf32>
    %c0_21 = arith.constant 0 : index
    %c0_22 = arith.constant 0 : index
    %c0_23 = arith.constant 0 : index
    %24 = vector.load %arg4[%c0_21, %c0_22, %c0_23] : memref<1x16x64xf32, #tpu.memory_space<vmem>>, vector<1x16x64xf32>
    %25 = vector.shape_cast %24 : vector<1x16x64xf32> to vector<16x64xf32>
    %cst_24 = arith.constant dense<0.000000e+00> : vector<8x64xf32>
    %26 = tpu.matmul %23, %25, %cst_24 {dimension_numbers = #tpu.dot_dimension_numbers<[1], [0], [0], [1], [0, 0, 1, 1], [], []>} : vector<8x16xf32>, vector<16x64xf32>, vector<8x64xf32> -> vector<8x64xf32>
    %27 = arith.addf %22, %26 : vector<8x64xf32>
    %28 = vector.extract_strided_slice %27 {offsets = [0, 0], sizes = [8, 16], strides = [1, 1]} : vector<8x64xf32> to vector<8x16xf32>
    %cst_25 = arith.constant 5.000000e-01 : f32
    %29 = vector.broadcast %cst_25 : f32 to vector<8x16xf32>
    %30 = arith.mulf %29, %28 : vector<8x16xf32>
    %31 = math.tanh %30 : vector<8x16xf32>
    %cst_26 = arith.constant 1.000000e+00 : f32
    %32 = vector.broadcast %cst_26 : f32 to vector<8x16xf32>
    %33 = arith.addf %31, %32 : vector<8x16xf32>
    %cst_27 = arith.constant 5.000000e-01 : f32
    %34 = vector.broadcast %cst_27 : f32 to vector<8x16xf32>
    %35 = arith.mulf %34, %33 : vector<8x16xf32>
    %36 = vector.extract_strided_slice %27 {offsets = [0, 16], sizes = [8, 16], strides = [1, 1]} : vector<8x64xf32> to vector<8x16xf32>
    %cst_28 = arith.constant 5.000000e-01 : f32
    %37 = vector.broadcast %cst_28 : f32 to vector<8x16xf32>
    %38 = arith.mulf %37, %36 : vector<8x16xf32>
    %39 = math.tanh %38 : vector<8x16xf32>
    %cst_29 = arith.constant 1.000000e+00 : f32
    %40 = vector.broadcast %cst_29 : f32 to vector<8x16xf32>
    %41 = arith.addf %39, %40 : vector<8x16xf32>
    %cst_30 = arith.constant 5.000000e-01 : f32
    %42 = vector.broadcast %cst_30 : f32 to vector<8x16xf32>
    %43 = arith.mulf %42, %41 : vector<8x16xf32>
    %44 = vector.extract_strided_slice %27 {offsets = [0, 32], sizes = [8, 16], strides = [1, 1]} : vector<8x64xf32> to vector<8x16xf32>
    %45 = math.tanh %44 : vector<8x16xf32>
    %46 = vector.extract_strided_slice %27 {offsets = [0, 48], sizes = [8, 16], strides = [1, 1]} : vector<8x64xf32> to vector<8x16xf32>
    %cst_31 = arith.constant 5.000000e-01 : f32
    %47 = vector.broadcast %cst_31 : f32 to vector<8x16xf32>
    %48 = arith.mulf %47, %46 : vector<8x16xf32>
    %49 = math.tanh %48 : vector<8x16xf32>
    %cst_32 = arith.constant 1.000000e+00 : f32
    %50 = vector.broadcast %cst_32 : f32 to vector<8x16xf32>
    %51 = arith.addf %49, %50 : vector<8x16xf32>
    %cst_33 = arith.constant 5.000000e-01 : f32
    %52 = vector.broadcast %cst_33 : f32 to vector<8x16xf32>
    %53 = arith.mulf %52, %51 : vector<8x16xf32>
    %c0_34 = arith.constant 0 : index
    %c0_35 = arith.constant 0 : index
    %54 = vector.load %arg9[%c0_34, %c0_35] : memref<8x16xf32, #tpu.memory_space<vmem>>, vector<8x16xf32>
    %55 = arith.mulf %43, %54 : vector<8x16xf32>
    %56 = arith.mulf %35, %45 : vector<8x16xf32>
    %57 = arith.addf %55, %56 : vector<8x16xf32>
    %58 = math.tanh %57 : vector<8x16xf32>
    %59 = arith.mulf %53, %58 : vector<8x16xf32>
    %60 = vector.broadcast %20 : vector<8x1xf32> to vector<8x16xf32>
    %61 = arith.mulf %60, %57 : vector<8x16xf32>
    %cst_36 = arith.constant 1.000000e+00 : f32
    %62 = vector.broadcast %cst_36 : f32 to vector<8x1xf32>
    %63 = arith.subf %62, %20 : vector<8x1xf32>
    %c0_37 = arith.constant 0 : index
    %c0_38 = arith.constant 0 : index
    %64 = vector.load %arg9[%c0_37, %c0_38] : memref<8x16xf32, #tpu.memory_space<vmem>>, vector<8x16xf32>
    %65 = vector.broadcast %63 : vector<8x1xf32> to vector<8x16xf32>
    %66 = arith.mulf %65, %64 : vector<8x16xf32>
    %67 = arith.addf %61, %66 : vector<8x16xf32>
    %c0_39 = arith.constant 0 : index
    %c0_40 = arith.constant 0 : index
    %68 = vector.load %arg9[%c0_39, %c0_40] : memref<8x16xf32, #tpu.memory_space<vmem>>, vector<8x16xf32>
    tpu.vector_store %arg9[%c0_39, %c0_40], %67 {strides = array<i32>} : memref<8x16xf32, #tpu.memory_space<vmem>>, vector<8x16xf32>,
    %69 = vector.broadcast %20 : vector<8x1xf32> to vector<8x16xf32>
    %70 = arith.mulf %69, %59 : vector<8x16xf32>
    %cst_41 = arith.constant 1.000000e+00 : f32
    %71 = vector.broadcast %cst_41 : f32 to vector<8x1xf32>
    %72 = arith.subf %71, %20 : vector<8x1xf32>
    %c0_42 = arith.constant 0 : index
    %c0_43 = arith.constant 0 : index
    %73 = vector.load %arg8[%c0_42, %c0_43] : memref<8x16xf32, #tpu.memory_space<vmem>>, vector<8x16xf32>
    %74 = vector.broadcast %72 : vector<8x1xf32> to vector<8x16xf32>
    %75 = arith.mulf %74, %73 : vector<8x16xf32>
    %76 = arith.addf %70, %75 : vector<8x16xf32>
    %c0_44 = arith.constant 0 : index
    %c0_45 = arith.constant 0 : index
    %77 = vector.load %arg8[%c0_44, %c0_45] : memref<8x16xf32, #tpu.memory_space<vmem>>, vector<8x16xf32>
    tpu.vector_store %arg8[%c0_44, %c0_45], %76 {strides = array<i32>} : memref<8x16xf32, #tpu.memory_space<vmem>>, vector<8x16xf32>,
    %78 = vector.broadcast %20 : vector<8x1xf32> to vector<8x16xf32>
    %79 = arith.mulf %78, %59 : vector<8x16xf32>
    %c0_46 = arith.constant 0 : index
    %80 = arith.index_cast %15 : i32 to index
    %c0_47 = arith.constant 0 : index
    %c0_48 = arith.constant 0 : index
    %81 = vector.load %arg6[%c0_46, %80, %c0_47, %c0_48] : memref<1x8x8x16xf32, #tpu.memory_space<vmem>>, vector<1x1x8x16xf32>
    %82 = vector.shape_cast %81 : vector<1x1x8x16xf32> to vector<8x16xf32>
    %83 = vector.shape_cast %79 : vector<8x16xf32> to vector<1x1x8x16xf32>
    tpu.vector_store %arg6[%c0_46, %80, %c0_47, %c0_48], %83 {strides = array<i32>} : memref<1x8x8x16xf32, #tpu.memory_space<vmem>>, vector<1x1x8x16xf32>,
    %c1_i32 = arith.constant 1 : i32
    %c0_i32_49 = arith.constant 0 : i32
    %84 = arith.cmpi eq, %arg0, %c0_i32_49 : i32
    %c7_i32_50 = arith.constant 7 : i32
    %85 = arith.subi %c7_i32_50, %c1_i32 : i32
    %86 = arith.select %84, %c1_i32, %85 : i32
    %c8_i32_51 = arith.constant 8 : i32
    %87 = arith.muli %86, %c8_i32_51 : i32
    %88 = tpu.assume_multiple %87, 8 : i32
    %89 = arith.index_cast %86 : i32 to index
    %c0_52 = arith.constant 0 : index
    %c0_53 = arith.constant 0 : index
    %90 = vector.load %arg2[%89, %c0_52, %c0_53] : memref<8x8x1xf32, #tpu.memory_space<vmem>>, vector<1x8x1xf32>
    %91 = vector.shape_cast %90 : vector<1x8x1xf32> to vector<8x1xf32>
    %92 = arith.index_cast %88 : i32 to index
    %c0_54 = arith.constant 0 : index
    %93 = vector.load %arg7[%92, %c0_54] : memref<64x64xf32, #tpu.memory_space<vmem>>, vector<8x64xf32>
    %c0_55 = arith.constant 0 : index
    %c0_56 = arith.constant 0 : index
    %94 = vector.load %arg8[%c0_55, %c0_56] : memref<8x16xf32, #tpu.memory_space<vmem>>, vector<8x16xf32>
    %c0_57 = arith.constant 0 : index
    %c0_58 = arith.constant 0 : index
    %c0_59 = arith.constant 0 : index
    %95 = vector.load %arg4[%c0_57, %c0_58, %c0_59] : memref<1x16x64xf32, #tpu.memory_space<vmem>>, vector<1x16x64xf32>
    %96 = vector.shape_cast %95 : vector<1x16x64xf32> to vector<16x64xf32>
    %cst_60 = arith.constant dense<0.000000e+00> : vector<8x64xf32>
    %97 = tpu.matmul %94, %96, %cst_60 {dimension_numbers = #tpu.dot_dimension_numbers<[1], [0], [0], [1], [0, 0, 1, 1], [], []>} : vector<8x16xf32>, vector<16x64xf32>, vector<8x64xf32> -> vector<8x64xf32>
    %98 = arith.addf %93, %97 : vector<8x64xf32>
    %99 = vector.extract_strided_slice %98 {offsets = [0, 0], sizes = [8, 16], strides = [1, 1]} : vector<8x64xf32> to vector<8x16xf32>
    %cst_61 = arith.constant 5.000000e-01 : f32
    %100 = vector.broadcast %cst_61 : f32 to vector<8x16xf32>
    %101 = arith.mulf %100, %99 : vector<8x16xf32>
    %102 = math.tanh %101 : vector<8x16xf32>
    %cst_62 = arith.constant 1.000000e+00 : f32
    %103 = vector.broadcast %cst_62 : f32 to vector<8x16xf32>
    %104 = arith.addf %102, %103 : vector<8x16xf32>
    %cst_63 = arith.constant 5.000000e-01 : f32
    %105 = vector.broadcast %cst_63 : f32 to vector<8x16xf32>
    %106 = arith.mulf %105, %104 : vector<8x16xf32>
    %107 = vector.extract_strided_slice %98 {offsets = [0, 16], sizes = [8, 16], strides = [1, 1]} : vector<8x64xf32> to vector<8x16xf32>
    %cst_64 = arith.constant 5.000000e-01 : f32
    %108 = vector.broadcast %cst_64 : f32 to vector<8x16xf32>
    %109 = arith.mulf %108, %107 : vector<8x16xf32>
    %110 = math.tanh %109 : vector<8x16xf32>
    %cst_65 = arith.constant 1.000000e+00 : f32
    %111 = vector.broadcast %cst_65 : f32 to vector<8x16xf32>
    %112 = arith.addf %110, %111 : vector<8x16xf32>
    %cst_66 = arith.constant 5.000000e-01 : f32
    %113 = vector.broadcast %cst_66 : f32 to vector<8x16xf32>
    %114 = arith.mulf %113, %112 : vector<8x16xf32>
    %115 = vector.extract_strided_slice %98 {offsets = [0, 32], sizes = [8, 16], strides = [1, 1]} : vector<8x64xf32> to vector<8x16xf32>
    %116 = math.tanh %115 : vector<8x16xf32>
    %117 = vector.extract_strided_slice %98 {offsets = [0, 48], sizes = [8, 16], strides = [1, 1]} : vector<8x64xf32> to vector<8x16xf32>
    %cst_67 = arith.constant 5.000000e-01 : f32
    %118 = vector.broadcast %cst_67 : f32 to vector<8x16xf32>
    %119 = arith.mulf %118, %117 : vector<8x16xf32>
    %120 = math.tanh %119 : vector<8x16xf32>
    %cst_68 = arith.constant 1.000000e+00 : f32
    %121 = vector.broadcast %cst_68 : f32 to vector<8x16xf32>
    %122 = arith.addf %120, %121 : vector<8x16xf32>
    %cst_69 = arith.constant 5.000000e-01 : f32
    %123 = vector.broadcast %cst_69 : f32 to vector<8x16xf32>
    %124 = arith.mulf %123, %122 : vector<8x16xf32>
    %c0_70 = arith.constant 0 : index
    %c0_71 = arith.constant 0 : index
    %125 = vector.load %arg9[%c0_70, %c0_71] : memref<8x16xf32, #tpu.memory_space<vmem>>, vector<8x16xf32>
    %126 = arith.mulf %114, %125 : vector<8x16xf32>
    %127 = arith.mulf %106, %116 : vector<8x16xf32>
    %128 = arith.addf %126, %127 : vector<8x16xf32>
    %129 = math.tanh %128 : vector<8x16xf32>
    %130 = arith.mulf %124, %129 : vector<8x16xf32>
    %131 = vector.broadcast %91 : vector<8x1xf32> to vector<8x16xf32>
    %132 = arith.mulf %131, %128 : vector<8x16xf32>
    %cst_72 = arith.constant 1.000000e+00 : f32
    %133 = vector.broadcast %cst_72 : f32 to vector<8x1xf32>
    %134 = arith.subf %133, %91 : vector<8x1xf32>
    %c0_73 = arith.constant 0 : index
    %c0_74 = arith.constant 0 : index
    %135 = vector.load %arg9[%c0_73, %c0_74] : memref<8x16xf32, #tpu.memory_space<vmem>>, vector<8x16xf32>
    %136 = vector.broadcast %134 : vector<8x1xf32> to vector<8x16xf32>
    %137 = arith.mulf %136, %135 : vector<8x16xf32>
    %138 = arith.addf %132, %137 : vector<8x16xf32>
    %c0_75 = arith.constant 0 : index
    %c0_76 = arith.constant 0 : index
    %139 = vector.load %arg9[%c0_75, %c0_76] : memref<8x16xf32, #tpu.memory_space<vmem>>, vector<8x16xf32>
    tpu.vector_store %arg9[%c0_75, %c0_76], %138 {strides = array<i32>} : memref<8x16xf32, #tpu.memory_space<vmem>>, vector<8x16xf32>,
    %140 = vector.broadcast %91 : vector<8x1xf32> to vector<8x16xf32>
    %141 = arith.mulf %140, %130 : vector<8x16xf32>
    %cst_77 = arith.constant 1.000000e+00 : f32
    %142 = vector.broadcast %cst_77 : f32 to vector<8x1xf32>
    %143 = arith.subf %142, %91 : vector<8x1xf32>
    %c0_78 = arith.constant 0 : index
    %c0_79 = arith.constant 0 : index
    %144 = vector.load %arg8[%c0_78, %c0_79] : memref<8x16xf32, #tpu.memory_space<vmem>>, vector<8x16xf32>
    %145 = vector.broadcast %143 : vector<8x1xf32> to vector<8x16xf32>
    %146 = arith.mulf %145, %144 : vector<8x16xf32>
    %147 = arith.addf %141, %146 : vector<8x16xf32>
    %c0_80 = arith.constant 0 : index
    %c0_81 = arith.constant 0 : index
    %148 = vector.load %arg8[%c0_80, %c0_81] : memref<8x16xf32, #tpu.memory_space<vmem>>, vector<8x16xf32>
    tpu.vector_store %arg8[%c0_80, %c0_81], %147 {strides = array<i32>} : memref<8x16xf32, #tpu.memory_space<vmem>>, vector<8x16xf32>,
    %149 = vector.broadcast %91 : vector<8x1xf32> to vector<8x16xf32>
    %150 = arith.mulf %149, %130 : vector<8x16xf32>
    %c0_82 = arith.constant 0 : index
    %151 = arith.index_cast %86 : i32 to index
    %c0_83 = arith.constant 0 : index
    %c0_84 = arith.constant 0 : index
    %152 = vector.load %arg6[%c0_82, %151, %c0_83, %c0_84] : memref<1x8x8x16xf32, #tpu.memory_space<vmem>>, vector<1x1x8x16xf32>
    %153 = vector.shape_cast %152 : vector<1x1x8x16xf32> to vector<8x16xf32>
    %154 = vector.shape_cast %150 : vector<8x16xf32> to vector<1x1x8x16xf32>
    tpu.vector_store %arg6[%c0_82, %151, %c0_83, %c0_84], %154 {strides = array<i32>} : memref<1x8x8x16xf32, #tpu.memory_space<vmem>>, vector<1x1x8x16xf32>,
    %c2_i32 = arith.constant 2 : i32
    %c0_i32_85 = arith.constant 0 : i32
    %155 = arith.cmpi eq, %arg0, %c0_i32_85 : i32
    %c7_i32_86 = arith.constant 7 : i32
    %156 = arith.subi %c7_i32_86, %c2_i32 : i32
    %157 = arith.select %155, %c2_i32, %156 : i32
    %c8_i32_87 = arith.constant 8 : i32
    %158 = arith.muli %157, %c8_i32_87 : i32
    %159 = tpu.assume_multiple %158, 8 : i32
    %160 = arith.index_cast %157 : i32 to index
    %c0_88 = arith.constant 0 : index
    %c0_89 = arith.constant 0 : index
    %161 = vector.load %arg2[%160, %c0_88, %c0_89] : memref<8x8x1xf32, #tpu.memory_space<vmem>>, vector<1x8x1xf32>
    %162 = vector.shape_cast %161 : vector<1x8x1xf32> to vector<8x1xf32>
    %163 = arith.index_cast %159 : i32 to index
    %c0_90 = arith.constant 0 : index
    %164 = vector.load %arg7[%163, %c0_90] : memref<64x64xf32, #tpu.memory_space<vmem>>, vector<8x64xf32>
    %c0_91 = arith.constant 0 : index
    %c0_92 = arith.constant 0 : index
    %165 = vector.load %arg8[%c0_91, %c0_92] : memref<8x16xf32, #tpu.memory_space<vmem>>, vector<8x16xf32>
    %c0_93 = arith.constant 0 : index
    %c0_94 = arith.constant 0 : index
    %c0_95 = arith.constant 0 : index
    %166 = vector.load %arg4[%c0_93, %c0_94, %c0_95] : memref<1x16x64xf32, #tpu.memory_space<vmem>>, vector<1x16x64xf32>
    %167 = vector.shape_cast %166 : vector<1x16x64xf32> to vector<16x64xf32>
    %cst_96 = arith.constant dense<0.000000e+00> : vector<8x64xf32>
    %168 = tpu.matmul %165, %167, %cst_96 {dimension_numbers = #tpu.dot_dimension_numbers<[1], [0], [0], [1], [0, 0, 1, 1], [], []>} : vector<8x16xf32>, vector<16x64xf32>, vector<8x64xf32> -> vector<8x64xf32>
    %169 = arith.addf %164, %168 : vector<8x64xf32>
    %170 = vector.extract_strided_slice %169 {offsets = [0, 0], sizes = [8, 16], strides = [1, 1]} : vector<8x64xf32> to vector<8x16xf32>
    %cst_97 = arith.constant 5.000000e-01 : f32
    %171 = vector.broadcast %cst_97 : f32 to vector<8x16xf32>
    %172 = arith.mulf %171, %170 : vector<8x16xf32>
    %173 = math.tanh %172 : vector<8x16xf32>
    %cst_98 = arith.constant 1.000000e+00 : f32
    %174 = vector.broadcast %cst_98 : f32 to vector<8x16xf32>
    %175 = arith.addf %173, %174 : vector<8x16xf32>
    %cst_99 = arith.constant 5.000000e-01 : f32
    %176 = vector.broadcast %cst_99 : f32 to vector<8x16xf32>
    %177 = arith.mulf %176, %175 : vector<8x16xf32>
    %178 = vector.extract_strided_slice %169 {offsets = [0, 16], sizes = [8, 16], strides = [1, 1]} : vector<8x64xf32> to vector<8x16xf32>
    %cst_100 = arith.constant 5.000000e-01 : f32
    %179 = vector.broadcast %cst_100 : f32 to vector<8x16xf32>
    %180 = arith.mulf %179, %178 : vector<8x16xf32>
    %181 = math.tanh %180 : vector<8x16xf32>
    %cst_101 = arith.constant 1.000000e+00 : f32
    %182 = vector.broadcast %cst_101 : f32 to vector<8x16xf32>
    %183 = arith.addf %181, %182 : vector<8x16xf32>
    %cst_102 = arith.constant 5.000000e-01 : f32
    %184 = vector.broadcast %cst_102 : f32 to vector<8x16xf32>
    %185 = arith.mulf %184, %183 : vector<8x16xf32>
    %186 = vector.extract_strided_slice %169 {offsets = [0, 32], sizes = [8, 16], strides = [1, 1]} : vector<8x64xf32> to vector<8x16xf32>
    %187 = math.tanh %186 : vector<8x16xf32>
    %188 = vector.extract_strided_slice %169 {offsets = [0, 48], sizes = [8, 16], strides = [1, 1]} : vector<8x64xf32> to vector<8x16xf32>
    %cst_103 = arith.constant 5.000000e-01 : f32
    %189 = vector.broadcast %cst_103 : f32 to vector<8x16xf32>
    %190 = arith.mulf %189, %188 : vector<8x16xf32>
    %191 = math.tanh %190 : vector<8x16xf32>
    %cst_104 = arith.constant 1.000000e+00 : f32
    %192 = vector.broadcast %cst_104 : f32 to vector<8x16xf32>
    %193 = arith.addf %191, %192 : vector<8x16xf32>
    %cst_105 = arith.constant 5.000000e-01 : f32
    %194 = vector.broadcast %cst_105 : f32 to vector<8x16xf32>
    %195 = arith.mulf %194, %193 : vector<8x16xf32>
    %c0_106 = arith.constant 0 : index
    %c0_107 = arith.constant 0 : index
    %196 = vector.load %arg9[%c0_106, %c0_107] : memref<8x16xf32, #tpu.memory_space<vmem>>, vector<8x16xf32>
    %197 = arith.mulf %185, %196 : vector<8x16xf32>
    %198 = arith.mulf %177, %187 : vector<8x16xf32>
    %199 = arith.addf %197, %198 : vector<8x16xf32>
    %200 = math.tanh %199 : vector<8x16xf32>
    %201 = arith.mulf %195, %200 : vector<8x16xf32>
    %202 = vector.broadcast %162 : vector<8x1xf32> to vector<8x16xf32>
    %203 = arith.mulf %202, %199 : vector<8x16xf32>
    %cst_108 = arith.constant 1.000000e+00 : f32
    %204 = vector.broadcast %cst_108 : f32 to vector<8x1xf32>
    %205 = arith.subf %204, %162 : vector<8x1xf32>
    %c0_109 = arith.constant 0 : index
    %c0_110 = arith.constant 0 : index
    %206 = vector.load %arg9[%c0_109, %c0_110] : memref<8x16xf32, #tpu.memory_space<vmem>>, vector<8x16xf32>
    %207 = vector.broadcast %205 : vector<8x1xf32> to vector<8x16xf32>
    %208 = arith.mulf %207, %206 : vector<8x16xf32>
    %209 = arith.addf %203, %208 : vector<8x16xf32>
    %c0_111 = arith.constant 0 : index
    %c0_112 = arith.constant 0 : index
    %210 = vector.load %arg9[%c0_111, %c0_112] : memref<8x16xf32, #tpu.memory_space<vmem>>, vector<8x16xf32>
    tpu.vector_store %arg9[%c0_111, %c0_112], %209 {strides = array<i32>} : memref<8x16xf32, #tpu.memory_space<vmem>>, vector<8x16xf32>,
    %211 = vector.broadcast %162 : vector<8x1xf32> to vector<8x16xf32>
    %212 = arith.mulf %211, %201 : vector<8x16xf32>
    %cst_113 = arith.constant 1.000000e+00 : f32
    %213 = vector.broadcast %cst_113 : f32 to vector<8x1xf32>
    %214 = arith.subf %213, %162 : vector<8x1xf32>
    %c0_114 = arith.constant 0 : index
    %c0_115 = arith.constant 0 : index
    %215 = vector.load %arg8[%c0_114, %c0_115] : memref<8x16xf32, #tpu.memory_space<vmem>>, vector<8x16xf32>
    %216 = vector.broadcast %214 : vector<8x1xf32> to vector<8x16xf32>
    %217 = arith.mulf %216, %215 : vector<8x16xf32>
    %218 = arith.addf %212, %217 : vector<8x16xf32>
    %c0_116 = arith.constant 0 : index
    %c0_117 = arith.constant 0 : index
    %219 = vector.load %arg8[%c0_116, %c0_117] : memref<8x16xf32, #tpu.memory_space<vmem>>, vector<8x16xf32>
    tpu.vector_store %arg8[%c0_116, %c0_117], %218 {strides = array<i32>} : memref<8x16xf32, #tpu.memory_space<vmem>>, vector<8x16xf32>,
    %220 = vector.broadcast %162 : vector<8x1xf32> to vector<8x16xf32>
    %221 = arith.mulf %220, %201 : vector<8x16xf32>
    %c0_118 = arith.constant 0 : index
    %222 = arith.index_cast %157 : i32 to index
    %c0_119 = arith.constant 0 : index
    %c0_120 = arith.constant 0 : index
    %223 = vector.load %arg6[%c0_118, %222, %c0_119, %c0_120] : memref<1x8x8x16xf32, #tpu.memory_space<vmem>>, vector<1x1x8x16xf32>
    %224 = vector.shape_cast %223 : vector<1x1x8x16xf32> to vector<8x16xf32>
    %225 = vector.shape_cast %221 : vector<8x16xf32> to vector<1x1x8x16xf32>
    tpu.vector_store %arg6[%c0_118, %222, %c0_119, %c0_120], %225 {strides = array<i32>} : memref<1x8x8x16xf32, #tpu.memory_space<vmem>>, vector<1x1x8x16xf32>,
    %c3_i32 = arith.constant 3 : i32
    %c0_i32_121 = arith.constant 0 : i32
    %226 = arith.cmpi eq, %arg0, %c0_i32_121 : i32
    %c7_i32_122 = arith.constant 7 : i32
    %227 = arith.subi %c7_i32_122, %c3_i32 : i32
    %228 = arith.select %226, %c3_i32, %227 : i32
    %c8_i32_123 = arith.constant 8 : i32
    %229 = arith.muli %228, %c8_i32_123 : i32
    %230 = tpu.assume_multiple %229, 8 : i32
    %231 = arith.index_cast %228 : i32 to index
    %c0_124 = arith.constant 0 : index
    %c0_125 = arith.constant 0 : index
    %232 = vector.load %arg2[%231, %c0_124, %c0_125] : memref<8x8x1xf32, #tpu.memory_space<vmem>>, vector<1x8x1xf32>
    %233 = vector.shape_cast %232 : vector<1x8x1xf32> to vector<8x1xf32>
    %234 = arith.index_cast %230 : i32 to index
    %c0_126 = arith.constant 0 : index
    %235 = vector.load %arg7[%234, %c0_126] : memref<64x64xf32, #tpu.memory_space<vmem>>, vector<8x64xf32>
    %c0_127 = arith.constant 0 : index
    %c0_128 = arith.constant 0 : index
    %236 = vector.load %arg8[%c0_127, %c0_128] : memref<8x16xf32, #tpu.memory_space<vmem>>, vector<8x16xf32>
    %c0_129 = arith.constant 0 : index
    %c0_130 = arith.constant 0 : index
    %c0_131 = arith.constant 0 : index
    %237 = vector.load %arg4[%c0_129, %c0_130, %c0_131] : memref<1x16x64xf32, #tpu.memory_space<vmem>>, vector<1x16x64xf32>
    %238 = vector.shape_cast %237 : vector<1x16x64xf32> to vector<16x64xf32>
    %cst_132 = arith.constant dense<0.000000e+00> : vector<8x64xf32>
    %239 = tpu.matmul %236, %238, %cst_132 {dimension_numbers = #tpu.dot_dimension_numbers<[1], [0], [0], [1], [0, 0, 1, 1], [], []>} : vector<8x16xf32>, vector<16x64xf32>, vector<8x64xf32> -> vector<8x64xf32>
    %240 = arith.addf %235, %239 : vector<8x64xf32>
    %241 = vector.extract_strided_slice %240 {offsets = [0, 0], sizes = [8, 16], strides = [1, 1]} : vector<8x64xf32> to vector<8x16xf32>
    %cst_133 = arith.constant 5.000000e-01 : f32
    %242 = vector.broadcast %cst_133 : f32 to vector<8x16xf32>
    %243 = arith.mulf %242, %241 : vector<8x16xf32>
    %244 = math.tanh %243 : vector<8x16xf32>
    %cst_134 = arith.constant 1.000000e+00 : f32
    %245 = vector.broadcast %cst_134 : f32 to vector<8x16xf32>
    %246 = arith.addf %244, %245 : vector<8x16xf32>
    %cst_135 = arith.constant 5.000000e-01 : f32
    %247 = vector.broadcast %cst_135 : f32 to vector<8x16xf32>
    %248 = arith.mulf %247, %246 : vector<8x16xf32>
    %249 = vector.extract_strided_slice %240 {offsets = [0, 16], sizes = [8, 16], strides = [1, 1]} : vector<8x64xf32> to vector<8x16xf32>
    %cst_136 = arith.constant 5.000000e-01 : f32
    %250 = vector.broadcast %cst_136 : f32 to vector<8x16xf32>
    %251 = arith.mulf %250, %249 : vector<8x16xf32>
    %252 = math.tanh %251 : vector<8x16xf32>
    %cst_137 = arith.constant 1.000000e+00 : f32
    %253 = vector.broadcast %cst_137 : f32 to vector<8x16xf32>
    %254 = arith.addf %252, %253 : vector<8x16xf32>
    %cst_138 = arith.constant 5.000000e-01 : f32
    %255 = vector.broadcast %cst_138 : f32 to vector<8x16xf32>
    %256 = arith.mulf %255, %254 : vector<8x16xf32>
    %257 = vector.extract_strided_slice %240 {offsets = [0, 32], sizes = [8, 16], strides = [1, 1]} : vector<8x64xf32> to vector<8x16xf32>
    %258 = math.tanh %257 : vector<8x16xf32>
    %259 = vector.extract_strided_slice %240 {offsets = [0, 48], sizes = [8, 16], strides = [1, 1]} : vector<8x64xf32> to vector<8x16xf32>
    %cst_139 = arith.constant 5.000000e-01 : f32
    %260 = vector.broadcast %cst_139 : f32 to vector<8x16xf32>
    %261 = arith.mulf %260, %259 : vector<8x16xf32>
    %262 = math.tanh %261 : vector<8x16xf32>
    %cst_140 = arith.constant 1.000000e+00 : f32
    %263 = vector.broadcast %cst_140 : f32 to vector<8x16xf32>
    %264 = arith.addf %262, %263 : vector<8x16xf32>
    %cst_141 = arith.constant 5.000000e-01 : f32
    %265 = vector.broadcast %cst_141 : f32 to vector<8x16xf32>
    %266 = arith.mulf %265, %264 : vector<8x16xf32>
    %c0_142 = arith.constant 0 : index
    %c0_143 = arith.constant 0 : index
    %267 = vector.load %arg9[%c0_142, %c0_143] : memref<8x16xf32, #tpu.memory_space<vmem>>, vector<8x16xf32>
    %268 = arith.mulf %256, %267 : vector<8x16xf32>
    %269 = arith.mulf %248, %258 : vector<8x16xf32>
    %270 = arith.addf %268, %269 : vector<8x16xf32>
    %271 = math.tanh %270 : vector<8x16xf32>
    %272 = arith.mulf %266, %271 : vector<8x16xf32>
    %273 = vector.broadcast %233 : vector<8x1xf32> to vector<8x16xf32>
    %274 = arith.mulf %273, %270 : vector<8x16xf32>
    %cst_144 = arith.constant 1.000000e+00 : f32
    %275 = vector.broadcast %cst_144 : f32 to vector<8x1xf32>
    %276 = arith.subf %275, %233 : vector<8x1xf32>
    %c0_145 = arith.constant 0 : index
    %c0_146 = arith.constant 0 : index
    %277 = vector.load %arg9[%c0_145, %c0_146] : memref<8x16xf32, #tpu.memory_space<vmem>>, vector<8x16xf32>
    %278 = vector.broadcast %276 : vector<8x1xf32> to vector<8x16xf32>
    %279 = arith.mulf %278, %277 : vector<8x16xf32>
    %280 = arith.addf %274, %279 : vector<8x16xf32>
    %c0_147 = arith.constant 0 : index
    %c0_148 = arith.constant 0 : index
    %281 = vector.load %arg9[%c0_147, %c0_148] : memref<8x16xf32, #tpu.memory_space<vmem>>, vector<8x16xf32>
    tpu.vector_store %arg9[%c0_147, %c0_148], %280 {strides = array<i32>} : memref<8x16xf32, #tpu.memory_space<vmem>>, vector<8x16xf32>,
    %282 = vector.broadcast %233 : vector<8x1xf32> to vector<8x16xf32>
    %283 = arith.mulf %282, %272 : vector<8x16xf32>
    %cst_149 = arith.constant 1.000000e+00 : f32
    %284 = vector.broadcast %cst_149 : f32 to vector<8x1xf32>
    %285 = arith.subf %284, %233 : vector<8x1xf32>
    %c0_150 = arith.constant 0 : index
    %c0_151 = arith.constant 0 : index
    %286 = vector.load %arg8[%c0_150, %c0_151] : memref<8x16xf32, #tpu.memory_space<vmem>>, vector<8x16xf32>
    %287 = vector.broadcast %285 : vector<8x1xf32> to vector<8x16xf32>
    %288 = arith.mulf %287, %286 : vector<8x16xf32>
    %289 = arith.addf %283, %288 : vector<8x16xf32>
    %c0_152 = arith.constant 0 : index
    %c0_153 = arith.constant 0 : index
    %290 = vector.load %arg8[%c0_152, %c0_153] : memref<8x16xf32, #tpu.memory_space<vmem>>, vector<8x16xf32>
    tpu.vector_store %arg8[%c0_152, %c0_153], %289 {strides = array<i32>} : memref<8x16xf32, #tpu.memory_space<vmem>>, vector<8x16xf32>,
    %291 = vector.broadcast %233 : vector<8x1xf32> to vector<8x16xf32>
    %292 = arith.mulf %291, %272 : vector<8x16xf32>
    %c0_154 = arith.constant 0 : index
    %293 = arith.index_cast %228 : i32 to index
    %c0_155 = arith.constant 0 : index
    %c0_156 = arith.constant 0 : index
    %294 = vector.load %arg6[%c0_154, %293, %c0_155, %c0_156] : memref<1x8x8x16xf32, #tpu.memory_space<vmem>>, vector<1x1x8x16xf32>
    %295 = vector.shape_cast %294 : vector<1x1x8x16xf32> to vector<8x16xf32>
    %296 = vector.shape_cast %292 : vector<8x16xf32> to vector<1x1x8x16xf32>
    tpu.vector_store %arg6[%c0_154, %293, %c0_155, %c0_156], %296 {strides = array<i32>} : memref<1x8x8x16xf32, #tpu.memory_space<vmem>>, vector<1x1x8x16xf32>,
    %c4_i32 = arith.constant 4 : i32
    %c0_i32_157 = arith.constant 0 : i32
    %297 = arith.cmpi eq, %arg0, %c0_i32_157 : i32
    %c7_i32_158 = arith.constant 7 : i32
    %298 = arith.subi %c7_i32_158, %c4_i32 : i32
    %299 = arith.select %297, %c4_i32, %298 : i32
    %c8_i32_159 = arith.constant 8 : i32
    %300 = arith.muli %299, %c8_i32_159 : i32
    %301 = tpu.assume_multiple %300, 8 : i32
    %302 = arith.index_cast %299 : i32 to index
    %c0_160 = arith.constant 0 : index
    %c0_161 = arith.constant 0 : index
    %303 = vector.load %arg2[%302, %c0_160, %c0_161] : memref<8x8x1xf32, #tpu.memory_space<vmem>>, vector<1x8x1xf32>
    %304 = vector.shape_cast %303 : vector<1x8x1xf32> to vector<8x1xf32>
    %305 = arith.index_cast %301 : i32 to index
    %c0_162 = arith.constant 0 : index
    %306 = vector.load %arg7[%305, %c0_162] : memref<64x64xf32, #tpu.memory_space<vmem>>, vector<8x64xf32>
    %c0_163 = arith.constant 0 : index
    %c0_164 = arith.constant 0 : index
    %307 = vector.load %arg8[%c0_163, %c0_164] : memref<8x16xf32, #tpu.memory_space<vmem>>, vector<8x16xf32>
    %c0_165 = arith.constant 0 : index
    %c0_166 = arith.constant 0 : index
    %c0_167 = arith.constant 0 : index
    %308 = vector.load %arg4[%c0_165, %c0_166, %c0_167] : memref<1x16x64xf32, #tpu.memory_space<vmem>>, vector<1x16x64xf32>
    %309 = vector.shape_cast %308 : vector<1x16x64xf32> to vector<16x64xf32>
    %cst_168 = arith.constant dense<0.000000e+00> : vector<8x64xf32>
    %310 = tpu.matmul %307, %309, %cst_168 {dimension_numbers = #tpu.dot_dimension_numbers<[1], [0], [0], [1], [0, 0, 1, 1], [], []>} : vector<8x16xf32>, vector<16x64xf32>, vector<8x64xf32> -> vector<8x64xf32>
    %311 = arith.addf %306, %310 : vector<8x64xf32>
    %312 = vector.extract_strided_slice %311 {offsets = [0, 0], sizes = [8, 16], strides = [1, 1]} : vector<8x64xf32> to vector<8x16xf32>
    %cst_169 = arith.constant 5.000000e-01 : f32
    %313 = vector.broadcast %cst_169 : f32 to vector<8x16xf32>
    %314 = arith.mulf %313, %312 : vector<8x16xf32>
    %315 = math.tanh %314 : vector<8x16xf32>
    %cst_170 = arith.constant 1.000000e+00 : f32
    %316 = vector.broadcast %cst_170 : f32 to vector<8x16xf32>
    %317 = arith.addf %315, %316 : vector<8x16xf32>
    %cst_171 = arith.constant 5.000000e-01 : f32
    %318 = vector.broadcast %cst_171 : f32 to vector<8x16xf32>
    %319 = arith.mulf %318, %317 : vector<8x16xf32>
    %320 = vector.extract_strided_slice %311 {offsets = [0, 16], sizes = [8, 16], strides = [1, 1]} : vector<8x64xf32> to vector<8x16xf32>
    %cst_172 = arith.constant 5.000000e-01 : f32
    %321 = vector.broadcast %cst_172 : f32 to vector<8x16xf32>
    %322 = arith.mulf %321, %320 : vector<8x16xf32>
    %323 = math.tanh %322 : vector<8x16xf32>
    %cst_173 = arith.constant 1.000000e+00 : f32
    %324 = vector.broadcast %cst_173 : f32 to vector<8x16xf32>
    %325 = arith.addf %323, %324 : vector<8x16xf32>
    %cst_174 = arith.constant 5.000000e-01 : f32
    %326 = vector.broadcast %cst_174 : f32 to vector<8x16xf32>
    %327 = arith.mulf %326, %325 : vector<8x16xf32>
    %328 = vector.extract_strided_slice %311 {offsets = [0, 32], sizes = [8, 16], strides = [1, 1]} : vector<8x64xf32> to vector<8x16xf32>
    %329 = math.tanh %328 : vector<8x16xf32>
    %330 = vector.extract_strided_slice %311 {offsets = [0, 48], sizes = [8, 16], strides = [1, 1]} : vector<8x64xf32> to vector<8x16xf32>
    %cst_175 = arith.constant 5.000000e-01 : f32
    %331 = vector.broadcast %cst_175 : f32 to vector<8x16xf32>
    %332 = arith.mulf %331, %330 : vector<8x16xf32>
    %333 = math.tanh %332 : vector<8x16xf32>
    %cst_176 = arith.constant 1.000000e+00 : f32
    %334 = vector.broadcast %cst_176 : f32 to vector<8x16xf32>
    %335 = arith.addf %333, %334 : vector<8x16xf32>
    %cst_177 = arith.constant 5.000000e-01 : f32
    %336 = vector.broadcast %cst_177 : f32 to vector<8x16xf32>
    %337 = arith.mulf %336, %335 : vector<8x16xf32>
    %c0_178 = arith.constant 0 : index
    %c0_179 = arith.constant 0 : index
    %338 = vector.load %arg9[%c0_178, %c0_179] : memref<8x16xf32, #tpu.memory_space<vmem>>, vector<8x16xf32>
    %339 = arith.mulf %327, %338 : vector<8x16xf32>
    %340 = arith.mulf %319, %329 : vector<8x16xf32>
    %341 = arith.addf %339, %340 : vector<8x16xf32>
    %342 = math.tanh %341 : vector<8x16xf32>
    %343 = arith.mulf %337, %342 : vector<8x16xf32>
    %344 = vector.broadcast %304 : vector<8x1xf32> to vector<8x16xf32>
    %345 = arith.mulf %344, %341 : vector<8x16xf32>
    %cst_180 = arith.constant 1.000000e+00 : f32
    %346 = vector.broadcast %cst_180 : f32 to vector<8x1xf32>
    %347 = arith.subf %346, %304 : vector<8x1xf32>
    %c0_181 = arith.constant 0 : index
    %c0_182 = arith.constant 0 : index
    %348 = vector.load %arg9[%c0_181, %c0_182] : memref<8x16xf32, #tpu.memory_space<vmem>>, vector<8x16xf32>
    %349 = vector.broadcast %347 : vector<8x1xf32> to vector<8x16xf32>
    %350 = arith.mulf %349, %348 : vector<8x16xf32>
    %351 = arith.addf %345, %350 : vector<8x16xf32>
    %c0_183 = arith.constant 0 : index
    %c0_184 = arith.constant 0 : index
    %352 = vector.load %arg9[%c0_183, %c0_184] : memref<8x16xf32, #tpu.memory_space<vmem>>, vector<8x16xf32>
    tpu.vector_store %arg9[%c0_183, %c0_184], %351 {strides = array<i32>} : memref<8x16xf32, #tpu.memory_space<vmem>>, vector<8x16xf32>,
    %353 = vector.broadcast %304 : vector<8x1xf32> to vector<8x16xf32>
    %354 = arith.mulf %353, %343 : vector<8x16xf32>
    %cst_185 = arith.constant 1.000000e+00 : f32
    %355 = vector.broadcast %cst_185 : f32 to vector<8x1xf32>
    %356 = arith.subf %355, %304 : vector<8x1xf32>
    %c0_186 = arith.constant 0 : index
    %c0_187 = arith.constant 0 : index
    %357 = vector.load %arg8[%c0_186, %c0_187] : memref<8x16xf32, #tpu.memory_space<vmem>>, vector<8x16xf32>
    %358 = vector.broadcast %356 : vector<8x1xf32> to vector<8x16xf32>
    %359 = arith.mulf %358, %357 : vector<8x16xf32>
    %360 = arith.addf %354, %359 : vector<8x16xf32>
    %c0_188 = arith.constant 0 : index
    %c0_189 = arith.constant 0 : index
    %361 = vector.load %arg8[%c0_188, %c0_189] : memref<8x16xf32, #tpu.memory_space<vmem>>, vector<8x16xf32>
    tpu.vector_store %arg8[%c0_188, %c0_189], %360 {strides = array<i32>} : memref<8x16xf32, #tpu.memory_space<vmem>>, vector<8x16xf32>,
    %362 = vector.broadcast %304 : vector<8x1xf32> to vector<8x16xf32>
    %363 = arith.mulf %362, %343 : vector<8x16xf32>
    %c0_190 = arith.constant 0 : index
    %364 = arith.index_cast %299 : i32 to index
    %c0_191 = arith.constant 0 : index
    %c0_192 = arith.constant 0 : index
    %365 = vector.load %arg6[%c0_190, %364, %c0_191, %c0_192] : memref<1x8x8x16xf32, #tpu.memory_space<vmem>>, vector<1x1x8x16xf32>
    %366 = vector.shape_cast %365 : vector<1x1x8x16xf32> to vector<8x16xf32>
    %367 = vector.shape_cast %363 : vector<8x16xf32> to vector<1x1x8x16xf32>
    tpu.vector_store %arg6[%c0_190, %364, %c0_191, %c0_192], %367 {strides = array<i32>} : memref<1x8x8x16xf32, #tpu.memory_space<vmem>>, vector<1x1x8x16xf32>,
    %c5_i32 = arith.constant 5 : i32
    %c0_i32_193 = arith.constant 0 : i32
    %368 = arith.cmpi eq, %arg0, %c0_i32_193 : i32
    %c7_i32_194 = arith.constant 7 : i32
    %369 = arith.subi %c7_i32_194, %c5_i32 : i32
    %370 = arith.select %368, %c5_i32, %369 : i32
    %c8_i32_195 = arith.constant 8 : i32
    %371 = arith.muli %370, %c8_i32_195 : i32
    %372 = tpu.assume_multiple %371, 8 : i32
    %373 = arith.index_cast %370 : i32 to index
    %c0_196 = arith.constant 0 : index
    %c0_197 = arith.constant 0 : index
    %374 = vector.load %arg2[%373, %c0_196, %c0_197] : memref<8x8x1xf32, #tpu.memory_space<vmem>>, vector<1x8x1xf32>
    %375 = vector.shape_cast %374 : vector<1x8x1xf32> to vector<8x1xf32>
    %376 = arith.index_cast %372 : i32 to index
    %c0_198 = arith.constant 0 : index
    %377 = vector.load %arg7[%376, %c0_198] : memref<64x64xf32, #tpu.memory_space<vmem>>, vector<8x64xf32>
    %c0_199 = arith.constant 0 : index
    %c0_200 = arith.constant 0 : index
    %378 = vector.load %arg8[%c0_199, %c0_200] : memref<8x16xf32, #tpu.memory_space<vmem>>, vector<8x16xf32>
    %c0_201 = arith.constant 0 : index
    %c0_202 = arith.constant 0 : index
    %c0_203 = arith.constant 0 : index
    %379 = vector.load %arg4[%c0_201, %c0_202, %c0_203] : memref<1x16x64xf32, #tpu.memory_space<vmem>>, vector<1x16x64xf32>
    %380 = vector.shape_cast %379 : vector<1x16x64xf32> to vector<16x64xf32>
    %cst_204 = arith.constant dense<0.000000e+00> : vector<8x64xf32>
    %381 = tpu.matmul %378, %380, %cst_204 {dimension_numbers = #tpu.dot_dimension_numbers<[1], [0], [0], [1], [0, 0, 1, 1], [], []>} : vector<8x16xf32>, vector<16x64xf32>, vector<8x64xf32> -> vector<8x64xf32>
    %382 = arith.addf %377, %381 : vector<8x64xf32>
    %383 = vector.extract_strided_slice %382 {offsets = [0, 0], sizes = [8, 16], strides = [1, 1]} : vector<8x64xf32> to vector<8x16xf32>
    %cst_205 = arith.constant 5.000000e-01 : f32
    %384 = vector.broadcast %cst_205 : f32 to vector<8x16xf32>
    %385 = arith.mulf %384, %383 : vector<8x16xf32>
    %386 = math.tanh %385 : vector<8x16xf32>
    %cst_206 = arith.constant 1.000000e+00 : f32
    %387 = vector.broadcast %cst_206 : f32 to vector<8x16xf32>
    %388 = arith.addf %386, %387 : vector<8x16xf32>
    %cst_207 = arith.constant 5.000000e-01 : f32
    %389 = vector.broadcast %cst_207 : f32 to vector<8x16xf32>
    %390 = arith.mulf %389, %388 : vector<8x16xf32>
    %391 = vector.extract_strided_slice %382 {offsets = [0, 16], sizes = [8, 16], strides = [1, 1]} : vector<8x64xf32> to vector<8x16xf32>
    %cst_208 = arith.constant 5.000000e-01 : f32
    %392 = vector.broadcast %cst_208 : f32 to vector<8x16xf32>
    %393 = arith.mulf %392, %391 : vector<8x16xf32>
    %394 = math.tanh %393 : vector<8x16xf32>
    %cst_209 = arith.constant 1.000000e+00 : f32
    %395 = vector.broadcast %cst_209 : f32 to vector<8x16xf32>
    %396 = arith.addf %394, %395 : vector<8x16xf32>
    %cst_210 = arith.constant 5.000000e-01 : f32
    %397 = vector.broadcast %cst_210 : f32 to vector<8x16xf32>
    %398 = arith.mulf %397, %396 : vector<8x16xf32>
    %399 = vector.extract_strided_slice %382 {offsets = [0, 32], sizes = [8, 16], strides = [1, 1]} : vector<8x64xf32> to vector<8x16xf32>
    %400 = math.tanh %399 : vector<8x16xf32>
    %401 = vector.extract_strided_slice %382 {offsets = [0, 48], sizes = [8, 16], strides = [1, 1]} : vector<8x64xf32> to vector<8x16xf32>
    %cst_211 = arith.constant 5.000000e-01 : f32
    %402 = vector.broadcast %cst_211 : f32 to vector<8x16xf32>
    %403 = arith.mulf %402, %401 : vector<8x16xf32>
    %404 = math.tanh %403 : vector<8x16xf32>
    %cst_212 = arith.constant 1.000000e+00 : f32
    %405 = vector.broadcast %cst_212 : f32 to vector<8x16xf32>
    %406 = arith.addf %404, %405 : vector<8x16xf32>
    %cst_213 = arith.constant 5.000000e-01 : f32
    %407 = vector.broadcast %cst_213 : f32 to vector<8x16xf32>
    %408 = arith.mulf %407, %406 : vector<8x16xf32>
    %c0_214 = arith.constant 0 : index
    %c0_215 = arith.constant 0 : index
    %409 = vector.load %arg9[%c0_214, %c0_215] : memref<8x16xf32, #tpu.memory_space<vmem>>, vector<8x16xf32>
    %410 = arith.mulf %398, %409 : vector<8x16xf32>
    %411 = arith.mulf %390, %400 : vector<8x16xf32>
    %412 = arith.addf %410, %411 : vector<8x16xf32>
    %413 = math.tanh %412 : vector<8x16xf32>
    %414 = arith.mulf %408, %413 : vector<8x16xf32>
    %415 = vector.broadcast %375 : vector<8x1xf32> to vector<8x16xf32>
    %416 = arith.mulf %415, %412 : vector<8x16xf32>
    %cst_216 = arith.constant 1.000000e+00 : f32
    %417 = vector.broadcast %cst_216 : f32 to vector<8x1xf32>
    %418 = arith.subf %417, %375 : vector<8x1xf32>
    %c0_217 = arith.constant 0 : index
    %c0_218 = arith.constant 0 : index
    %419 = vector.load %arg9[%c0_217, %c0_218] : memref<8x16xf32, #tpu.memory_space<vmem>>, vector<8x16xf32>
    %420 = vector.broadcast %418 : vector<8x1xf32> to vector<8x16xf32>
    %421 = arith.mulf %420, %419 : vector<8x16xf32>
    %422 = arith.addf %416, %421 : vector<8x16xf32>
    %c0_219 = arith.constant 0 : index
    %c0_220 = arith.constant 0 : index
    %423 = vector.load %arg9[%c0_219, %c0_220] : memref<8x16xf32, #tpu.memory_space<vmem>>, vector<8x16xf32>
    tpu.vector_store %arg9[%c0_219, %c0_220], %422 {strides = array<i32>} : memref<8x16xf32, #tpu.memory_space<vmem>>, vector<8x16xf32>,
    %424 = vector.broadcast %375 : vector<8x1xf32> to vector<8x16xf32>
    %425 = arith.mulf %424, %414 : vector<8x16xf32>
    %cst_221 = arith.constant 1.000000e+00 : f32
    %426 = vector.broadcast %cst_221 : f32 to vector<8x1xf32>
    %427 = arith.subf %426, %375 : vector<8x1xf32>
    %c0_222 = arith.constant 0 : index
    %c0_223 = arith.constant 0 : index
    %428 = vector.load %arg8[%c0_222, %c0_223] : memref<8x16xf32, #tpu.memory_space<vmem>>, vector<8x16xf32>
    %429 = vector.broadcast %427 : vector<8x1xf32> to vector<8x16xf32>
    %430 = arith.mulf %429, %428 : vector<8x16xf32>
    %431 = arith.addf %425, %430 : vector<8x16xf32>
    %c0_224 = arith.constant 0 : index
    %c0_225 = arith.constant 0 : index
    %432 = vector.load %arg8[%c0_224, %c0_225] : memref<8x16xf32, #tpu.memory_space<vmem>>, vector<8x16xf32>
    tpu.vector_store %arg8[%c0_224, %c0_225], %431 {strides = array<i32>} : memref<8x16xf32, #tpu.memory_space<vmem>>, vector<8x16xf32>,
    %433 = vector.broadcast %375 : vector<8x1xf32> to vector<8x16xf32>
    %434 = arith.mulf %433, %414 : vector<8x16xf32>
    %c0_226 = arith.constant 0 : index
    %435 = arith.index_cast %370 : i32 to index
    %c0_227 = arith.constant 0 : index
    %c0_228 = arith.constant 0 : index
    %436 = vector.load %arg6[%c0_226, %435, %c0_227, %c0_228] : memref<1x8x8x16xf32, #tpu.memory_space<vmem>>, vector<1x1x8x16xf32>
    %437 = vector.shape_cast %436 : vector<1x1x8x16xf32> to vector<8x16xf32>
    %438 = vector.shape_cast %434 : vector<8x16xf32> to vector<1x1x8x16xf32>
    tpu.vector_store %arg6[%c0_226, %435, %c0_227, %c0_228], %438 {strides = array<i32>} : memref<1x8x8x16xf32, #tpu.memory_space<vmem>>, vector<1x1x8x16xf32>,
    %c6_i32 = arith.constant 6 : i32
    %c0_i32_229 = arith.constant 0 : i32
    %439 = arith.cmpi eq, %arg0, %c0_i32_229 : i32
    %c7_i32_230 = arith.constant 7 : i32
    %440 = arith.subi %c7_i32_230, %c6_i32 : i32
    %441 = arith.select %439, %c6_i32, %440 : i32
    %c8_i32_231 = arith.constant 8 : i32
    %442 = arith.muli %441, %c8_i32_231 : i32
    %443 = tpu.assume_multiple %442, 8 : i32
    %444 = arith.index_cast %441 : i32 to index
    %c0_232 = arith.constant 0 : index
    %c0_233 = arith.constant 0 : index
    %445 = vector.load %arg2[%444, %c0_232, %c0_233] : memref<8x8x1xf32, #tpu.memory_space<vmem>>, vector<1x8x1xf32>
    %446 = vector.shape_cast %445 : vector<1x8x1xf32> to vector<8x1xf32>
    %447 = arith.index_cast %443 : i32 to index
    %c0_234 = arith.constant 0 : index
    %448 = vector.load %arg7[%447, %c0_234] : memref<64x64xf32, #tpu.memory_space<vmem>>, vector<8x64xf32>
    %c0_235 = arith.constant 0 : index
    %c0_236 = arith.constant 0 : index
    %449 = vector.load %arg8[%c0_235, %c0_236] : memref<8x16xf32, #tpu.memory_space<vmem>>, vector<8x16xf32>
    %c0_237 = arith.constant 0 : index
    %c0_238 = arith.constant 0 : index
    %c0_239 = arith.constant 0 : index
    %450 = vector.load %arg4[%c0_237, %c0_238, %c0_239] : memref<1x16x64xf32, #tpu.memory_space<vmem>>, vector<1x16x64xf32>
    %451 = vector.shape_cast %450 : vector<1x16x64xf32> to vector<16x64xf32>
    %cst_240 = arith.constant dense<0.000000e+00> : vector<8x64xf32>
    %452 = tpu.matmul %449, %451, %cst_240 {dimension_numbers = #tpu.dot_dimension_numbers<[1], [0], [0], [1], [0, 0, 1, 1], [], []>} : vector<8x16xf32>, vector<16x64xf32>, vector<8x64xf32> -> vector<8x64xf32>
    %453 = arith.addf %448, %452 : vector<8x64xf32>
    %454 = vector.extract_strided_slice %453 {offsets = [0, 0], sizes = [8, 16], strides = [1, 1]} : vector<8x64xf32> to vector<8x16xf32>
    %cst_241 = arith.constant 5.000000e-01 : f32
    %455 = vector.broadcast %cst_241 : f32 to vector<8x16xf32>
    %456 = arith.mulf %455, %454 : vector<8x16xf32>
    %457 = math.tanh %456 : vector<8x16xf32>
    %cst_242 = arith.constant 1.000000e+00 : f32
    %458 = vector.broadcast %cst_242 : f32 to vector<8x16xf32>
    %459 = arith.addf %457, %458 : vector<8x16xf32>
    %cst_243 = arith.constant 5.000000e-01 : f32
    %460 = vector.broadcast %cst_243 : f32 to vector<8x16xf32>
    %461 = arith.mulf %460, %459 : vector<8x16xf32>
    %462 = vector.extract_strided_slice %453 {offsets = [0, 16], sizes = [8, 16], strides = [1, 1]} : vector<8x64xf32> to vector<8x16xf32>
    %cst_244 = arith.constant 5.000000e-01 : f32
    %463 = vector.broadcast %cst_244 : f32 to vector<8x16xf32>
    %464 = arith.mulf %463, %462 : vector<8x16xf32>
    %465 = math.tanh %464 : vector<8x16xf32>
    %cst_245 = arith.constant 1.000000e+00 : f32
    %466 = vector.broadcast %cst_245 : f32 to vector<8x16xf32>
    %467 = arith.addf %465, %466 : vector<8x16xf32>
    %cst_246 = arith.constant 5.000000e-01 : f32
    %468 = vector.broadcast %cst_246 : f32 to vector<8x16xf32>
    %469 = arith.mulf %468, %467 : vector<8x16xf32>
    %470 = vector.extract_strided_slice %453 {offsets = [0, 32], sizes = [8, 16], strides = [1, 1]} : vector<8x64xf32> to vector<8x16xf32>
    %471 = math.tanh %470 : vector<8x16xf32>
    %472 = vector.extract_strided_slice %453 {offsets = [0, 48], sizes = [8, 16], strides = [1, 1]} : vector<8x64xf32> to vector<8x16xf32>
    %cst_247 = arith.constant 5.000000e-01 : f32
    %473 = vector.broadcast %cst_247 : f32 to vector<8x16xf32>
    %474 = arith.mulf %473, %472 : vector<8x16xf32>
    %475 = math.tanh %474 : vector<8x16xf32>
    %cst_248 = arith.constant 1.000000e+00 : f32
    %476 = vector.broadcast %cst_248 : f32 to vector<8x16xf32>
    %477 = arith.addf %475, %476 : vector<8x16xf32>
    %cst_249 = arith.constant 5.000000e-01 : f32
    %478 = vector.broadcast %cst_249 : f32 to vector<8x16xf32>
    %479 = arith.mulf %478, %477 : vector<8x16xf32>
    %c0_250 = arith.constant 0 : index
    %c0_251 = arith.constant 0 : index
    %480 = vector.load %arg9[%c0_250, %c0_251] : memref<8x16xf32, #tpu.memory_space<vmem>>, vector<8x16xf32>
    %481 = arith.mulf %469, %480 : vector<8x16xf32>
    %482 = arith.mulf %461, %471 : vector<8x16xf32>
    %483 = arith.addf %481, %482 : vector<8x16xf32>
    %484 = math.tanh %483 : vector<8x16xf32>
    %485 = arith.mulf %479, %484 : vector<8x16xf32>
    %486 = vector.broadcast %446 : vector<8x1xf32> to vector<8x16xf32>
    %487 = arith.mulf %486, %483 : vector<8x16xf32>
    %cst_252 = arith.constant 1.000000e+00 : f32
    %488 = vector.broadcast %cst_252 : f32 to vector<8x1xf32>
    %489 = arith.subf %488, %446 : vector<8x1xf32>
    %c0_253 = arith.constant 0 : index
    %c0_254 = arith.constant 0 : index
    %490 = vector.load %arg9[%c0_253, %c0_254] : memref<8x16xf32, #tpu.memory_space<vmem>>, vector<8x16xf32>
    %491 = vector.broadcast %489 : vector<8x1xf32> to vector<8x16xf32>
    %492 = arith.mulf %491, %490 : vector<8x16xf32>
    %493 = arith.addf %487, %492 : vector<8x16xf32>
    %c0_255 = arith.constant 0 : index
    %c0_256 = arith.constant 0 : index
    %494 = vector.load %arg9[%c0_255, %c0_256] : memref<8x16xf32, #tpu.memory_space<vmem>>, vector<8x16xf32>
    tpu.vector_store %arg9[%c0_255, %c0_256], %493 {strides = array<i32>} : memref<8x16xf32, #tpu.memory_space<vmem>>, vector<8x16xf32>,
    %495 = vector.broadcast %446 : vector<8x1xf32> to vector<8x16xf32>
    %496 = arith.mulf %495, %485 : vector<8x16xf32>
    %cst_257 = arith.constant 1.000000e+00 : f32
    %497 = vector.broadcast %cst_257 : f32 to vector<8x1xf32>
    %498 = arith.subf %497, %446 : vector<8x1xf32>
    %c0_258 = arith.constant 0 : index
    %c0_259 = arith.constant 0 : index
    %499 = vector.load %arg8[%c0_258, %c0_259] : memref<8x16xf32, #tpu.memory_space<vmem>>, vector<8x16xf32>
    %500 = vector.broadcast %498 : vector<8x1xf32> to vector<8x16xf32>
    %501 = arith.mulf %500, %499 : vector<8x16xf32>
    %502 = arith.addf %496, %501 : vector<8x16xf32>
    %c0_260 = arith.constant 0 : index
    %c0_261 = arith.constant 0 : index
    %503 = vector.load %arg8[%c0_260, %c0_261] : memref<8x16xf32, #tpu.memory_space<vmem>>, vector<8x16xf32>
    tpu.vector_store %arg8[%c0_260, %c0_261], %502 {strides = array<i32>} : memref<8x16xf32, #tpu.memory_space<vmem>>, vector<8x16xf32>,
    %504 = vector.broadcast %446 : vector<8x1xf32> to vector<8x16xf32>
    %505 = arith.mulf %504, %485 : vector<8x16xf32>
    %c0_262 = arith.constant 0 : index
    %506 = arith.index_cast %441 : i32 to index
    %c0_263 = arith.constant 0 : index
    %c0_264 = arith.constant 0 : index
    %507 = vector.load %arg6[%c0_262, %506, %c0_263, %c0_264] : memref<1x8x8x16xf32, #tpu.memory_space<vmem>>, vector<1x1x8x16xf32>
    %508 = vector.shape_cast %507 : vector<1x1x8x16xf32> to vector<8x16xf32>
    %509 = vector.shape_cast %505 : vector<8x16xf32> to vector<1x1x8x16xf32>
    tpu.vector_store %arg6[%c0_262, %506, %c0_263, %c0_264], %509 {strides = array<i32>} : memref<1x8x8x16xf32, #tpu.memory_space<vmem>>, vector<1x1x8x16xf32>,
    %c7_i32_265 = arith.constant 7 : i32
    %c0_i32_266 = arith.constant 0 : i32
    %510 = arith.cmpi eq, %arg0, %c0_i32_266 : i32
    %c7_i32_267 = arith.constant 7 : i32
    %511 = arith.subi %c7_i32_267, %c7_i32_265 : i32
    %512 = arith.select %510, %c7_i32_265, %511 : i32
    %c8_i32_268 = arith.constant 8 : i32
    %513 = arith.muli %512, %c8_i32_268 : i32
    %514 = tpu.assume_multiple %513, 8 : i32
    %515 = arith.index_cast %512 : i32 to index
    %c0_269 = arith.constant 0 : index
    %c0_270 = arith.constant 0 : index
    %516 = vector.load %arg2[%515, %c0_269, %c0_270] : memref<8x8x1xf32, #tpu.memory_space<vmem>>, vector<1x8x1xf32>
    %517 = vector.shape_cast %516 : vector<1x8x1xf32> to vector<8x1xf32>
    %518 = arith.index_cast %514 : i32 to index
    %c0_271 = arith.constant 0 : index
    %519 = vector.load %arg7[%518, %c0_271] : memref<64x64xf32, #tpu.memory_space<vmem>>, vector<8x64xf32>
    %c0_272 = arith.constant 0 : index
    %c0_273 = arith.constant 0 : index
    %520 = vector.load %arg8[%c0_272, %c0_273] : memref<8x16xf32, #tpu.memory_space<vmem>>, vector<8x16xf32>
    %c0_274 = arith.constant 0 : index
    %c0_275 = arith.constant 0 : index
    %c0_276 = arith.constant 0 : index
    %521 = vector.load %arg4[%c0_274, %c0_275, %c0_276] : memref<1x16x64xf32, #tpu.memory_space<vmem>>, vector<1x16x64xf32>
    %522 = vector.shape_cast %521 : vector<1x16x64xf32> to vector<16x64xf32>
    %cst_277 = arith.constant dense<0.000000e+00> : vector<8x64xf32>
    %523 = tpu.matmul %520, %522, %cst_277 {dimension_numbers = #tpu.dot_dimension_numbers<[1], [0], [0], [1], [0, 0, 1, 1], [], []>} : vector<8x16xf32>, vector<16x64xf32>, vector<8x64xf32> -> vector<8x64xf32>
    %524 = arith.addf %519, %523 : vector<8x64xf32>
    %525 = vector.extract_strided_slice %524 {offsets = [0, 0], sizes = [8, 16], strides = [1, 1]} : vector<8x64xf32> to vector<8x16xf32>
    %cst_278 = arith.constant 5.000000e-01 : f32
    %526 = vector.broadcast %cst_278 : f32 to vector<8x16xf32>
    %527 = arith.mulf %526, %525 : vector<8x16xf32>
    %528 = math.tanh %527 : vector<8x16xf32>
    %cst_279 = arith.constant 1.000000e+00 : f32
    %529 = vector.broadcast %cst_279 : f32 to vector<8x16xf32>
    %530 = arith.addf %528, %529 : vector<8x16xf32>
    %cst_280 = arith.constant 5.000000e-01 : f32
    %531 = vector.broadcast %cst_280 : f32 to vector<8x16xf32>
    %532 = arith.mulf %531, %530 : vector<8x16xf32>
    %533 = vector.extract_strided_slice %524 {offsets = [0, 16], sizes = [8, 16], strides = [1, 1]} : vector<8x64xf32> to vector<8x16xf32>
    %cst_281 = arith.constant 5.000000e-01 : f32
    %534 = vector.broadcast %cst_281 : f32 to vector<8x16xf32>
    %535 = arith.mulf %534, %533 : vector<8x16xf32>
    %536 = math.tanh %535 : vector<8x16xf32>
    %cst_282 = arith.constant 1.000000e+00 : f32
    %537 = vector.broadcast %cst_282 : f32 to vector<8x16xf32>
    %538 = arith.addf %536, %537 : vector<8x16xf32>
    %cst_283 = arith.constant 5.000000e-01 : f32
    %539 = vector.broadcast %cst_283 : f32 to vector<8x16xf32>
    %540 = arith.mulf %539, %538 : vector<8x16xf32>
    %541 = vector.extract_strided_slice %524 {offsets = [0, 32], sizes = [8, 16], strides = [1, 1]} : vector<8x64xf32> to vector<8x16xf32>
    %542 = math.tanh %541 : vector<8x16xf32>
    %543 = vector.extract_strided_slice %524 {offsets = [0, 48], sizes = [8, 16], strides = [1, 1]} : vector<8x64xf32> to vector<8x16xf32>
    %cst_284 = arith.constant 5.000000e-01 : f32
    %544 = vector.broadcast %cst_284 : f32 to vector<8x16xf32>
    %545 = arith.mulf %544, %543 : vector<8x16xf32>
    %546 = math.tanh %545 : vector<8x16xf32>
    %cst_285 = arith.constant 1.000000e+00 : f32
    %547 = vector.broadcast %cst_285 : f32 to vector<8x16xf32>
    %548 = arith.addf %546, %547 : vector<8x16xf32>
    %cst_286 = arith.constant 5.000000e-01 : f32
    %549 = vector.broadcast %cst_286 : f32 to vector<8x16xf32>
    %550 = arith.mulf %549, %548 : vector<8x16xf32>
    %c0_287 = arith.constant 0 : index
    %c0_288 = arith.constant 0 : index
    %551 = vector.load %arg9[%c0_287, %c0_288] : memref<8x16xf32, #tpu.memory_space<vmem>>, vector<8x16xf32>
    %552 = arith.mulf %540, %551 : vector<8x16xf32>
    %553 = arith.mulf %532, %542 : vector<8x16xf32>
    %554 = arith.addf %552, %553 : vector<8x16xf32>
    %555 = math.tanh %554 : vector<8x16xf32>
    %556 = arith.mulf %550, %555 : vector<8x16xf32>
    %557 = vector.broadcast %517 : vector<8x1xf32> to vector<8x16xf32>
    %558 = arith.mulf %557, %554 : vector<8x16xf32>
    %cst_289 = arith.constant 1.000000e+00 : f32
    %559 = vector.broadcast %cst_289 : f32 to vector<8x1xf32>
    %560 = arith.subf %559, %517 : vector<8x1xf32>
    %c0_290 = arith.constant 0 : index
    %c0_291 = arith.constant 0 : index
    %561 = vector.load %arg9[%c0_290, %c0_291] : memref<8x16xf32, #tpu.memory_space<vmem>>, vector<8x16xf32>
    %562 = vector.broadcast %560 : vector<8x1xf32> to vector<8x16xf32>
    %563 = arith.mulf %562, %561 : vector<8x16xf32>
    %564 = arith.addf %558, %563 : vector<8x16xf32>
    %c0_292 = arith.constant 0 : index
    %c0_293 = arith.constant 0 : index
    %565 = vector.load %arg9[%c0_292, %c0_293] : memref<8x16xf32, #tpu.memory_space<vmem>>, vector<8x16xf32>
    tpu.vector_store %arg9[%c0_292, %c0_293], %564 {strides = array<i32>} : memref<8x16xf32, #tpu.memory_space<vmem>>, vector<8x16xf32>,
    %566 = vector.broadcast %517 : vector<8x1xf32> to vector<8x16xf32>
    %567 = arith.mulf %566, %556 : vector<8x16xf32>
    %cst_294 = arith.constant 1.000000e+00 : f32
    %568 = vector.broadcast %cst_294 : f32 to vector<8x1xf32>
    %569 = arith.subf %568, %517 : vector<8x1xf32>
    %c0_295 = arith.constant 0 : index
    %c0_296 = arith.constant 0 : index
    %570 = vector.load %arg8[%c0_295, %c0_296] : memref<8x16xf32, #tpu.memory_space<vmem>>, vector<8x16xf32>
    %571 = vector.broadcast %569 : vector<8x1xf32> to vector<8x16xf32>
    %572 = arith.mulf %571, %570 : vector<8x16xf32>
    %573 = arith.addf %567, %572 : vector<8x16xf32>
    %c0_297 = arith.constant 0 : index
    %c0_298 = arith.constant 0 : index
    %574 = vector.load %arg8[%c0_297, %c0_298] : memref<8x16xf32, #tpu.memory_space<vmem>>, vector<8x16xf32>
    tpu.vector_store %arg8[%c0_297, %c0_298], %573 {strides = array<i32>} : memref<8x16xf32, #tpu.memory_space<vmem>>, vector<8x16xf32>,
    %575 = vector.broadcast %517 : vector<8x1xf32> to vector<8x16xf32>
    %576 = arith.mulf %575, %556 : vector<8x16xf32>
    %c0_299 = arith.constant 0 : index
    %577 = arith.index_cast %512 : i32 to index
    %c0_300 = arith.constant 0 : index
    %c0_301 = arith.constant 0 : index
    %578 = vector.load %arg6[%c0_299, %577, %c0_300, %c0_301] : memref<1x8x8x16xf32, #tpu.memory_space<vmem>>, vector<1x1x8x16xf32>
    %579 = vector.shape_cast %578 : vector<1x1x8x16xf32> to vector<8x16xf32>
    %580 = vector.shape_cast %576 : vector<8x16xf32> to vector<1x1x8x16xf32>
    tpu.vector_store %arg6[%c0_299, %577, %c0_300, %c0_301], %580 {strides = array<i32>} : memref<1x8x8x16xf32, #tpu.memory_space<vmem>>, vector<1x1x8x16xf32>,
    %c8_i32_302 = arith.constant 8 : i32
    return
  }
  func.func @transform_0(%arg0: i32) -> (i32, i32) {
    %c0_i32 = arith.constant 0 : i32
    %c0_i32_0 = arith.constant 0 : i32
    %c0_i32_1 = arith.constant 0 : i32
    return %c0_i32, %c0_i32_0 : i32, i32
  }
  func.func @transform_1(%arg0: i32) -> (i32, i32, i32) {
    %c0_i32 = arith.constant 0 : i32
    %c0_i32_0 = arith.constant 0 : i32
    %c0_i32_1 = arith.constant 0 : i32
    %c0_i32_2 = arith.constant 0 : i32
    return %c0_i32, %c0_i32_0, %c0_i32_1 : i32, i32, i32
  }
  func.func @transform_2(%arg0: i32) -> (i32, i32, i32) {
    %c0_i32 = arith.constant 0 : i32
    %c0_i32_0 = arith.constant 0 : i32
    %c0_i32_1 = arith.constant 0 : i32
    return %arg0, %c0_i32, %c0_i32_0 : i32, i32, i32
  }
  func.func @transform_3(%arg0: i32) -> (i32, i32, i32) {
    %c0_i32 = arith.constant 0 : i32
    %c0_i32_0 = arith.constant 0 : i32
    %c0_i32_1 = arith.constant 0 : i32
    return %arg0, %c0_i32, %c0_i32_0 : i32, i32, i32
  }
  func.func @transform_4(%arg0: i32) -> (i32, i32, i32) {
    %c0_i32 = arith.constant 0 : i32
    %c0_i32_0 = arith.constant 0 : i32
    %c0_i32_1 = arith.constant 0 : i32
    return %arg0, %c0_i32, %c0_i32_0 : i32, i32, i32
  }
  func.func @transform_5(%arg0: i32) -> (i32, i32, i32, i32) {
    %c0_i32 = arith.constant 0 : i32
    %c0_i32_0 = arith.constant 0 : i32
    %c0_i32_1 = arith.constant 0 : i32
    %c0_i32_2 = arith.constant 0 : i32
    return %arg0, %c0_i32, %c0_i32_0, %c0_i32_1 : i32, i32, i32, i32
  }
}

module attributes {stable_mosaic.version = 11 : i64} {
  func.func @_bilstm_kernel(%arg0: i32, %arg1: memref<8x32xf32, #tpu.memory_space<vmem>>, %arg2: memref<4x2x1xf32, #tpu.memory_space<vmem>>, %arg3: memref<1x32x128xf32, #tpu.memory_space<vmem>>, %arg4: memref<1x32x128xf32, #tpu.memory_space<vmem>>, %arg5: memref<1x1x128xf32, #tpu.memory_space<vmem>>, %arg6: memref<1x4x2x32xf32, #tpu.memory_space<vmem>>, %arg7: memref<8x128xf32, #tpu.memory_space<vmem>>, %arg8: memref<2x32xf32, #tpu.memory_space<vmem>>, %arg9: memref<2x32xf32, #tpu.memory_space<vmem>>) attributes {dimension_semantics = [#tpu.dimension_semantics<parallel>], iteration_bounds = array<i64: 2>, scalar_prefetch = 0 : i64, scratch_operands = 3 : i64, tpu.core_type = #tpu.core_type<tc>, window_params = [{pipeline_mode = #tpu.pipeline_mode<synchronous>, transform_indices = @transform_0, window_bounds = array<i64: 8, 32>}, {pipeline_mode = #tpu.pipeline_mode<synchronous>, transform_indices = @transform_1, window_bounds = array<i64: 4, 2, 1>}, {transform_indices = @transform_2, window_bounds = array<i64: 1, 32, 128>}, {transform_indices = @transform_3, window_bounds = array<i64: 1, 32, 128>}, {transform_indices = @transform_4, window_bounds = array<i64: 1, 1, 128>}, {transform_indices = @transform_5, window_bounds = array<i64: 1, 4, 2, 32>}]} {
    %c0 = arith.constant 0 : index
    %c0_0 = arith.constant 0 : index
    %0 = vector.load %arg1[%c0, %c0_0] : memref<8x32xf32, #tpu.memory_space<vmem>>, vector<8x32xf32>
    %c0_1 = arith.constant 0 : index
    %c0_2 = arith.constant 0 : index
    %c0_3 = arith.constant 0 : index
    %1 = vector.load %arg3[%c0_1, %c0_2, %c0_3] : memref<1x32x128xf32, #tpu.memory_space<vmem>>, vector<1x32x128xf32>
    %2 = vector.shape_cast %1 : vector<1x32x128xf32> to vector<32x128xf32>
    %cst = arith.constant dense<0.000000e+00> : vector<8x128xf32>
    %3 = tpu.matmul %0, %2, %cst {dimension_numbers = #tpu.dot_dimension_numbers<[1], [0], [0], [1], [0, 0, 1, 1], [], []>} : vector<8x32xf32>, vector<32x128xf32>, vector<8x128xf32> -> vector<8x128xf32>
    %c0_4 = arith.constant 0 : index
    %c0_5 = arith.constant 0 : index
    %c0_6 = arith.constant 0 : index
    %4 = vector.load %arg5[%c0_4, %c0_5, %c0_6] : memref<1x1x128xf32, #tpu.memory_space<vmem>>, vector<1x1x128xf32>
    %5 = vector.shape_cast %4 : vector<1x1x128xf32> to vector<1x128xf32>
    %6 = vector.broadcast %5 : vector<1x128xf32> to vector<8x128xf32>
    %7 = arith.addf %3, %6 : vector<8x128xf32>
    %c0_7 = arith.constant 0 : index
    %c0_8 = arith.constant 0 : index
    %8 = vector.load %arg7[%c0_7, %c0_8] : memref<8x128xf32, #tpu.memory_space<vmem>>, vector<8x128xf32>
    tpu.vector_store %arg7[%c0_7, %c0_8], %7 {strides = array<i32>} : memref<8x128xf32, #tpu.memory_space<vmem>>, vector<8x128xf32>,
    %cst_9 = arith.constant 0.000000e+00 : f32
    %9 = vector.broadcast %cst_9 : f32 to vector<2x32xf32>
    %c0_10 = arith.constant 0 : index
    %c0_11 = arith.constant 0 : index
    %10 = vector.load %arg8[%c0_10, %c0_11] : memref<2x32xf32, #tpu.memory_space<vmem>>, vector<2x32xf32>
    tpu.vector_store %arg8[%c0_10, %c0_11], %9 {strides = array<i32>} : memref<2x32xf32, #tpu.memory_space<vmem>>, vector<2x32xf32>,
    %cst_12 = arith.constant 0.000000e+00 : f32
    %11 = vector.broadcast %cst_12 : f32 to vector<2x32xf32>
    %c0_13 = arith.constant 0 : index
    %c0_14 = arith.constant 0 : index
    %12 = vector.load %arg9[%c0_13, %c0_14] : memref<2x32xf32, #tpu.memory_space<vmem>>, vector<2x32xf32>
    tpu.vector_store %arg9[%c0_13, %c0_14], %11 {strides = array<i32>} : memref<2x32xf32, #tpu.memory_space<vmem>>, vector<2x32xf32>,
    %c0_i32 = arith.constant 0 : i32
    %c0_i32_15 = arith.constant 0 : i32
    %13 = arith.cmpi eq, %arg0, %c0_i32_15 : i32
    %c3_i32 = arith.constant 3 : i32
    %14 = arith.subi %c3_i32, %c0_i32 : i32
    %15 = arith.select %13, %c0_i32, %14 : i32
    %c2_i32 = arith.constant 2 : i32
    %16 = arith.muli %15, %c2_i32 : i32
    %17 = arith.index_cast %15 : i32 to index
    %c0_16 = arith.constant 0 : index
    %c0_17 = arith.constant 0 : index
    %18 = vector.load %arg2[%17, %c0_16, %c0_17] : memref<4x2x1xf32, #tpu.memory_space<vmem>>, vector<1x2x1xf32>
    %19 = vector.shape_cast %18 : vector<1x2x1xf32> to vector<2x1xf32>
    %20 = arith.index_cast %16 : i32 to index
    %c0_18 = arith.constant 0 : index
    %21 = vector.load %arg7[%20, %c0_18] : memref<8x128xf32, #tpu.memory_space<vmem>>, vector<2x128xf32>
    %c0_19 = arith.constant 0 : index
    %c0_20 = arith.constant 0 : index
    %22 = vector.load %arg8[%c0_19, %c0_20] : memref<2x32xf32, #tpu.memory_space<vmem>>, vector<2x32xf32>
    %c0_21 = arith.constant 0 : index
    %c0_22 = arith.constant 0 : index
    %c0_23 = arith.constant 0 : index
    %23 = vector.load %arg4[%c0_21, %c0_22, %c0_23] : memref<1x32x128xf32, #tpu.memory_space<vmem>>, vector<1x32x128xf32>
    %24 = vector.shape_cast %23 : vector<1x32x128xf32> to vector<32x128xf32>
    %cst_24 = arith.constant dense<0.000000e+00> : vector<2x128xf32>
    %25 = tpu.matmul %22, %24, %cst_24 {dimension_numbers = #tpu.dot_dimension_numbers<[1], [0], [0], [1], [0, 0, 1, 1], [], []>} : vector<2x32xf32>, vector<32x128xf32>, vector<2x128xf32> -> vector<2x128xf32>
    %26 = arith.addf %21, %25 : vector<2x128xf32>
    %27 = vector.extract_strided_slice %26 {offsets = [0, 0], sizes = [2, 32], strides = [1, 1]} : vector<2x128xf32> to vector<2x32xf32>
    %cst_25 = arith.constant 5.000000e-01 : f32
    %28 = vector.broadcast %cst_25 : f32 to vector<2x32xf32>
    %29 = arith.mulf %28, %27 : vector<2x32xf32>
    %30 = math.tanh %29 : vector<2x32xf32>
    %cst_26 = arith.constant 1.000000e+00 : f32
    %31 = vector.broadcast %cst_26 : f32 to vector<2x32xf32>
    %32 = arith.addf %30, %31 : vector<2x32xf32>
    %cst_27 = arith.constant 5.000000e-01 : f32
    %33 = vector.broadcast %cst_27 : f32 to vector<2x32xf32>
    %34 = arith.mulf %33, %32 : vector<2x32xf32>
    %35 = vector.extract_strided_slice %26 {offsets = [0, 32], sizes = [2, 32], strides = [1, 1]} : vector<2x128xf32> to vector<2x32xf32>
    %cst_28 = arith.constant 5.000000e-01 : f32
    %36 = vector.broadcast %cst_28 : f32 to vector<2x32xf32>
    %37 = arith.mulf %36, %35 : vector<2x32xf32>
    %38 = math.tanh %37 : vector<2x32xf32>
    %cst_29 = arith.constant 1.000000e+00 : f32
    %39 = vector.broadcast %cst_29 : f32 to vector<2x32xf32>
    %40 = arith.addf %38, %39 : vector<2x32xf32>
    %cst_30 = arith.constant 5.000000e-01 : f32
    %41 = vector.broadcast %cst_30 : f32 to vector<2x32xf32>
    %42 = arith.mulf %41, %40 : vector<2x32xf32>
    %43 = vector.extract_strided_slice %26 {offsets = [0, 64], sizes = [2, 32], strides = [1, 1]} : vector<2x128xf32> to vector<2x32xf32>
    %44 = math.tanh %43 : vector<2x32xf32>
    %45 = vector.extract_strided_slice %26 {offsets = [0, 96], sizes = [2, 32], strides = [1, 1]} : vector<2x128xf32> to vector<2x32xf32>
    %cst_31 = arith.constant 5.000000e-01 : f32
    %46 = vector.broadcast %cst_31 : f32 to vector<2x32xf32>
    %47 = arith.mulf %46, %45 : vector<2x32xf32>
    %48 = math.tanh %47 : vector<2x32xf32>
    %cst_32 = arith.constant 1.000000e+00 : f32
    %49 = vector.broadcast %cst_32 : f32 to vector<2x32xf32>
    %50 = arith.addf %48, %49 : vector<2x32xf32>
    %cst_33 = arith.constant 5.000000e-01 : f32
    %51 = vector.broadcast %cst_33 : f32 to vector<2x32xf32>
    %52 = arith.mulf %51, %50 : vector<2x32xf32>
    %c0_34 = arith.constant 0 : index
    %c0_35 = arith.constant 0 : index
    %53 = vector.load %arg9[%c0_34, %c0_35] : memref<2x32xf32, #tpu.memory_space<vmem>>, vector<2x32xf32>
    %54 = arith.mulf %42, %53 : vector<2x32xf32>
    %55 = arith.mulf %34, %44 : vector<2x32xf32>
    %56 = arith.addf %54, %55 : vector<2x32xf32>
    %57 = math.tanh %56 : vector<2x32xf32>
    %58 = arith.mulf %52, %57 : vector<2x32xf32>
    %59 = vector.broadcast %19 : vector<2x1xf32> to vector<2x32xf32>
    %60 = arith.mulf %59, %56 : vector<2x32xf32>
    %cst_36 = arith.constant 1.000000e+00 : f32
    %61 = vector.broadcast %cst_36 : f32 to vector<2x1xf32>
    %62 = arith.subf %61, %19 : vector<2x1xf32>
    %c0_37 = arith.constant 0 : index
    %c0_38 = arith.constant 0 : index
    %63 = vector.load %arg9[%c0_37, %c0_38] : memref<2x32xf32, #tpu.memory_space<vmem>>, vector<2x32xf32>
    %64 = vector.broadcast %62 : vector<2x1xf32> to vector<2x32xf32>
    %65 = arith.mulf %64, %63 : vector<2x32xf32>
    %66 = arith.addf %60, %65 : vector<2x32xf32>
    %c0_39 = arith.constant 0 : index
    %c0_40 = arith.constant 0 : index
    %67 = vector.load %arg9[%c0_39, %c0_40] : memref<2x32xf32, #tpu.memory_space<vmem>>, vector<2x32xf32>
    tpu.vector_store %arg9[%c0_39, %c0_40], %66 {strides = array<i32>} : memref<2x32xf32, #tpu.memory_space<vmem>>, vector<2x32xf32>,
    %68 = vector.broadcast %19 : vector<2x1xf32> to vector<2x32xf32>
    %69 = arith.mulf %68, %58 : vector<2x32xf32>
    %cst_41 = arith.constant 1.000000e+00 : f32
    %70 = vector.broadcast %cst_41 : f32 to vector<2x1xf32>
    %71 = arith.subf %70, %19 : vector<2x1xf32>
    %c0_42 = arith.constant 0 : index
    %c0_43 = arith.constant 0 : index
    %72 = vector.load %arg8[%c0_42, %c0_43] : memref<2x32xf32, #tpu.memory_space<vmem>>, vector<2x32xf32>
    %73 = vector.broadcast %71 : vector<2x1xf32> to vector<2x32xf32>
    %74 = arith.mulf %73, %72 : vector<2x32xf32>
    %75 = arith.addf %69, %74 : vector<2x32xf32>
    %c0_44 = arith.constant 0 : index
    %c0_45 = arith.constant 0 : index
    %76 = vector.load %arg8[%c0_44, %c0_45] : memref<2x32xf32, #tpu.memory_space<vmem>>, vector<2x32xf32>
    tpu.vector_store %arg8[%c0_44, %c0_45], %75 {strides = array<i32>} : memref<2x32xf32, #tpu.memory_space<vmem>>, vector<2x32xf32>,
    %77 = vector.broadcast %19 : vector<2x1xf32> to vector<2x32xf32>
    %78 = arith.mulf %77, %58 : vector<2x32xf32>
    %c0_46 = arith.constant 0 : index
    %79 = arith.index_cast %15 : i32 to index
    %c0_47 = arith.constant 0 : index
    %c0_48 = arith.constant 0 : index
    %80 = vector.load %arg6[%c0_46, %79, %c0_47, %c0_48] : memref<1x4x2x32xf32, #tpu.memory_space<vmem>>, vector<1x1x2x32xf32>
    %81 = vector.shape_cast %80 : vector<1x1x2x32xf32> to vector<2x32xf32>
    %82 = vector.shape_cast %78 : vector<2x32xf32> to vector<1x1x2x32xf32>
    tpu.vector_store %arg6[%c0_46, %79, %c0_47, %c0_48], %82 {strides = array<i32>} : memref<1x4x2x32xf32, #tpu.memory_space<vmem>>, vector<1x1x2x32xf32>,
    %c1_i32 = arith.constant 1 : i32
    %c0_i32_49 = arith.constant 0 : i32
    %83 = arith.cmpi eq, %arg0, %c0_i32_49 : i32
    %c3_i32_50 = arith.constant 3 : i32
    %84 = arith.subi %c3_i32_50, %c1_i32 : i32
    %85 = arith.select %83, %c1_i32, %84 : i32
    %c2_i32_51 = arith.constant 2 : i32
    %86 = arith.muli %85, %c2_i32_51 : i32
    %87 = arith.index_cast %85 : i32 to index
    %c0_52 = arith.constant 0 : index
    %c0_53 = arith.constant 0 : index
    %88 = vector.load %arg2[%87, %c0_52, %c0_53] : memref<4x2x1xf32, #tpu.memory_space<vmem>>, vector<1x2x1xf32>
    %89 = vector.shape_cast %88 : vector<1x2x1xf32> to vector<2x1xf32>
    %90 = arith.index_cast %86 : i32 to index
    %c0_54 = arith.constant 0 : index
    %91 = vector.load %arg7[%90, %c0_54] : memref<8x128xf32, #tpu.memory_space<vmem>>, vector<2x128xf32>
    %c0_55 = arith.constant 0 : index
    %c0_56 = arith.constant 0 : index
    %92 = vector.load %arg8[%c0_55, %c0_56] : memref<2x32xf32, #tpu.memory_space<vmem>>, vector<2x32xf32>
    %c0_57 = arith.constant 0 : index
    %c0_58 = arith.constant 0 : index
    %c0_59 = arith.constant 0 : index
    %93 = vector.load %arg4[%c0_57, %c0_58, %c0_59] : memref<1x32x128xf32, #tpu.memory_space<vmem>>, vector<1x32x128xf32>
    %94 = vector.shape_cast %93 : vector<1x32x128xf32> to vector<32x128xf32>
    %cst_60 = arith.constant dense<0.000000e+00> : vector<2x128xf32>
    %95 = tpu.matmul %92, %94, %cst_60 {dimension_numbers = #tpu.dot_dimension_numbers<[1], [0], [0], [1], [0, 0, 1, 1], [], []>} : vector<2x32xf32>, vector<32x128xf32>, vector<2x128xf32> -> vector<2x128xf32>
    %96 = arith.addf %91, %95 : vector<2x128xf32>
    %97 = vector.extract_strided_slice %96 {offsets = [0, 0], sizes = [2, 32], strides = [1, 1]} : vector<2x128xf32> to vector<2x32xf32>
    %cst_61 = arith.constant 5.000000e-01 : f32
    %98 = vector.broadcast %cst_61 : f32 to vector<2x32xf32>
    %99 = arith.mulf %98, %97 : vector<2x32xf32>
    %100 = math.tanh %99 : vector<2x32xf32>
    %cst_62 = arith.constant 1.000000e+00 : f32
    %101 = vector.broadcast %cst_62 : f32 to vector<2x32xf32>
    %102 = arith.addf %100, %101 : vector<2x32xf32>
    %cst_63 = arith.constant 5.000000e-01 : f32
    %103 = vector.broadcast %cst_63 : f32 to vector<2x32xf32>
    %104 = arith.mulf %103, %102 : vector<2x32xf32>
    %105 = vector.extract_strided_slice %96 {offsets = [0, 32], sizes = [2, 32], strides = [1, 1]} : vector<2x128xf32> to vector<2x32xf32>
    %cst_64 = arith.constant 5.000000e-01 : f32
    %106 = vector.broadcast %cst_64 : f32 to vector<2x32xf32>
    %107 = arith.mulf %106, %105 : vector<2x32xf32>
    %108 = math.tanh %107 : vector<2x32xf32>
    %cst_65 = arith.constant 1.000000e+00 : f32
    %109 = vector.broadcast %cst_65 : f32 to vector<2x32xf32>
    %110 = arith.addf %108, %109 : vector<2x32xf32>
    %cst_66 = arith.constant 5.000000e-01 : f32
    %111 = vector.broadcast %cst_66 : f32 to vector<2x32xf32>
    %112 = arith.mulf %111, %110 : vector<2x32xf32>
    %113 = vector.extract_strided_slice %96 {offsets = [0, 64], sizes = [2, 32], strides = [1, 1]} : vector<2x128xf32> to vector<2x32xf32>
    %114 = math.tanh %113 : vector<2x32xf32>
    %115 = vector.extract_strided_slice %96 {offsets = [0, 96], sizes = [2, 32], strides = [1, 1]} : vector<2x128xf32> to vector<2x32xf32>
    %cst_67 = arith.constant 5.000000e-01 : f32
    %116 = vector.broadcast %cst_67 : f32 to vector<2x32xf32>
    %117 = arith.mulf %116, %115 : vector<2x32xf32>
    %118 = math.tanh %117 : vector<2x32xf32>
    %cst_68 = arith.constant 1.000000e+00 : f32
    %119 = vector.broadcast %cst_68 : f32 to vector<2x32xf32>
    %120 = arith.addf %118, %119 : vector<2x32xf32>
    %cst_69 = arith.constant 5.000000e-01 : f32
    %121 = vector.broadcast %cst_69 : f32 to vector<2x32xf32>
    %122 = arith.mulf %121, %120 : vector<2x32xf32>
    %c0_70 = arith.constant 0 : index
    %c0_71 = arith.constant 0 : index
    %123 = vector.load %arg9[%c0_70, %c0_71] : memref<2x32xf32, #tpu.memory_space<vmem>>, vector<2x32xf32>
    %124 = arith.mulf %112, %123 : vector<2x32xf32>
    %125 = arith.mulf %104, %114 : vector<2x32xf32>
    %126 = arith.addf %124, %125 : vector<2x32xf32>
    %127 = math.tanh %126 : vector<2x32xf32>
    %128 = arith.mulf %122, %127 : vector<2x32xf32>
    %129 = vector.broadcast %89 : vector<2x1xf32> to vector<2x32xf32>
    %130 = arith.mulf %129, %126 : vector<2x32xf32>
    %cst_72 = arith.constant 1.000000e+00 : f32
    %131 = vector.broadcast %cst_72 : f32 to vector<2x1xf32>
    %132 = arith.subf %131, %89 : vector<2x1xf32>
    %c0_73 = arith.constant 0 : index
    %c0_74 = arith.constant 0 : index
    %133 = vector.load %arg9[%c0_73, %c0_74] : memref<2x32xf32, #tpu.memory_space<vmem>>, vector<2x32xf32>
    %134 = vector.broadcast %132 : vector<2x1xf32> to vector<2x32xf32>
    %135 = arith.mulf %134, %133 : vector<2x32xf32>
    %136 = arith.addf %130, %135 : vector<2x32xf32>
    %c0_75 = arith.constant 0 : index
    %c0_76 = arith.constant 0 : index
    %137 = vector.load %arg9[%c0_75, %c0_76] : memref<2x32xf32, #tpu.memory_space<vmem>>, vector<2x32xf32>
    tpu.vector_store %arg9[%c0_75, %c0_76], %136 {strides = array<i32>} : memref<2x32xf32, #tpu.memory_space<vmem>>, vector<2x32xf32>,
    %138 = vector.broadcast %89 : vector<2x1xf32> to vector<2x32xf32>
    %139 = arith.mulf %138, %128 : vector<2x32xf32>
    %cst_77 = arith.constant 1.000000e+00 : f32
    %140 = vector.broadcast %cst_77 : f32 to vector<2x1xf32>
    %141 = arith.subf %140, %89 : vector<2x1xf32>
    %c0_78 = arith.constant 0 : index
    %c0_79 = arith.constant 0 : index
    %142 = vector.load %arg8[%c0_78, %c0_79] : memref<2x32xf32, #tpu.memory_space<vmem>>, vector<2x32xf32>
    %143 = vector.broadcast %141 : vector<2x1xf32> to vector<2x32xf32>
    %144 = arith.mulf %143, %142 : vector<2x32xf32>
    %145 = arith.addf %139, %144 : vector<2x32xf32>
    %c0_80 = arith.constant 0 : index
    %c0_81 = arith.constant 0 : index
    %146 = vector.load %arg8[%c0_80, %c0_81] : memref<2x32xf32, #tpu.memory_space<vmem>>, vector<2x32xf32>
    tpu.vector_store %arg8[%c0_80, %c0_81], %145 {strides = array<i32>} : memref<2x32xf32, #tpu.memory_space<vmem>>, vector<2x32xf32>,
    %147 = vector.broadcast %89 : vector<2x1xf32> to vector<2x32xf32>
    %148 = arith.mulf %147, %128 : vector<2x32xf32>
    %c0_82 = arith.constant 0 : index
    %149 = arith.index_cast %85 : i32 to index
    %c0_83 = arith.constant 0 : index
    %c0_84 = arith.constant 0 : index
    %150 = vector.load %arg6[%c0_82, %149, %c0_83, %c0_84] : memref<1x4x2x32xf32, #tpu.memory_space<vmem>>, vector<1x1x2x32xf32>
    %151 = vector.shape_cast %150 : vector<1x1x2x32xf32> to vector<2x32xf32>
    %152 = vector.shape_cast %148 : vector<2x32xf32> to vector<1x1x2x32xf32>
    tpu.vector_store %arg6[%c0_82, %149, %c0_83, %c0_84], %152 {strides = array<i32>} : memref<1x4x2x32xf32, #tpu.memory_space<vmem>>, vector<1x1x2x32xf32>,
    %c2_i32_85 = arith.constant 2 : i32
    %c0_i32_86 = arith.constant 0 : i32
    %153 = arith.cmpi eq, %arg0, %c0_i32_86 : i32
    %c3_i32_87 = arith.constant 3 : i32
    %154 = arith.subi %c3_i32_87, %c2_i32_85 : i32
    %155 = arith.select %153, %c2_i32_85, %154 : i32
    %c2_i32_88 = arith.constant 2 : i32
    %156 = arith.muli %155, %c2_i32_88 : i32
    %157 = arith.index_cast %155 : i32 to index
    %c0_89 = arith.constant 0 : index
    %c0_90 = arith.constant 0 : index
    %158 = vector.load %arg2[%157, %c0_89, %c0_90] : memref<4x2x1xf32, #tpu.memory_space<vmem>>, vector<1x2x1xf32>
    %159 = vector.shape_cast %158 : vector<1x2x1xf32> to vector<2x1xf32>
    %160 = arith.index_cast %156 : i32 to index
    %c0_91 = arith.constant 0 : index
    %161 = vector.load %arg7[%160, %c0_91] : memref<8x128xf32, #tpu.memory_space<vmem>>, vector<2x128xf32>
    %c0_92 = arith.constant 0 : index
    %c0_93 = arith.constant 0 : index
    %162 = vector.load %arg8[%c0_92, %c0_93] : memref<2x32xf32, #tpu.memory_space<vmem>>, vector<2x32xf32>
    %c0_94 = arith.constant 0 : index
    %c0_95 = arith.constant 0 : index
    %c0_96 = arith.constant 0 : index
    %163 = vector.load %arg4[%c0_94, %c0_95, %c0_96] : memref<1x32x128xf32, #tpu.memory_space<vmem>>, vector<1x32x128xf32>
    %164 = vector.shape_cast %163 : vector<1x32x128xf32> to vector<32x128xf32>
    %cst_97 = arith.constant dense<0.000000e+00> : vector<2x128xf32>
    %165 = tpu.matmul %162, %164, %cst_97 {dimension_numbers = #tpu.dot_dimension_numbers<[1], [0], [0], [1], [0, 0, 1, 1], [], []>} : vector<2x32xf32>, vector<32x128xf32>, vector<2x128xf32> -> vector<2x128xf32>
    %166 = arith.addf %161, %165 : vector<2x128xf32>
    %167 = vector.extract_strided_slice %166 {offsets = [0, 0], sizes = [2, 32], strides = [1, 1]} : vector<2x128xf32> to vector<2x32xf32>
    %cst_98 = arith.constant 5.000000e-01 : f32
    %168 = vector.broadcast %cst_98 : f32 to vector<2x32xf32>
    %169 = arith.mulf %168, %167 : vector<2x32xf32>
    %170 = math.tanh %169 : vector<2x32xf32>
    %cst_99 = arith.constant 1.000000e+00 : f32
    %171 = vector.broadcast %cst_99 : f32 to vector<2x32xf32>
    %172 = arith.addf %170, %171 : vector<2x32xf32>
    %cst_100 = arith.constant 5.000000e-01 : f32
    %173 = vector.broadcast %cst_100 : f32 to vector<2x32xf32>
    %174 = arith.mulf %173, %172 : vector<2x32xf32>
    %175 = vector.extract_strided_slice %166 {offsets = [0, 32], sizes = [2, 32], strides = [1, 1]} : vector<2x128xf32> to vector<2x32xf32>
    %cst_101 = arith.constant 5.000000e-01 : f32
    %176 = vector.broadcast %cst_101 : f32 to vector<2x32xf32>
    %177 = arith.mulf %176, %175 : vector<2x32xf32>
    %178 = math.tanh %177 : vector<2x32xf32>
    %cst_102 = arith.constant 1.000000e+00 : f32
    %179 = vector.broadcast %cst_102 : f32 to vector<2x32xf32>
    %180 = arith.addf %178, %179 : vector<2x32xf32>
    %cst_103 = arith.constant 5.000000e-01 : f32
    %181 = vector.broadcast %cst_103 : f32 to vector<2x32xf32>
    %182 = arith.mulf %181, %180 : vector<2x32xf32>
    %183 = vector.extract_strided_slice %166 {offsets = [0, 64], sizes = [2, 32], strides = [1, 1]} : vector<2x128xf32> to vector<2x32xf32>
    %184 = math.tanh %183 : vector<2x32xf32>
    %185 = vector.extract_strided_slice %166 {offsets = [0, 96], sizes = [2, 32], strides = [1, 1]} : vector<2x128xf32> to vector<2x32xf32>
    %cst_104 = arith.constant 5.000000e-01 : f32
    %186 = vector.broadcast %cst_104 : f32 to vector<2x32xf32>
    %187 = arith.mulf %186, %185 : vector<2x32xf32>
    %188 = math.tanh %187 : vector<2x32xf32>
    %cst_105 = arith.constant 1.000000e+00 : f32
    %189 = vector.broadcast %cst_105 : f32 to vector<2x32xf32>
    %190 = arith.addf %188, %189 : vector<2x32xf32>
    %cst_106 = arith.constant 5.000000e-01 : f32
    %191 = vector.broadcast %cst_106 : f32 to vector<2x32xf32>
    %192 = arith.mulf %191, %190 : vector<2x32xf32>
    %c0_107 = arith.constant 0 : index
    %c0_108 = arith.constant 0 : index
    %193 = vector.load %arg9[%c0_107, %c0_108] : memref<2x32xf32, #tpu.memory_space<vmem>>, vector<2x32xf32>
    %194 = arith.mulf %182, %193 : vector<2x32xf32>
    %195 = arith.mulf %174, %184 : vector<2x32xf32>
    %196 = arith.addf %194, %195 : vector<2x32xf32>
    %197 = math.tanh %196 : vector<2x32xf32>
    %198 = arith.mulf %192, %197 : vector<2x32xf32>
    %199 = vector.broadcast %159 : vector<2x1xf32> to vector<2x32xf32>
    %200 = arith.mulf %199, %196 : vector<2x32xf32>
    %cst_109 = arith.constant 1.000000e+00 : f32
    %201 = vector.broadcast %cst_109 : f32 to vector<2x1xf32>
    %202 = arith.subf %201, %159 : vector<2x1xf32>
    %c0_110 = arith.constant 0 : index
    %c0_111 = arith.constant 0 : index
    %203 = vector.load %arg9[%c0_110, %c0_111] : memref<2x32xf32, #tpu.memory_space<vmem>>, vector<2x32xf32>
    %204 = vector.broadcast %202 : vector<2x1xf32> to vector<2x32xf32>
    %205 = arith.mulf %204, %203 : vector<2x32xf32>
    %206 = arith.addf %200, %205 : vector<2x32xf32>
    %c0_112 = arith.constant 0 : index
    %c0_113 = arith.constant 0 : index
    %207 = vector.load %arg9[%c0_112, %c0_113] : memref<2x32xf32, #tpu.memory_space<vmem>>, vector<2x32xf32>
    tpu.vector_store %arg9[%c0_112, %c0_113], %206 {strides = array<i32>} : memref<2x32xf32, #tpu.memory_space<vmem>>, vector<2x32xf32>,
    %208 = vector.broadcast %159 : vector<2x1xf32> to vector<2x32xf32>
    %209 = arith.mulf %208, %198 : vector<2x32xf32>
    %cst_114 = arith.constant 1.000000e+00 : f32
    %210 = vector.broadcast %cst_114 : f32 to vector<2x1xf32>
    %211 = arith.subf %210, %159 : vector<2x1xf32>
    %c0_115 = arith.constant 0 : index
    %c0_116 = arith.constant 0 : index
    %212 = vector.load %arg8[%c0_115, %c0_116] : memref<2x32xf32, #tpu.memory_space<vmem>>, vector<2x32xf32>
    %213 = vector.broadcast %211 : vector<2x1xf32> to vector<2x32xf32>
    %214 = arith.mulf %213, %212 : vector<2x32xf32>
    %215 = arith.addf %209, %214 : vector<2x32xf32>
    %c0_117 = arith.constant 0 : index
    %c0_118 = arith.constant 0 : index
    %216 = vector.load %arg8[%c0_117, %c0_118] : memref<2x32xf32, #tpu.memory_space<vmem>>, vector<2x32xf32>
    tpu.vector_store %arg8[%c0_117, %c0_118], %215 {strides = array<i32>} : memref<2x32xf32, #tpu.memory_space<vmem>>, vector<2x32xf32>,
    %217 = vector.broadcast %159 : vector<2x1xf32> to vector<2x32xf32>
    %218 = arith.mulf %217, %198 : vector<2x32xf32>
    %c0_119 = arith.constant 0 : index
    %219 = arith.index_cast %155 : i32 to index
    %c0_120 = arith.constant 0 : index
    %c0_121 = arith.constant 0 : index
    %220 = vector.load %arg6[%c0_119, %219, %c0_120, %c0_121] : memref<1x4x2x32xf32, #tpu.memory_space<vmem>>, vector<1x1x2x32xf32>
    %221 = vector.shape_cast %220 : vector<1x1x2x32xf32> to vector<2x32xf32>
    %222 = vector.shape_cast %218 : vector<2x32xf32> to vector<1x1x2x32xf32>
    tpu.vector_store %arg6[%c0_119, %219, %c0_120, %c0_121], %222 {strides = array<i32>} : memref<1x4x2x32xf32, #tpu.memory_space<vmem>>, vector<1x1x2x32xf32>,
    %c3_i32_122 = arith.constant 3 : i32
    %c0_i32_123 = arith.constant 0 : i32
    %223 = arith.cmpi eq, %arg0, %c0_i32_123 : i32
    %c3_i32_124 = arith.constant 3 : i32
    %224 = arith.subi %c3_i32_124, %c3_i32_122 : i32
    %225 = arith.select %223, %c3_i32_122, %224 : i32
    %c2_i32_125 = arith.constant 2 : i32
    %226 = arith.muli %225, %c2_i32_125 : i32
    %227 = arith.index_cast %225 : i32 to index
    %c0_126 = arith.constant 0 : index
    %c0_127 = arith.constant 0 : index
    %228 = vector.load %arg2[%227, %c0_126, %c0_127] : memref<4x2x1xf32, #tpu.memory_space<vmem>>, vector<1x2x1xf32>
    %229 = vector.shape_cast %228 : vector<1x2x1xf32> to vector<2x1xf32>
    %230 = arith.index_cast %226 : i32 to index
    %c0_128 = arith.constant 0 : index
    %231 = vector.load %arg7[%230, %c0_128] : memref<8x128xf32, #tpu.memory_space<vmem>>, vector<2x128xf32>
    %c0_129 = arith.constant 0 : index
    %c0_130 = arith.constant 0 : index
    %232 = vector.load %arg8[%c0_129, %c0_130] : memref<2x32xf32, #tpu.memory_space<vmem>>, vector<2x32xf32>
    %c0_131 = arith.constant 0 : index
    %c0_132 = arith.constant 0 : index
    %c0_133 = arith.constant 0 : index
    %233 = vector.load %arg4[%c0_131, %c0_132, %c0_133] : memref<1x32x128xf32, #tpu.memory_space<vmem>>, vector<1x32x128xf32>
    %234 = vector.shape_cast %233 : vector<1x32x128xf32> to vector<32x128xf32>
    %cst_134 = arith.constant dense<0.000000e+00> : vector<2x128xf32>
    %235 = tpu.matmul %232, %234, %cst_134 {dimension_numbers = #tpu.dot_dimension_numbers<[1], [0], [0], [1], [0, 0, 1, 1], [], []>} : vector<2x32xf32>, vector<32x128xf32>, vector<2x128xf32> -> vector<2x128xf32>
    %236 = arith.addf %231, %235 : vector<2x128xf32>
    %237 = vector.extract_strided_slice %236 {offsets = [0, 0], sizes = [2, 32], strides = [1, 1]} : vector<2x128xf32> to vector<2x32xf32>
    %cst_135 = arith.constant 5.000000e-01 : f32
    %238 = vector.broadcast %cst_135 : f32 to vector<2x32xf32>
    %239 = arith.mulf %238, %237 : vector<2x32xf32>
    %240 = math.tanh %239 : vector<2x32xf32>
    %cst_136 = arith.constant 1.000000e+00 : f32
    %241 = vector.broadcast %cst_136 : f32 to vector<2x32xf32>
    %242 = arith.addf %240, %241 : vector<2x32xf32>
    %cst_137 = arith.constant 5.000000e-01 : f32
    %243 = vector.broadcast %cst_137 : f32 to vector<2x32xf32>
    %244 = arith.mulf %243, %242 : vector<2x32xf32>
    %245 = vector.extract_strided_slice %236 {offsets = [0, 32], sizes = [2, 32], strides = [1, 1]} : vector<2x128xf32> to vector<2x32xf32>
    %cst_138 = arith.constant 5.000000e-01 : f32
    %246 = vector.broadcast %cst_138 : f32 to vector<2x32xf32>
    %247 = arith.mulf %246, %245 : vector<2x32xf32>
    %248 = math.tanh %247 : vector<2x32xf32>
    %cst_139 = arith.constant 1.000000e+00 : f32
    %249 = vector.broadcast %cst_139 : f32 to vector<2x32xf32>
    %250 = arith.addf %248, %249 : vector<2x32xf32>
    %cst_140 = arith.constant 5.000000e-01 : f32
    %251 = vector.broadcast %cst_140 : f32 to vector<2x32xf32>
    %252 = arith.mulf %251, %250 : vector<2x32xf32>
    %253 = vector.extract_strided_slice %236 {offsets = [0, 64], sizes = [2, 32], strides = [1, 1]} : vector<2x128xf32> to vector<2x32xf32>
    %254 = math.tanh %253 : vector<2x32xf32>
    %255 = vector.extract_strided_slice %236 {offsets = [0, 96], sizes = [2, 32], strides = [1, 1]} : vector<2x128xf32> to vector<2x32xf32>
    %cst_141 = arith.constant 5.000000e-01 : f32
    %256 = vector.broadcast %cst_141 : f32 to vector<2x32xf32>
    %257 = arith.mulf %256, %255 : vector<2x32xf32>
    %258 = math.tanh %257 : vector<2x32xf32>
    %cst_142 = arith.constant 1.000000e+00 : f32
    %259 = vector.broadcast %cst_142 : f32 to vector<2x32xf32>
    %260 = arith.addf %258, %259 : vector<2x32xf32>
    %cst_143 = arith.constant 5.000000e-01 : f32
    %261 = vector.broadcast %cst_143 : f32 to vector<2x32xf32>
    %262 = arith.mulf %261, %260 : vector<2x32xf32>
    %c0_144 = arith.constant 0 : index
    %c0_145 = arith.constant 0 : index
    %263 = vector.load %arg9[%c0_144, %c0_145] : memref<2x32xf32, #tpu.memory_space<vmem>>, vector<2x32xf32>
    %264 = arith.mulf %252, %263 : vector<2x32xf32>
    %265 = arith.mulf %244, %254 : vector<2x32xf32>
    %266 = arith.addf %264, %265 : vector<2x32xf32>
    %267 = math.tanh %266 : vector<2x32xf32>
    %268 = arith.mulf %262, %267 : vector<2x32xf32>
    %269 = vector.broadcast %229 : vector<2x1xf32> to vector<2x32xf32>
    %270 = arith.mulf %269, %266 : vector<2x32xf32>
    %cst_146 = arith.constant 1.000000e+00 : f32
    %271 = vector.broadcast %cst_146 : f32 to vector<2x1xf32>
    %272 = arith.subf %271, %229 : vector<2x1xf32>
    %c0_147 = arith.constant 0 : index
    %c0_148 = arith.constant 0 : index
    %273 = vector.load %arg9[%c0_147, %c0_148] : memref<2x32xf32, #tpu.memory_space<vmem>>, vector<2x32xf32>
    %274 = vector.broadcast %272 : vector<2x1xf32> to vector<2x32xf32>
    %275 = arith.mulf %274, %273 : vector<2x32xf32>
    %276 = arith.addf %270, %275 : vector<2x32xf32>
    %c0_149 = arith.constant 0 : index
    %c0_150 = arith.constant 0 : index
    %277 = vector.load %arg9[%c0_149, %c0_150] : memref<2x32xf32, #tpu.memory_space<vmem>>, vector<2x32xf32>
    tpu.vector_store %arg9[%c0_149, %c0_150], %276 {strides = array<i32>} : memref<2x32xf32, #tpu.memory_space<vmem>>, vector<2x32xf32>,
    %278 = vector.broadcast %229 : vector<2x1xf32> to vector<2x32xf32>
    %279 = arith.mulf %278, %268 : vector<2x32xf32>
    %cst_151 = arith.constant 1.000000e+00 : f32
    %280 = vector.broadcast %cst_151 : f32 to vector<2x1xf32>
    %281 = arith.subf %280, %229 : vector<2x1xf32>
    %c0_152 = arith.constant 0 : index
    %c0_153 = arith.constant 0 : index
    %282 = vector.load %arg8[%c0_152, %c0_153] : memref<2x32xf32, #tpu.memory_space<vmem>>, vector<2x32xf32>
    %283 = vector.broadcast %281 : vector<2x1xf32> to vector<2x32xf32>
    %284 = arith.mulf %283, %282 : vector<2x32xf32>
    %285 = arith.addf %279, %284 : vector<2x32xf32>
    %c0_154 = arith.constant 0 : index
    %c0_155 = arith.constant 0 : index
    %286 = vector.load %arg8[%c0_154, %c0_155] : memref<2x32xf32, #tpu.memory_space<vmem>>, vector<2x32xf32>
    tpu.vector_store %arg8[%c0_154, %c0_155], %285 {strides = array<i32>} : memref<2x32xf32, #tpu.memory_space<vmem>>, vector<2x32xf32>,
    %287 = vector.broadcast %229 : vector<2x1xf32> to vector<2x32xf32>
    %288 = arith.mulf %287, %268 : vector<2x32xf32>
    %c0_156 = arith.constant 0 : index
    %289 = arith.index_cast %225 : i32 to index
    %c0_157 = arith.constant 0 : index
    %c0_158 = arith.constant 0 : index
    %290 = vector.load %arg6[%c0_156, %289, %c0_157, %c0_158] : memref<1x4x2x32xf32, #tpu.memory_space<vmem>>, vector<1x1x2x32xf32>
    %291 = vector.shape_cast %290 : vector<1x1x2x32xf32> to vector<2x32xf32>
    %292 = vector.shape_cast %288 : vector<2x32xf32> to vector<1x1x2x32xf32>
    tpu.vector_store %arg6[%c0_156, %289, %c0_157, %c0_158], %292 {strides = array<i32>} : memref<1x4x2x32xf32, #tpu.memory_space<vmem>>, vector<1x1x2x32xf32>,
    %c4_i32 = arith.constant 4 : i32
    return
  }
  func.func @transform_0(%arg0: i32) -> (i32, i32) {
    %c0_i32 = arith.constant 0 : i32
    %c0_i32_0 = arith.constant 0 : i32
    %c0_i32_1 = arith.constant 0 : i32
    return %c0_i32, %c0_i32_0 : i32, i32
  }
  func.func @transform_1(%arg0: i32) -> (i32, i32, i32) {
    %c0_i32 = arith.constant 0 : i32
    %c0_i32_0 = arith.constant 0 : i32
    %c0_i32_1 = arith.constant 0 : i32
    %c0_i32_2 = arith.constant 0 : i32
    return %c0_i32, %c0_i32_0, %c0_i32_1 : i32, i32, i32
  }
  func.func @transform_2(%arg0: i32) -> (i32, i32, i32) {
    %c0_i32 = arith.constant 0 : i32
    %c0_i32_0 = arith.constant 0 : i32
    %c0_i32_1 = arith.constant 0 : i32
    return %arg0, %c0_i32, %c0_i32_0 : i32, i32, i32
  }
  func.func @transform_3(%arg0: i32) -> (i32, i32, i32) {
    %c0_i32 = arith.constant 0 : i32
    %c0_i32_0 = arith.constant 0 : i32
    %c0_i32_1 = arith.constant 0 : i32
    return %arg0, %c0_i32, %c0_i32_0 : i32, i32, i32
  }
  func.func @transform_4(%arg0: i32) -> (i32, i32, i32) {
    %c0_i32 = arith.constant 0 : i32
    %c0_i32_0 = arith.constant 0 : i32
    %c0_i32_1 = arith.constant 0 : i32
    return %arg0, %c0_i32, %c0_i32_0 : i32, i32, i32
  }
  func.func @transform_5(%arg0: i32) -> (i32, i32, i32, i32) {
    %c0_i32 = arith.constant 0 : i32
    %c0_i32_0 = arith.constant 0 : i32
    %c0_i32_1 = arith.constant 0 : i32
    %c0_i32_2 = arith.constant 0 : i32
    return %arg0, %c0_i32, %c0_i32_0, %c0_i32_1 : i32, i32, i32, i32
  }
}

module attributes {stable_mosaic.version = 11 : i64} {
  func.func @_proj_attn_pool_kernel(%arg0: i32, %arg1: memref<4x8x64xf32, #tpu.memory_space<vmem>>, %arg2: memref<4x8x1xf32, #tpu.memory_space<vmem>>, %arg3: memref<64x32xf32, #tpu.memory_space<vmem>>, %arg4: memref<32x32xf32, #tpu.memory_space<vmem>>, %arg5: memref<1x32xf32, #tpu.memory_space<vmem>>, %arg6: memref<1x32xf32, #tpu.memory_space<vmem>>, %arg7: memref<4x8x32xf32, #tpu.memory_space<vmem>>, %arg8: memref<8x32xf32, #tpu.memory_space<vmem>>) attributes {dimension_semantics = [#tpu.dimension_semantics<parallel>], iteration_bounds = array<i64: 1>, scalar_prefetch = 0 : i64, scratch_operands = 0 : i64, tpu.core_type = #tpu.core_type<tc>, window_params = [{transform_indices = @transform_0, window_bounds = array<i64: 4, 8, 64>}, {transform_indices = @transform_1, window_bounds = array<i64: 4, 8, 1>}, {pipeline_mode = #tpu.pipeline_mode<synchronous>, transform_indices = @transform_2, window_bounds = array<i64: 64, 32>}, {pipeline_mode = #tpu.pipeline_mode<synchronous>, transform_indices = @transform_3, window_bounds = array<i64: 32, 32>}, {pipeline_mode = #tpu.pipeline_mode<synchronous>, transform_indices = @transform_4, window_bounds = array<i64: 1, 32>}, {pipeline_mode = #tpu.pipeline_mode<synchronous>, transform_indices = @transform_5, window_bounds = array<i64: 1, 32>}, {transform_indices = @transform_6, window_bounds = array<i64: 4, 8, 32>}, {transform_indices = @transform_7, window_bounds = array<i64: 8, 32>}]} {
    %c0 = arith.constant 0 : index
    %c0_0 = arith.constant 0 : index
    %c0_1 = arith.constant 0 : index
    %0 = vector.load %arg1[%c0, %c0_0, %c0_1] : memref<4x8x64xf32, #tpu.memory_space<vmem>>, vector<4x8x64xf32>
    %1 = vector.shape_cast %0 : vector<4x8x64xf32> to vector<32x64xf32>
    %c0_2 = arith.constant 0 : index
    %c0_3 = arith.constant 0 : index
    %2 = vector.load %arg3[%c0_2, %c0_3] : memref<64x32xf32, #tpu.memory_space<vmem>>, vector<64x32xf32>
    %cst = arith.constant dense<0.000000e+00> : vector<32x32xf32>
    %3 = tpu.matmul %1, %2, %cst {dimension_numbers = #tpu.dot_dimension_numbers<[1], [0], [0], [1], [0, 0, 1, 1], [], []>} : vector<32x64xf32>, vector<64x32xf32>, vector<32x32xf32> -> vector<32x32xf32>
    %4 = vector.shape_cast %3 : vector<32x32xf32> to vector<4x8x32xf32>
    %c0_4 = arith.constant 0 : index
    %c0_5 = arith.constant 0 : index
    %c0_6 = arith.constant 0 : index
    %5 = vector.load %arg7[%c0_4, %c0_5, %c0_6] : memref<4x8x32xf32, #tpu.memory_space<vmem>>, vector<4x8x32xf32>
    tpu.vector_store %arg7[%c0_4, %c0_5, %c0_6], %4 {strides = array<i32>} : memref<4x8x32xf32, #tpu.memory_space<vmem>>, vector<4x8x32xf32>,
    %c0_7 = arith.constant 0 : index
    %c0_8 = arith.constant 0 : index
    %6 = vector.load %arg4[%c0_7, %c0_8] : memref<32x32xf32, #tpu.memory_space<vmem>>, vector<32x32xf32>
    %cst_9 = arith.constant dense<0.000000e+00> : vector<32x32xf32>
    %7 = tpu.matmul %3, %6, %cst_9 {dimension_numbers = #tpu.dot_dimension_numbers<[1], [0], [0], [1], [0, 0, 1, 1], [], []>} : vector<32x32xf32>, vector<32x32xf32>, vector<32x32xf32> -> vector<32x32xf32>
    %c0_10 = arith.constant 0 : index
    %c0_11 = arith.constant 0 : index
    %8 = vector.load %arg5[%c0_10, %c0_11] : memref<1x32xf32, #tpu.memory_space<vmem>>, vector<1x32xf32>
    %9 = vector.broadcast %8 : vector<1x32xf32> to vector<32x32xf32>
    %10 = arith.addf %7, %9 : vector<32x32xf32>
    %11 = math.tanh %10 : vector<32x32xf32>
    %12 = vector.shape_cast %11 : vector<32x32xf32> to vector<4x8x32xf32>
    %c0_12 = arith.constant 0 : index
    %c0_13 = arith.constant 0 : index
    %c0_14 = arith.constant 0 : index
    %13 = vector.load %arg2[%c0_12, %c0_13, %c0_14] : memref<4x8x1xf32, #tpu.memory_space<vmem>>, vector<4x8x1xf32>
    %c0_15 = arith.constant 0 : index
    %c0_16 = arith.constant 0 : index
    %14 = vector.load %arg6[%c0_15, %c0_16] : memref<1x32xf32, #tpu.memory_space<vmem>>, vector<1x32xf32>
    %15 = vector.shape_cast %14 : vector<1x32xf32> to vector<1x1x32xf32>
    %16 = vector.broadcast %15 : vector<1x1x32xf32> to vector<4x8x32xf32>
    %17 = arith.mulf %12, %16 : vector<4x8x32xf32>
    %cst_17 = arith.constant dense<0.000000e+00> : vector<4x8xf32>
    %18 = vector.multi_reduction <add>, %17, %cst_17 [2] : vector<4x8x32xf32> to vector<4x8xf32>
    %19 = vector.shape_cast %18 : vector<4x8xf32> to vector<4x8x1xf32>
    %cst_18 = arith.constant 5.000000e-01 : f32
    %20 = vector.broadcast %cst_18 : f32 to vector<4x8x1xf32>
    %21 = arith.cmpf olt, %13, %20 : vector<4x8x1xf32>
    %cst_19 = arith.constant -1.000000e+09 : f32
    %22 = vector.broadcast %cst_19 : f32 to vector<4x8x1xf32>
    %23 = arith.select %21, %22, %19 : vector<4x8x1xi1>, vector<4x8x1xf32>
    %cst_20 = arith.constant dense<0xFF800000> : vector<8x1xf32>
    %24 = vector.multi_reduction <maximumf>, %23, %cst_20 [0] : vector<4x8x1xf32> to vector<8x1xf32>
    %25 = vector.shape_cast %24 : vector<8x1xf32> to vector<1x8x1xf32>
    %26 = vector.broadcast %25 : vector<1x8x1xf32> to vector<4x8x1xf32>
    %27 = arith.subf %23, %26 : vector<4x8x1xf32>
    %28 = math.exp %27 : vector<4x8x1xf32>
    %cst_21 = arith.constant dense<0.000000e+00> : vector<8x1xf32>
    %29 = vector.multi_reduction <add>, %28, %cst_21 [0] : vector<4x8x1xf32> to vector<8x1xf32>
    %30 = vector.shape_cast %29 : vector<8x1xf32> to vector<1x8x1xf32>
    %31 = tpu.reciprocal %30 {approx = true} : vector<1x8x1xf32> -> vector<1x8x1xf32>
    %32 = vector.broadcast %31 : vector<1x8x1xf32> to vector<4x8x1xf32>
    %33 = arith.mulf %28, %32 : vector<4x8x1xf32>
    %34 = vector.broadcast %33 : vector<4x8x1xf32> to vector<4x8x32xf32>
    %35 = arith.mulf %34, %4 : vector<4x8x32xf32>
    %cst_22 = arith.constant dense<0.000000e+00> : vector<8x32xf32>
    %36 = vector.multi_reduction <add>, %35, %cst_22 [0] : vector<4x8x32xf32> to vector<8x32xf32>
    %c0_23 = arith.constant 0 : index
    %c0_24 = arith.constant 0 : index
    %37 = vector.load %arg8[%c0_23, %c0_24] : memref<8x32xf32, #tpu.memory_space<vmem>>, vector<8x32xf32>
    tpu.vector_store %arg8[%c0_23, %c0_24], %36 {strides = array<i32>} : memref<8x32xf32, #tpu.memory_space<vmem>>, vector<8x32xf32>,
    return
  }
  func.func @transform_0(%arg0: i32) -> (i32, i32, i32) {
    %c0_i32 = arith.constant 0 : i32
    %c0_i32_0 = arith.constant 0 : i32
    %c0_i32_1 = arith.constant 0 : i32
    return %c0_i32, %arg0, %c0_i32_0 : i32, i32, i32
  }
  func.func @transform_1(%arg0: i32) -> (i32, i32, i32) {
    %c0_i32 = arith.constant 0 : i32
    %c0_i32_0 = arith.constant 0 : i32
    %c0_i32_1 = arith.constant 0 : i32
    return %c0_i32, %arg0, %c0_i32_0 : i32, i32, i32
  }
  func.func @transform_2(%arg0: i32) -> (i32, i32) {
    %c0_i32 = arith.constant 0 : i32
    %c0_i32_0 = arith.constant 0 : i32
    %c0_i32_1 = arith.constant 0 : i32
    return %c0_i32, %c0_i32_0 : i32, i32
  }
  func.func @transform_3(%arg0: i32) -> (i32, i32) {
    %c0_i32 = arith.constant 0 : i32
    %c0_i32_0 = arith.constant 0 : i32
    %c0_i32_1 = arith.constant 0 : i32
    return %c0_i32, %c0_i32_0 : i32, i32
  }
  func.func @transform_4(%arg0: i32) -> (i32, i32) {
    %c0_i32 = arith.constant 0 : i32
    %c0_i32_0 = arith.constant 0 : i32
    %c0_i32_1 = arith.constant 0 : i32
    return %c0_i32, %c0_i32_0 : i32, i32
  }
  func.func @transform_5(%arg0: i32) -> (i32, i32) {
    %c0_i32 = arith.constant 0 : i32
    %c0_i32_0 = arith.constant 0 : i32
    %c0_i32_1 = arith.constant 0 : i32
    return %c0_i32, %c0_i32_0 : i32, i32
  }
  func.func @transform_6(%arg0: i32) -> (i32, i32, i32) {
    %c0_i32 = arith.constant 0 : i32
    %c0_i32_0 = arith.constant 0 : i32
    %c0_i32_1 = arith.constant 0 : i32
    return %c0_i32, %arg0, %c0_i32_0 : i32, i32, i32
  }
  func.func @transform_7(%arg0: i32) -> (i32, i32) {
    %c0_i32 = arith.constant 0 : i32
    %c0_i32_0 = arith.constant 0 : i32
    return %arg0, %c0_i32 : i32, i32
  }
}

module attributes {stable_mosaic.version = 11 : i64} {
  func.func @_dense_tanh_kernel(%arg0: memref<2x32xf32, #tpu.memory_space<vmem>>, %arg1: memref<32x64xf32, #tpu.memory_space<vmem>>, %arg2: memref<1x64xf32, #tpu.memory_space<vmem>>, %arg3: memref<2x64xf32, #tpu.memory_space<vmem>>) attributes {dimension_semantics = [], scalar_prefetch = 0 : i64, scratch_operands = 0 : i64, tpu.core_type = #tpu.core_type<tc>} {
    %c0 = arith.constant 0 : index
    %c0_0 = arith.constant 0 : index
    %0 = vector.load %arg0[%c0, %c0_0] : memref<2x32xf32, #tpu.memory_space<vmem>>, vector<2x32xf32>
    %c0_1 = arith.constant 0 : index
    %c0_2 = arith.constant 0 : index
    %1 = vector.load %arg1[%c0_1, %c0_2] : memref<32x64xf32, #tpu.memory_space<vmem>>, vector<32x64xf32>
    %cst = arith.constant dense<0.000000e+00> : vector<2x64xf32>
    %2 = tpu.matmul %0, %1, %cst {dimension_numbers = #tpu.dot_dimension_numbers<[1], [0], [0], [1], [0, 0, 1, 1], [], []>} : vector<2x32xf32>, vector<32x64xf32>, vector<2x64xf32> -> vector<2x64xf32>
    %c0_3 = arith.constant 0 : index
    %c0_4 = arith.constant 0 : index
    %3 = vector.load %arg2[%c0_3, %c0_4] : memref<1x64xf32, #tpu.memory_space<vmem>>, vector<1x64xf32>
    %4 = vector.broadcast %3 : vector<1x64xf32> to vector<2x64xf32>
    %5 = arith.addf %2, %4 : vector<2x64xf32>
    %6 = math.tanh %5 : vector<2x64xf32>
    %c0_5 = arith.constant 0 : index
    %c0_6 = arith.constant 0 : index
    %7 = vector.load %arg3[%c0_5, %c0_6] : memref<2x64xf32, #tpu.memory_space<vmem>>, vector<2x64xf32>
    tpu.vector_store %arg3[%c0_5, %c0_6], %6 {strides = array<i32>} : memref<2x64xf32, #tpu.memory_space<vmem>>, vector<2x64xf32>,
    return
  }
}

</mosaic_0001>

<llo_original>
// kernel: hierarchical_attention_forward.6
$region0: #{hierarchical_attention_forward.6}
  #allocation0 [shape = 'u32[]', space=smem, size = 0x4, offset = 0x4, fixed_abs, tag = 'smem constant byte address 0x4 - core index']
  #allocation1 [shape = 'u32[144,128]{1,0:T(1,128)}', space=vmem, size = 0x12000, scoped, tag = 'internal scratch']
  %s0 = inlined_call_operand.vmem [shape: f32[8,8,32], index: 0, kind: input, shape index: {}]
  %s1 = inlined_call_operand.vmem [shape: f32[8,8,1], index: 1, kind: input, shape index: {}]
  %s2 = inlined_call_operand.vmem [shape: f32[32,32], index: 2, kind: input, shape index: {}]
  %s3 = inlined_call_operand.vmem [shape: f32[1,32], index: 3, kind: input, shape index: {}]
  %s4 = inlined_call_operand.vmem [shape: f32[1,32], index: 4, kind: input, shape index: {}]
  %s5 = inlined_call_operand.vmem [shape: f32[8,32], index: 5, kind: output, shape index: {}]
  %s6 = sld [smem:[#allocation0]]
  $region30: #{hierarchical_attention_forward.6} parent=0
    _
  %s8 = ssub.s32 1, %s6
  %s9 = scalar_select 0, %s8, %s6
  // Predicated region
  $region2: #{hierarchical_attention_forward.6} parent=0 // pred_check
    _
  $region3: #{hierarchical_attention_forward.6} parent=0 // pred_check_branch
    %11 = sbr.rel (0) target = $region5
  $region4: #{hierarchical_attention_forward.6} parent=0 // pred_region
    _
  $region5: #{hierarchical_attention_forward.6} parent=0 // pred_fallthru
    _
  // Predicated region
  $region6: #{hierarchical_attention_forward.6} parent=0 // pred_check
    _
  $region7: #{hierarchical_attention_forward.6} parent=0 // pred_check_branch
    %13 = sbr.rel (0) target = $region9
  $region8: #{hierarchical_attention_forward.6} parent=0 // pred_region
    _
  $region9: #{hierarchical_attention_forward.6} parent=0 // pred_fallthru
    _
  // Predicated region
  $region10: #{hierarchical_attention_forward.6} parent=0 // pred_check
    _
  $region11: #{hierarchical_attention_forward.6} parent=0 // pred_check_branch
    %15 = sbr.rel (0) target = $region13
  $region12: #{hierarchical_attention_forward.6} parent=0 // pred_region
    _
  $region13: #{hierarchical_attention_forward.6} parent=0 // pred_fallthru
    _
  // Predicated region
  $region14: #{hierarchical_attention_forward.6} parent=0 // pred_check
    _
  $region15: #{hierarchical_attention_forward.6} parent=0 // pred_check_branch
    %17 = sbr.rel (0) target = $region17
  $region16: #{hierarchical_attention_forward.6} parent=0 // pred_region
    _
  $region17: #{hierarchical_attention_forward.6} parent=0 // pred_fallthru
    _
  // Predicated region
  $region18: #{hierarchical_attention_forward.6} parent=0 // pred_check
    _
  $region19: #{hierarchical_attention_forward.6} parent=0 // pred_check_branch
    %19 = sbr.rel (0) target = $region21
  $region20: #{hierarchical_attention_forward.6} parent=0 // pred_region
    _
  $region21: #{hierarchical_attention_forward.6} parent=0 // pred_fallthru
    _
  %v20 = vld [vmem:[%s0] sm:$0xff]
  %v21 = vld [vmem:[%s0 + $0x8] sm:$0xff]
  %v22 = vld [vmem:[%s0 + $0x10] sm:$0xff]
  %v23 = vld [vmem:[%s0 + $0x18] sm:$0xff]
  %v24 = vld [vmem:[%s0 + $0x20] sm:$0xff]
  %v25 = vld [vmem:[%s0 + $0x28] sm:$0xff]
  %v26 = vld [vmem:[%s0 + $0x30] sm:$0xff]
  %v27 = vld [vmem:[%s0 + $0x38] sm:$0xff]
  %v28 = vld [vmem:[%s2] sm:$0xff]
  %v29 = vld [vmem:[%s2 + $0x8] sm:$0xff]
  %v30 = vld [vmem:[%s2 + $0x10] sm:$0xff]
  %v31 = vld [vmem:[%s2 + $0x18] sm:$0xff]
  %v32 = vld [vmem:[%s3] sm:$0x1]
  %v34 = vlaneseq
  %v35 = vshrl.u32 %v34, 7
  %v36 = vsub.s32 0, %v35
  %v37 = vrot.slane %v32, %v36
  %vm39 = vcmask 261120
  %v41 = vsel %vm39, %v20, 0
  %v44 = vsel %vm39, %v21, 0
  %v47 = vsel %vm39, %v22, 0
  %v50 = vsel %vm39, %v23, 0
  %v53 = vsel %vm39, %v24, 0
  %v56 = vsel %vm39, %v25, 0
  %v59 = vsel %vm39, %v26, 0
  %v62 = vsel %vm39, %v27, 0
  %64 = vmatprep.subr.mxu0 0.0
  %65 = vmatpush1.msra.mxu0 %v28
  %66 = vmatprep.subr.mxu0 0.0
  %67 = vmatpush1.msra.mxu0 %v29
  %68 = vmatprep.subr.mxu0 0.0
  %69 = vmatpush1.msra.mxu0 %v30
  %70 = vmatprep.subr.mxu0 0.0
  %71 = vmatpush1.msra.mxu0 %v31
  %72 = vmatprep.subr.mxu0 0.0
  %73 = vmatpush1.msra.mxu0 0.0
  %74 = vmatprep.subr.mxu0 0.0
  %75 = vmatpush1.msra.mxu0 0.0
  %76 = vmatprep.subr.mxu0 0.0
  %77 = vmatpush1.msra.mxu0 0.0
  %78 = vmatprep.subr.mxu0 0.0
  %79 = vmatpush1.msra.mxu0 0.0
  %80 = vmatprep.subr.mxu0 0.0
  %81 = vmatpush1.msra.mxu0 0.0
  %82 = vmatprep.subr.mxu0 0.0
  %83 = vmatpush1.msra.mxu0 0.0
  %84 = vmatprep.subr.mxu0 0.0
  %85 = vmatpush1.msra.mxu0 0.0
  %86 = vmatprep.subr.mxu0 0.0
  %87 = vmatpush1.msra.mxu0 0.0
  %88 = vmatprep.subr.mxu0 0.0
  %89 = vmatpush1.msra.mxu0 0.0
  %90 = vmatprep.subr.mxu0 0.0
  %91 = vmatpush1.msra.mxu0 0.0
  %92 = vmatprep.subr.mxu0 0.0
  %93 = vmatpush1.msra.mxu0 0.0
  %94 = vmatprep.subr.mxu0 0.0
  %95 = vmatpush1.msra.mxu0 0.0
  %96 = vmatprep.subr.mxu0 0.0
  %97 = vmatpush1.msra.mxu0 0.0
  %98 = vmatprep.subr.mxu0 0.0
  %99 = vmatpush1.msra.mxu0 0.0
  %100 = vmatprep.subr.mxu0 0.0
  %101 = vmatpush1.msra.mxu0 0.0
  %102 = vmatprep.subr.mxu0 0.0
  %103 = vmatpush1.msra.mxu0 0.0
  %104 = vmatprep.subr.mxu0 0.0
  %105 = vmatpush1.msra.mxu0 0.0
  %106 = vmatprep.subr.mxu0 0.0
  %107 = vmatpush1.msra.mxu0 0.0
  %108 = vmatprep.subr.mxu0 0.0
  %109 = vmatpush1.msra.mxu0 0.0
  %110 = vmatprep.subr.mxu0 0.0
  %111 = vmatpush1.msra.mxu0 0.0
  %112 = vmatprep.subr.mxu0 0.0
  %113 = vmatpush1.msra.mxu0 0.0
  %114 = vmatprep.subr.mxu0 0.0
  %115 = vmatpush1.msra.mxu0 0.0
  %116 = vmatprep.subr.mxu0 0.0
  %117 = vmatpush1.msra.mxu0 0.0
  %118 = vmatprep.subr.mxu0 0.0
  %119 = vmatpush1.msra.mxu0 0.0
  %120 = vmatprep.subr.mxu0 0.0
  %121 = vmatpush1.msra.mxu0 0.0
  %122 = vmatprep.subr.mxu0 0.0
  %123 = vmatpush1.msra.mxu0 0.0
  %124 = vmatprep.subr.mxu0 0.0
  %125 = vmatpush1.msra.mxu0 0.0
  %126 = vmatprep.subr.mxu0 0.0
  %127 = vmatpush1.msra.mxu0 0.0
  %128 = vmatprep.mubr.f32.mxu0 0.0
  %129 = vmatmul.mubr.f32.gmra.mrb[0].mxu0 %v41
  %v130 = vpop.f32.mrb[0].mxu0
  %v131 = vadd.f32 %v37, %v130
  %v132 = vpop.f32.mrb[0].mxu0
  %133 = vmatprep.mubr.f32.mxu0 0.0
  %134 = vmatmul.mubr.f32.gmra.mrb[0].mxu0 %v44
  %v135 = vpop.f32.mrb[0].mxu0
  %v136 = vadd.f32 %v37, %v135
  %v137 = vpop.f32.mrb[0].mxu0
  %138 = vmatprep.mubr.f32.mxu0 0.0
  %139 = vmatmul.mubr.f32.gmra.mrb[0].mxu0 %v47
  %v140 = vpop.f32.mrb[0].mxu0
  %v141 = vadd.f32 %v37, %v140
  %v142 = vpop.f32.mrb[0].mxu0
  %143 = vmatprep.mubr.f32.mxu0 0.0
  %144 = vmatmul.mubr.f32.gmra.mrb[0].mxu0 %v50
  %v145 = vpop.f32.mrb[0].mxu0
  %v146 = vadd.f32 %v37, %v145
  %v147 = vpop.f32.mrb[0].mxu0
  %148 = vmatprep.mubr.f32.mxu0 0.0
  %149 = vmatmul.mubr.f32.gmra.mrb[0].mxu0 %v53
  %v150 = vpop.f32.mrb[0].mxu0
  %v151 = vadd.f32 %v37, %v150
  %v152 = vpop.f32.mrb[0].mxu0
  %153 = vmatprep.mubr.f32.mxu0 0.0
  %154 = vmatmul.mubr.f32.gmra.mrb[0].mxu0 %v56
  %v155 = vpop.f32.mrb[0].mxu0
  %v156 = vadd.f32 %v37, %v155
  %v157 = vpop.f32.mrb[0].mxu0
  %158 = vmatprep.mubr.f32.mxu0 0.0
  %159 = vmatmul.mubr.f32.gmra.mrb[0].mxu0 %v59
  %v160 = vpop.f32.mrb[0].mxu0
  %v161 = vadd.f32 %v37, %v160
  %v162 = vpop.f32.mrb[0].mxu0
  %163 = vmatprep.mubr.f32.mxu0 0.0
  %164 = vmatmul.mubr.f32.gmra.mrb[0].mxu0 %v62
  %v165 = vpop.f32.mrb[0].mxu0
  %v166 = vadd.f32 %v37, %v165
  %v167 = vpop.f32.mrb[0].mxu0
  %168 = vdwg.mxu0
  %v169 = vtanh.pop %v131
  %v170 = vtanh.pop %v136
  %v171 = vtanh.pop %v141
  %v172 = vtanh.pop %v146
  %v173 = vtanh.pop %v151
  %v174 = vtanh.pop %v156
  %v175 = vtanh.pop %v161
  %v176 = vtanh.pop %v166
  %v177 = vld [vmem:[%s1] sm:$0xff]
  %v178 = vld [vmem:[%s1 + $0x8] sm:$0xff]
  %v179 = vld [vmem:[%s1 + $0x10] sm:$0xff]
  %v180 = vld [vmem:[%s1 + $0x18] sm:$0xff]
  %v181 = vld [vmem:[%s1 + $0x20] sm:$0xff]
  %v182 = vld [vmem:[%s1 + $0x28] sm:$0xff]
  %v183 = vld [vmem:[%s1 + $0x30] sm:$0xff]
  %v184 = vld [vmem:[%s1 + $0x38] sm:$0xff]
  %v185 = vld [vmem:[%s4] sm:$0x1]
  %v187 = vlaneseq
  %v188 = vshrl.u32 %v187, 7
  %v189 = vsub.s32 0, %v188
  %v190 = vrot.slane %v185, %v189
  %v192 = vmul.f32 %v169, %v190
  %v193 = vmul.f32 %v170, %v190
  %v194 = vmul.f32 %v171, %v190
  %v195 = vmul.f32 %v172, %v190
  %v196 = vmul.f32 %v173, %v190
  %v197 = vmul.f32 %v174, %v190
  %v198 = vmul.f32 %v175, %v190
  %v199 = vmul.f32 %v176, %v190
  %v200 = vsel %vm39, %v192, 0.0
  %201 = vadd.xlane.f32.xlu0 %v200
  %v202 = vpop.xlane.xlu0 %201
  %v203 = vsel %vm39, %v193, 0.0
  %204 = vadd.xlane.f32.xlu0 %v203
  %v205 = vpop.xlane.xlu0 %204
  %v206 = vsel %vm39, %v194, 0.0
  %207 = vadd.xlane.f32.xlu0 %v206
  %v208 = vpop.xlane.xlu0 %207
  %v209 = vsel %vm39, %v195, 0.0
  %210 = vadd.xlane.f32.xlu0 %v209
  %v211 = vpop.xlane.xlu0 %210
  %v212 = vsel %vm39, %v196, 0.0
  %213 = vadd.xlane.f32.xlu0 %v212
  %v214 = vpop.xlane.xlu0 %213
  %v215 = vsel %vm39, %v197, 0.0
  %216 = vadd.xlane.f32.xlu0 %v215
  %v217 = vpop.xlane.xlu0 %216
  %v218 = vsel %vm39, %v198, 0.0
  %219 = vadd.xlane.f32.xlu0 %v218
  %v220 = vpop.xlane.xlu0 %219
  %v221 = vsel %vm39, %v199, 0.0
  %222 = vadd.xlane.f32.xlu0 %v221
  %v223 = vpop.xlane.xlu0 %222
  %vm224 = vcmp.lt.f32.partialorder %v177, 0.5
  %vm225 = vcmp.lt.f32.partialorder %v178, 0.5
  %vm226 = vcmp.lt.f32.partialorder %v179, 0.5
  %vm227 = vcmp.lt.f32.partialorder %v180, 0.5
  %vm228 = vcmp.lt.f32.partialorder %v181, 0.5
  %vm229 = vcmp.lt.f32.partialorder %v182, 0.5
  %vm230 = vcmp.lt.f32.partialorder %v183, 0.5
  %vm231 = vcmp.lt.f32.partialorder %v184, 0.5
  %v232 = vsel %vm224, -1e+09, %v202
  %v233 = vsel %vm225, -1e+09, %v205
  %v234 = vsel %vm226, -1e+09, %v208
  %v235 = vsel %vm227, -1e+09, %v211
  %v236 = vsel %vm228, -1e+09, %v214
  %v237 = vsel %vm229, -1e+09, %v217
  %v238 = vsel %vm230, -1e+09, %v220
  %v239 = vsel %vm231, -1e+09, %v223
  %vm240 = vcmask 7168
  %v241 = vsel %vm240, %v232, -inf
  %v242 = vsel %vm240, %v233, -inf
  %v243 = vsel %vm240, %v234, -inf
  %v244 = vsel %vm240, %v235, -inf
  %v245 = vsel %vm240, %v236, -inf
  %v246 = vmax.f32 %v241, %v245
  %v247 = vsel %vm240, %v237, -inf
  %v248 = vmax.f32 %v242, %v247
  %v249 = vsel %vm240, %v238, -inf
  %v250 = vmax.f32 %v243, %v249
  %v251 = vsel %vm240, %v239, -inf
  %v252 = vmax.f32 %v244, %v251
  %v253 = vmax.f32 %v246, %v248
  %v254 = vmax.f32 %v250, %v252
  %v255 = vmax.f32 %v253, %v254
  %v256 = vsub.f32 %v232, %v255
  %v257 = vsub.f32 %v233, %v255
  %v258 = vsub.f32 %v234, %v255
  %v259 = vsub.f32 %v235, %v255
  %v260 = vsub.f32 %v236, %v255
  %v261 = vsub.f32 %v237, %v255
  %v262 = vsub.f32 %v238, %v255
  %v263 = vsub.f32 %v239, %v255
  %v264 = vmul.f32 %v256, 1.442695
  %v265 = vpow.pop %v264
  %v266 = vmul.f32 %v257, 1.442695
  %v267 = vpow.pop %v266
  %v268 = vmul.f32 %v258, 1.442695
  %v269 = vpow.pop %v268
  %v270 = vmul.f32 %v259, 1.442695
  %v271 = vpow.pop %v270
  %v272 = vmul.f32 %v260, 1.442695
  %v273 = vpow.pop %v272
  %v274 = vmul.f32 %v261, 1.442695
  %v275 = vpow.pop %v274
  %v276 = vmul.f32 %v262, 1.442695
  %v277 = vpow.pop %v276
  %v278 = vmul.f32 %v263, 1.442695
  %v279 = vpow.pop %v278
  %v280 = vsel %vm240, %v265, 0.0
  %v281 = vsel %vm240, %v267, 0.0
  %v282 = vadd.f32 %v280, %v281
  %v283 = vsel %vm240, %v269, 0.0
  %v284 = vadd.f32 %v282, %v283
  %v285 = vsel %vm240, %v271, 0.0
  %v286 = vadd.f32 %v284, %v285
  %v287 = vsel %vm240, %v273, 0.0
  %v288 = vadd.f32 %v286, %v287
  %v289 = vsel %vm240, %v275, 0.0
  %v290 = vadd.f32 %v288, %v289
  %v291 = vsel %vm240, %v277, 0.0
  %v292 = vadd.f32 %v290, %v291
  %v293 = vsel %vm240, %v279, 0.0
  %v294 = vadd.f32 %v292, %v293
  %v295 = vrcp.pop %v294
  %v296 = vmul.f32 %v265, %v295
  %v297 = vmul.f32 %v267, %v295
  %v298 = vmul.f32 %v269, %v295
  %v299 = vmul.f32 %v271, %v295
  %v300 = vmul.f32 %v273, %v295
  %v301 = vmul.f32 %v275, %v295
  %v302 = vmul.f32 %v277, %v295
  %v303 = vmul.f32 %v279, %v295
  %305 = vset.pattern.permute.xlu0 0
  %306 = vperm.xlu0 %305, %v296
  %v307 = vpop.permute.xlu0 %306
  %310 = vset.pattern.permute.xlu0 0
  %311 = vperm.xlu0 %310, %v297
  %v312 = vpop.permute.xlu0 %311
  %315 = vset.pattern.permute.xlu0 0
  %316 = vperm.xlu0 %315, %v298
  %v317 = vpop.permute.xlu0 %316
  %320 = vset.pattern.permute.xlu0 0
  %321 = vperm.xlu0 %320, %v299
  %v322 = vpop.permute.xlu0 %321
  %325 = vset.pattern.permute.xlu0 0
  %326 = vperm.xlu0 %325, %v300
  %v327 = vpop.permute.xlu0 %326
  %330 = vset.pattern.permute.xlu0 0
  %331 = vperm.xlu0 %330, %v301
  %v332 = vpop.permute.xlu0 %331
  %335 = vset.pattern.permute.xlu0 0
  %336 = vperm.xlu0 %335, %v302
  %v337 = vpop.permute.xlu0 %336
  %340 = vset.pattern.permute.xlu0 0
  %341 = vperm.xlu0 %340, %v303
  %v342 = vpop.permute.xlu0 %341
  %v344 = vmul.f32 %v307, %v20
  %v345 = vmul.f32 %v312, %v21
  %v346 = vmul.f32 %v317, %v22
  %v347 = vmul.f32 %v322, %v23
  %v348 = vmul.f32 %v327, %v24
  %v349 = vmul.f32 %v332, %v25
  %v350 = vmul.f32 %v337, %v26
  %v351 = vmul.f32 %v342, %v27
  %v352 = vsel %vm39, %v344, 0.0
  %v353 = vsel %vm39, %v345, 0.0
  %v354 = vadd.f32 %v352, %v353
  %v355 = vsel %vm39, %v346, 0.0
  %v356 = vadd.f32 %v354, %v355
  %v357 = vsel %vm39, %v347, 0.0
  %v358 = vadd.f32 %v356, %v357
  %v359 = vsel %vm39, %v348, 0.0
  %v360 = vadd.f32 %v358, %v359
  %v361 = vsel %vm39, %v349, 0.0
  %v362 = vadd.f32 %v360, %v361
  %v363 = vsel %vm39, %v350, 0.0
  %v364 = vadd.f32 %v362, %v363
  %v365 = vsel %vm39, %v351, 0.0
  %v366 = vadd.f32 %v364, %v365
  %367 = vst.msk [vmem:[%s5] sm:$0xff] %vm39, %v366
  // Predicated region
  $region22: #{hierarchical_attention_forward.6} parent=0 // pred_check
    _
  $region23: #{hierarchical_attention_forward.6} parent=0 // pred_check_branch
    %369 = sbr.rel (0) target = $region25
  $region24: #{hierarchical_attention_forward.6} parent=0 // pred_region
    _
  $region25: #{hierarchical_attention_forward.6} parent=0 // pred_fallthru
    _
  // Predicated region
  $region26: #{hierarchical_attention_forward.6} parent=0 // pred_check
    _
  $region27: #{hierarchical_attention_forward.6} parent=0 // pred_check_branch
    %371 = sbr.rel (0) target = $region29
  $region28: #{hierarchical_attention_forward.6} parent=0 // pred_region
    _
  $region29: #{hierarchical_attention_forward.6} parent=0 // pred_fallthru
    _

// kernel: hierarchical_attention_forward.8
$region0: #{hierarchical_attention_forward.8}
  #allocation0 [shape = 'u32[]', space=smem, size = 0x4, offset = 0x4, fixed_abs, tag = 'smem constant byte address 0x4 - core index']
  #allocation1 [shape = 'u32[144,128]{1,0:T(1,128)}', space=vmem, size = 0x12000, scoped, tag = 'internal scratch']
  %s0 = inlined_call_operand.vmem [shape: f32[4,8,64], index: 0, kind: input, shape index: {}]
  %s1 = inlined_call_operand.vmem [shape: f32[4,8,1], index: 1, kind: input, shape index: {}]
  %s2 = inlined_call_operand.vmem [shape: f32[64,32], index: 2, kind: input, shape index: {}]
  %s3 = inlined_call_operand.vmem [shape: f32[32,32], index: 3, kind: input, shape index: {}]
  %s4 = inlined_call_operand.vmem [shape: f32[1,32], index: 4, kind: input, shape index: {}]
  %s5 = inlined_call_operand.vmem [shape: f32[1,32], index: 5, kind: input, shape index: {}]
  %s6 = inlined_call_operand.vmem [shape: f32[4,8,32], index: 6, kind: output, shape index: {0}]
  %s7 = inlined_call_operand.vmem [shape: f32[8,32], index: 7, kind: output, shape index: {1}]
  %8 = xla_tuple %s6, %s7
  %s9 = sld [smem:[#allocation0]]
  $region42: #{hierarchical_attention_forward.8} parent=0
    _
  %s11 = ssub.s32 1, %s9
  %s12 = scalar_select 0, %s11, %s9
  // Predicated region
  $region2: #{hierarchical_attention_forward.8} parent=0 // pred_check
    _
  $region3: #{hierarchical_attention_forward.8} parent=0 // pred_check_branch
    %14 = sbr.rel (0) target = $region5
  $region4: #{hierarchical_attention_forward.8} parent=0 // pred_region
    _
  $region5: #{hierarchical_attention_forward.8} parent=0 // pred_fallthru
    _
  // Predicated region
  $region6: #{hierarchical_attention_forward.8} parent=0 // pred_check
    _
  $region7: #{hierarchical_attention_forward.8} parent=0 // pred_check_branch
    %16 = sbr.rel (0) target = $region9
  $region8: #{hierarchical_attention_forward.8} parent=0 // pred_region
    _
  $region9: #{hierarchical_attention_forward.8} parent=0 // pred_fallthru
    _
  // Predicated region
  $region10: #{hierarchical_attention_forward.8} parent=0 // pred_check
    _
  $region11: #{hierarchical_attention_forward.8} parent=0 // pred_check_branch
    %18 = sbr.rel (0) target = $region13
  $region12: #{hierarchical_attention_forward.8} parent=0 // pred_region
    _
  $region13: #{hierarchical_attention_forward.8} parent=0 // pred_fallthru
    _
  // Predicated region
  $region14: #{hierarchical_attention_forward.8} parent=0 // pred_check
    _
  $region15: #{hierarchical_attention_forward.8} parent=0 // pred_check_branch
    %20 = sbr.rel (0) target = $region17
  $region16: #{hierarchical_attention_forward.8} parent=0 // pred_region
    _
  $region17: #{hierarchical_attention_forward.8} parent=0 // pred_fallthru
    _
  // Predicated region
  $region18: #{hierarchical_attention_forward.8} parent=0 // pred_check
    _
  $region19: #{hierarchical_attention_forward.8} parent=0 // pred_check_branch
    %22 = sbr.rel (0) target = $region21
  $region20: #{hierarchical_attention_forward.8} parent=0 // pred_region
    _
  $region21: #{hierarchical_attention_forward.8} parent=0 // pred_fallthru
    _
  // Predicated region
  $region22: #{hierarchical_attention_forward.8} parent=0 // pred_check
    _
  $region23: #{hierarchical_attention_forward.8} parent=0 // pred_check_branch
    %24 = sbr.rel (0) target = $region25
  $region24: #{hierarchical_attention_forward.8} parent=0 // pred_region
    _
  $region25: #{hierarchical_attention_forward.8} parent=0 // pred_fallthru
    _
  %v25 = vld [vmem:[%s0] sm:$0xff]
  %v26 = vld [vmem:[%s0 + $0x8] sm:$0xff]
  %v27 = vld [vmem:[%s0 + $0x10] sm:$0xff]
  %v28 = vld [vmem:[%s0 + $0x18] sm:$0xff]
  %v29 = vld [vmem:[%s2] sm:$0xff]
  %v30 = vld [vmem:[%s2 + $0x8] sm:$0xff]
  %v31 = vld [vmem:[%s2 + $0x10] sm:$0xff]
  %v32 = vld [vmem:[%s2 + $0x18] sm:$0xff]
  %v33 = vld [vmem:[%s2 + $0x20] sm:$0xff]
  %v34 = vld [vmem:[%s2 + $0x28] sm:$0xff]
  %v35 = vld [vmem:[%s2 + $0x30] sm:$0xff]
  %v36 = vld [vmem:[%s2 + $0x38] sm:$0xff]
  %vm37 = vcmask 523264
  %v39 = vsel %vm37, %v25, 0
  %v42 = vsel %vm37, %v26, 0
  %v45 = vsel %vm37, %v27, 0
  %v48 = vsel %vm37, %v28, 0
  %50 = vmatprep.subr.mxu0 0.0
  %51 = vmatpush1.msra.mxu0 %v29
  %52 = vmatprep.subr.mxu0 0.0
  %53 = vmatpush1.msra.mxu0 %v30
  %54 = vmatprep.subr.mxu0 0.0
  %55 = vmatpush1.msra.mxu0 %v31
  %56 = vmatprep.subr.mxu0 0.0
  %57 = vmatpush1.msra.mxu0 %v32
  %58 = vmatprep.subr.mxu0 0.0
  %59 = vmatpush1.msra.mxu0 %v33
  %60 = vmatprep.subr.mxu0 0.0
  %61 = vmatpush1.msra.mxu0 %v34
  %62 = vmatprep.subr.mxu0 0.0
  %63 = vmatpush1.msra.mxu0 %v35
  %64 = vmatprep.subr.mxu0 0.0
  %65 = vmatpush1.msra.mxu0 %v36
  %66 = vmatprep.subr.mxu0 0.0
  %67 = vmatpush1.msra.mxu0 0.0
  %68 = vmatprep.subr.mxu0 0.0
  %69 = vmatpush1.msra.mxu0 0.0
  %70 = vmatprep.subr.mxu0 0.0
  %71 = vmatpush1.msra.mxu0 0.0
  %72 = vmatprep.subr.mxu0 0.0
  %73 = vmatpush1.msra.mxu0 0.0
  %74 = vmatprep.subr.mxu0 0.0
  %75 = vmatpush1.msra.mxu0 0.0
  %76 = vmatprep.subr.mxu0 0.0
  %77 = vmatpush1.msra.mxu0 0.0
  %78 = vmatprep.subr.mxu0 0.0
  %79 = vmatpush1.msra.mxu0 0.0
  %80 = vmatprep.subr.mxu0 0.0
  %81 = vmatpush1.msra.mxu0 0.0
  %82 = vmatprep.subr.mxu0 0.0
  %83 = vmatpush1.msra.mxu0 0.0
  %84 = vmatprep.subr.mxu0 0.0
  %85 = vmatpush1.msra.mxu0 0.0
  %86 = vmatprep.subr.mxu0 0.0
  %87 = vmatpush1.msra.mxu0 0.0
  %88 = vmatprep.subr.mxu0 0.0
  %89 = vmatpush1.msra.mxu0 0.0
  %90 = vmatprep.subr.mxu0 0.0
  %91 = vmatpush1.msra.mxu0 0.0
  %92 = vmatprep.subr.mxu0 0.0
  %93 = vmatpush1.msra.mxu0 0.0
  %94 = vmatprep.subr.mxu0 0.0
  %95 = vmatpush1.msra.mxu0 0.0
  %96 = vmatprep.subr.mxu0 0.0
  %97 = vmatpush1.msra.mxu0 0.0
  %98 = vmatprep.subr.mxu0 0.0
  %99 = vmatpush1.msra.mxu0 0.0
  %100 = vmatprep.subr.mxu0 0.0
  %101 = vmatpush1.msra.mxu0 0.0
  %102 = vmatprep.subr.mxu0 0.0
  %103 = vmatpush1.msra.mxu0 0.0
  %104 = vmatprep.subr.mxu0 0.0
  %105 = vmatpush1.msra.mxu0 0.0
  %106 = vmatprep.subr.mxu0 0.0
  %107 = vmatpush1.msra.mxu0 0.0
  %108 = vmatprep.subr.mxu0 0.0
  %109 = vmatpush1.msra.mxu0 0.0
  %110 = vmatprep.subr.mxu0 0.0
  %111 = vmatpush1.msra.mxu0 0.0
  %112 = vmatprep.subr.mxu0 0.0
  %113 = vmatpush1.msra.mxu0 0.0
  %114 = vmatprep.mubr.f32.mxu0 0.0
  %115 = vmatmul.mubr.f32.gmra.mrb[0].mxu0 %v39
  %v116 = vpop.f32.mrb[0].mxu0
  %v117 = vadd.f32 0.0, %v116
  %v118 = vpop.f32.mrb[0].mxu0
  %119 = vmatprep.mubr.f32.mxu0 0.0
  %120 = vmatmul.mubr.f32.gmra.mrb[0].mxu0 %v42
  %v121 = vpop.f32.mrb[0].mxu0
  %v122 = vadd.f32 0.0, %v121
  %v123 = vpop.f32.mrb[0].mxu0
  %124 = vmatprep.mubr.f32.mxu0 0.0
  %125 = vmatmul.mubr.f32.gmra.mrb[0].mxu0 %v45
  %v126 = vpop.f32.mrb[0].mxu0
  %v127 = vadd.f32 0.0, %v126
  %v128 = vpop.f32.mrb[0].mxu0
  %129 = vmatprep.mubr.f32.mxu0 0.0
  %130 = vmatmul.mubr.f32.gmra.mrb[0].mxu0 %v48
  %v131 = vpop.f32.mrb[0].mxu0
  %v132 = vadd.f32 0.0, %v131
  %v133 = vpop.f32.mrb[0].mxu0
  %134 = vdwg.mxu0
  %vm135 = vcmask 261120
  %136 = vst.msk [vmem:[%s6] sm:$0xff] %vm135, %v117
  %137 = vst.msk [vmem:[%s6 + $0x8] sm:$0xff] %vm135, %v122
  %138 = vst.msk [vmem:[%s6 + $0x10] sm:$0xff] %vm135, %v127
  %139 = vst.msk [vmem:[%s6 + $0x18] sm:$0xff] %vm135, %v132
  %v140 = vld [vmem:[%s3] sm:$0xff]
  %v141 = vld [vmem:[%s3 + $0x8] sm:$0xff]
  %v142 = vld [vmem:[%s3 + $0x10] sm:$0xff]
  %v143 = vld [vmem:[%s3 + $0x18] sm:$0xff]
  %v144 = vld [vmem:[%s4] sm:$0x1]
  %v146 = vlaneseq
  %v147 = vshrl.u32 %v146, 7
  %v148 = vsub.s32 0, %v147
  %v149 = vrot.slane %v144, %v148
  %v152 = vsel %vm135, %v117, 0
  %v155 = vsel %vm135, %v122, 0
  %v158 = vsel %vm135, %v127, 0
  %v161 = vsel %vm135, %v132, 0
  %163 = vmatprep.subr.mxu0 0.0
  %164 = vmatpush1.msra.mxu0 %v140
  %165 = vmatprep.subr.mxu0 0.0
  %166 = vmatpush1.msra.mxu0 %v141
  %167 = vmatprep.subr.mxu0 0.0
  %168 = vmatpush1.msra.mxu0 %v142
  %169 = vmatprep.subr.mxu0 0.0
  %170 = vmatpush1.msra.mxu0 %v143
  %171 = vmatprep.subr.mxu0 0.0
  %172 = vmatpush1.msra.mxu0 0.0
  %173 = vmatprep.subr.mxu0 0.0
  %174 = vmatpush1.msra.mxu0 0.0
  %175 = vmatprep.subr.mxu0 0.0
  %176 = vmatpush1.msra.mxu0 0.0
  %177 = vmatprep.subr.mxu0 0.0
  %178 = vmatpush1.msra.mxu0 0.0
  %179 = vmatprep.subr.mxu0 0.0
  %180 = vmatpush1.msra.mxu0 0.0
  %181 = vmatprep.subr.mxu0 0.0
  %182 = vmatpush1.msra.mxu0 0.0
  %183 = vmatprep.subr.mxu0 0.0
  %184 = vmatpush1.msra.mxu0 0.0
  %185 = vmatprep.subr.mxu0 0.0
  %186 = vmatpush1.msra.mxu0 0.0
  %187 = vmatprep.subr.mxu0 0.0
  %188 = vmatpush1.msra.mxu0 0.0
  %189 = vmatprep.subr.mxu0 0.0
  %190 = vmatpush1.msra.mxu0 0.0
  %191 = vmatprep.subr.mxu0 0.0
  %192 = vmatpush1.msra.mxu0 0.0
  %193 = vmatprep.subr.mxu0 0.0
  %194 = vmatpush1.msra.mxu0 0.0
  %195 = vmatprep.subr.mxu0 0.0
  %196 = vmatpush1.msra.mxu0 0.0
  %197 = vmatprep.subr.mxu0 0.0
  %198 = vmatpush1.msra.mxu0 0.0
  %199 = vmatprep.subr.mxu0 0.0
  %200 = vmatpush1.msra.mxu0 0.0
  %201 = vmatprep.subr.mxu0 0.0
  %202 = vmatpush1.msra.mxu0 0.0
  %203 = vmatprep.subr.mxu0 0.0
  %204 = vmatpush1.msra.mxu0 0.0
  %205 = vmatprep.subr.mxu0 0.0
  %206 = vmatpush1.msra.mxu0 0.0
  %207 = vmatprep.subr.mxu0 0.0
  %208 = vmatpush1.msra.mxu0 0.0
  %209 = vmatprep.subr.mxu0 0.0
  %210 = vmatpush1.msra.mxu0 0.0
  %211 = vmatprep.subr.mxu0 0.0
  %212 = vmatpush1.msra.mxu0 0.0
  %213 = vmatprep.subr.mxu0 0.0
  %214 = vmatpush1.msra.mxu0 0.0
  %215 = vmatprep.subr.mxu0 0.0
  %216 = vmatpush1.msra.mxu0 0.0
  %217 = vmatprep.subr.mxu0 0.0
  %218 = vmatpush1.msra.mxu0 0.0
  %219 = vmatprep.subr.mxu0 0.0
  %220 = vmatpush1.msra.mxu0 0.0
  %221 = vmatprep.subr.mxu0 0.0
  %222 = vmatpush1.msra.mxu0 0.0
  %223 = vmatprep.subr.mxu0 0.0
  %224 = vmatpush1.msra.mxu0 0.0
  %225 = vmatprep.subr.mxu0 0.0
  %226 = vmatpush1.msra.mxu0 0.0
  %227 = vmatprep.mubr.f32.mxu0 0.0
  %228 = vmatmul.mubr.f32.gmra.mrb[0].mxu0 %v152
  %v229 = vpop.f32.mrb[0].mxu0
  %v230 = vadd.f32 %v149, %v229
  %v231 = vpop.f32.mrb[0].mxu0
  %232 = vmatprep.mubr.f32.mxu0 0.0
  %233 = vmatmul.mubr.f32.gmra.mrb[0].mxu0 %v155
  %v234 = vpop.f32.mrb[0].mxu0
  %v235 = vadd.f32 %v149, %v234
  %v236 = vpop.f32.mrb[0].mxu0
  %237 = vmatprep.mubr.f32.mxu0 0.0
  %238 = vmatmul.mubr.f32.gmra.mrb[0].mxu0 %v158
  %v239 = vpop.f32.mrb[0].mxu0
  %v240 = vadd.f32 %v149, %v239
  %v241 = vpop.f32.mrb[0].mxu0
  %242 = vmatprep.mubr.f32.mxu0 0.0
  %243 = vmatmul.mubr.f32.gmra.mrb[0].mxu0 %v161
  %v244 = vpop.f32.mrb[0].mxu0
  %v245 = vadd.f32 %v149, %v244
  %v246 = vpop.f32.mrb[0].mxu0
  %247 = vdwg.mxu0
  %v248 = vtanh.pop %v230
  %v249 = vtanh.pop %v235
  %v250 = vtanh.pop %v240
  %v251 = vtanh.pop %v245
  %v252 = vld [vmem:[%s1] sm:$0xff]
  %v253 = vld [vmem:[%s1 + $0x8] sm:$0xff]
  %v254 = vld [vmem:[%s1 + $0x10] sm:$0xff]
  %v255 = vld [vmem:[%s1 + $0x18] sm:$0xff]
  %v256 = vld [vmem:[%s5] sm:$0x1]
  %v258 = vlaneseq
  %v259 = vshrl.u32 %v258, 7
  %v260 = vsub.s32 0, %v259
  %v261 = vrot.slane %v256, %v260
  %v263 = vmul.f32 %v248, %v261
  %v264 = vmul.f32 %v249, %v261
  %v265 = vmul.f32 %v250, %v261
  %v266 = vmul.f32 %v251, %v261
  %v267 = vsel %vm135, %v263, 0.0
  %268 = vadd.xlane.f32.xlu0 %v267
  %v269 = vpop.xlane.xlu0 %268
  %v270 = vsel %vm135, %v264, 0.0
  %271 = vadd.xlane.f32.xlu0 %v270
  %v272 = vpop.xlane.xlu0 %271
  %v273 = vsel %vm135, %v265, 0.0
  %274 = vadd.xlane.f32.xlu0 %v273
  %v275 = vpop.xlane.xlu0 %274
  %v276 = vsel %vm135, %v266, 0.0
  %277 = vadd.xlane.f32.xlu0 %v276
  %v278 = vpop.xlane.xlu0 %277
  %vm279 = vcmp.lt.f32.partialorder %v252, 0.5
  %vm280 = vcmp.lt.f32.partialorder %v253, 0.5
  %vm281 = vcmp.lt.f32.partialorder %v254, 0.5
  %vm282 = vcmp.lt.f32.partialorder %v255, 0.5
  %v283 = vsel %vm279, -1e+09, %v269
  %v284 = vsel %vm280, -1e+09, %v272
  %v285 = vsel %vm281, -1e+09, %v275
  %v286 = vsel %vm282, -1e+09, %v278
  %vm287 = vcmask 7168
  %v288 = vsel %vm287, %v283, -inf
  %v289 = vsel %vm287, %v284, -inf
  %v290 = vsel %vm287, %v285, -inf
  %v291 = vsel %vm287, %v286, -inf
  %v292 = vmax.f32 %v288, %v289
  %v293 = vmax.f32 %v290, %v291
  %v294 = vmax.f32 %v292, %v293
  %v295 = vsub.f32 %v283, %v294
  %v296 = vsub.f32 %v284, %v294
  %v297 = vsub.f32 %v285, %v294
  %v298 = vsub.f32 %v286, %v294
  %v299 = vmul.f32 %v295, 1.442695
  %v300 = vpow.pop %v299
  %v301 = vmul.f32 %v296, 1.442695
  %v302 = vpow.pop %v301
  %v303 = vmul.f32 %v297, 1.442695
  %v304 = vpow.pop %v303
  %v305 = vmul.f32 %v298, 1.442695
  %v306 = vpow.pop %v305
  %v307 = vsel %vm287, %v300, 0.0
  %v308 = vsel %vm287, %v302, 0.0
  %v309 = vadd.f32 %v307, %v308
  %v310 = vsel %vm287, %v304, 0.0
  %v311 = vadd.f32 %v309, %v310
  %v312 = vsel %vm287, %v306, 0.0
  %v313 = vadd.f32 %v311, %v312
  %v314 = vrcp.pop %v313
  %v315 = vmul.f32 %v300, %v314
  %v316 = vmul.f32 %v302, %v314
  %v317 = vmul.f32 %v304, %v314
  %v318 = vmul.f32 %v306, %v314
  %320 = vset.pattern.permute.xlu0 0
  %321 = vperm.xlu0 %320, %v315
  %v322 = vpop.permute.xlu0 %321
  %325 = vset.pattern.permute.xlu0 0
  %326 = vperm.xlu0 %325, %v316
  %v327 = vpop.permute.xlu0 %326
  %330 = vset.pattern.permute.xlu0 0
  %331 = vperm.xlu0 %330, %v317
  %v332 = vpop.permute.xlu0 %331
  %335 = vset.pattern.permute.xlu0 0
  %336 = vperm.xlu0 %335, %v318
  %v337 = vpop.permute.xlu0 %336
  %v339 = vmul.f32 %v322, %v117
  %v340 = vmul.f32 %v327, %v122
  %v341 = vmul.f32 %v332, %v127
  %v342 = vmul.f32 %v337, %v132
  %v343 = vsel %vm135, %v339, 0.0
  %v344 = vsel %vm135, %v340, 0.0
  %v345 = vadd.f32 %v343, %v344
  %v346 = vsel %vm135, %v341, 0.0
  %v347 = vadd.f32 %v345, %v346
  %v348 = vsel %vm135, %v342, 0.0
  %v349 = vadd.f32 %v347, %v348
  %350 = vst.msk [vmem:[%s7] sm:$0xff] %vm135, %v349
  // Predicated region
  $region26: #{hierarchical_attention_forward.8} parent=0 // pred_check
    _
  $region27: #{hierarchical_attention_forward.8} parent=0 // pred_check_branch
    %352 = sbr.rel (0) target = $region29
  $region28: #{hierarchical_attention_forward.8} parent=0 // pred_region
    _
  $region29: #{hierarchical_attention_forward.8} parent=0 // pred_fallthru
    _
  // Predicated region
  $region30: #{hierarchical_attention_forward.8} parent=0 // pred_check
    _
  $region31: #{hierarchical_attention_forward.8} parent=0 // pred_check_branch
    %354 = sbr.rel (0) target = $region33
  $region32: #{hierarchical_attention_forward.8} parent=0 // pred_region
    _
  $region33: #{hierarchical_attention_forward.8} parent=0 // pred_fallthru
    _
  // Predicated region
  $region34: #{hierarchical_attention_forward.8} parent=0 // pred_check
    _
  $region35: #{hierarchical_attention_forward.8} parent=0 // pred_check_branch
    %356 = sbr.rel (0) target = $region37
  $region36: #{hierarchical_attention_forward.8} parent=0 // pred_region
    _
  $region37: #{hierarchical_attention_forward.8} parent=0 // pred_fallthru
    _
  // Predicated region
  $region38: #{hierarchical_attention_forward.8} parent=0 // pred_check
    _
  $region39: #{hierarchical_attention_forward.8} parent=0 // pred_check_branch
    %358 = sbr.rel (0) target = $region41
  $region40: #{hierarchical_attention_forward.8} parent=0 // pred_region
    _
  $region41: #{hierarchical_attention_forward.8} parent=0 // pred_fallthru
    _

// kernel: hierarchical_attention_forward.7
$region0: #{hierarchical_attention_forward.7}
  #allocation0 [shape = 'u32[]', space=smem, size = 0x4, offset = 0x4, fixed_abs, tag = 'smem constant byte address 0x4 - core index']
  #allocation1 [shape = 'u32[144,128]{1,0:T(1,128)}', space=vmem, size = 0x12000, scoped, tag = 'internal scratch']
  #allocation2 [shape = 'f32[8,128]{1,0:T(8,128)}', space=vmem, size = 0x1000, scoped, tag = 'scratch operand']
  #allocation3 [shape = 'f32[2,32]{1,0:T(2,128)}', space=vmem, size = 0x400, scoped, tag = 'scratch operand']
  #allocation4 [shape = 'f32[2,32]{1,0:T(2,128)}', space=vmem, size = 0x400, scoped, tag = 'scratch operand']
  %s0 = inlined_call_operand.hbm [shape: f32[8,32], index: 0, kind: input, shape index: {}]
  %s1 = inlined_call_operand.hbm [shape: f32[4,2,1], index: 1, kind: input, shape index: {}]
  %s2 = inlined_call_operand.hbm [shape: f32[2,32,128], index: 2, kind: input, shape index: {}]
  %s3 = inlined_call_operand.hbm [shape: f32[2,32,128], index: 3, kind: input, shape index: {}]
  %s4 = inlined_call_operand.hbm [shape: f32[2,1,128], index: 4, kind: input, shape index: {}]
  %s5 = inlined_call_operand.hbm [shape: f32[2,4,2,32], index: 5, kind: output, shape index: {}]
  %s6 = sld [smem:[#allocation0]]
  $region73: #{hierarchical_attention_forward.7} parent=0
    _
  %s8 = ssub.s32 1, %s6
  %s9 = scalar_select 0, %s8, %s6
  $region1: #{hierarchical_attention_forward.7} parent=0
    #allocation5 [shape = 'u8[4096]{0}', space=vmem, size = 0x1000, scoped, tag = 'input window, operand 0, single buffered']
    #allocation6 [shape = 's32[2]{0}', space=sflag, size = 0x8, scoped, tag = 'scoped memory for hierarchical_attention_forward.7']
    #allocation7 [shape = 's32[2]{0}', space=sflag, size = 0x8, scoped, tag = 'scoped memory for hierarchical_attention_forward.7']
    #allocation8 [shape = 'u8[4096]{0}', space=vmem, size = 0x1000, scoped, tag = 'input window, operand 1, single buffered']
    #allocation9 [shape = 's32[1]{0}', space=sflag, size = 0x4, scoped, tag = 'scoped memory for hierarchical_attention_forward.7']
    #allocation10 [shape = 'u8[32768]{0}', space=vmem, size = 0x8000, scoped, tag = 'input window, operand 2']
    #allocation11 [shape = 'u8[32768]{0}', space=vmem, size = 0x8000, scoped, tag = 'input window, operand 3']
    #allocation12 [shape = 'u8[1024]{0}', space=vmem, size = 0x400, scoped, tag = 'input window, operand 4']
    #allocation13 [shape = 'u8[8192]{0}', space=vmem, size = 0x2000, scoped, tag = 'output window, operand 0']
    %10 = vsyncpa [#allocation6], 0
    %11 = vsyncpa [#allocation9], 0
    %12 = vsyncpa [#allocation7], 0
    %s13 = scalar_lea.sflag [#allocation7], 1
    %14 = vsyncpa %s13, 0
    loop: start=0, step=1, limit=4
    $region2: #{hierarchical_attention_forward.7} parent=1 // loop_pre_header
      _
    $region3: #{hierarchical_attention_forward.7} parent=1 // loop_header
      %s16 = sphi 0, %s20
      %p17 = scmp.ge.s32.totalorder %s16, 4
      %s24 = sphi 0, %s24
      %s26 = sphi 0, %s24
      %s27 = sphi 0, %s26
      %s41 = sphi 0, %s27
      %s45 = sphi 0, %s45
      %s47 = sphi 0, %s45
      %s48 = sphi 0, %s47
      %s62 = sphi 0, %s48
      %s68 = sphi 0, %s70
      %s71 = sphi 0, %s68
      %s72 = sphi 0, %s71
      %s88 = sphi 0, %s72
      %s94 = sphi 0, %s96
      %s97 = sphi 0, %s94
      %s98 = sphi 0, %s97
      %s114 = sphi 0, %s98
      %s120 = sphi 0, %s122
      %s123 = sphi 0, %s120
      %s124 = sphi 0, %s123
      %s140 = sphi 0, %s124
      %s146 = sphi 0, %s148
      %s149 = sphi 0, %s146
      %s150 = sphi 0, %s149
      %s166 = sphi 0, %s150
    $region4: #{hierarchical_attention_forward.7} parent=1 // loop_header_branch
      %19 = sbr.rel (%p17) target = $region8
    $region5: #{hierarchical_attention_forward.7} parent=1 // loop_body
      %s21 = ssub.s32 %s16, 1
      %s22 = ssub.s32 %s16, 2
      %s23 = sadd.s32 %s16, 1
      %s25 = sadd.s32 %s24, 1
      %p28 = scmp.eq.s32.totalorder %s16, 1
      %p29 = scmp.ne.s32.totalorder %s24, %s26
      %p30 = scmp.eq.s32.totalorder %s16, 0
      %p31 = por %p29, %p30
      %p32 = scmp.ne.s32.totalorder %s24, %s26
      %p33 = scmp.eq.s32.totalorder %s21, 1
      %p34 = por %p32, %p33
      %p35 = scmp.ne.s32.totalorder %s26, %s27
      %p36 = scmp.eq.s32.totalorder %s21, 0
      %p37 = por %p35, %p36
      %p38 = scmp.ne.s32.totalorder %s26, %s27
      %p39 = scmp.eq.s32.totalorder %s22, 1
      %p40 = por %p38, %p39
      %p42 = scmp.ne.s32.totalorder %s27, %s41
      %p43 = scmp.eq.s32.totalorder %s22, 0
      %p44 = por %p42, %p43
      %s46 = sadd.s32 %s45, 1
      %p49 = scmp.eq.s32.totalorder %s16, 1
      %p50 = scmp.ne.s32.totalorder %s45, %s47
      %p51 = scmp.eq.s32.totalorder %s16, 0
      %p52 = por %p50, %p51
      %p53 = scmp.ne.s32.totalorder %s45, %s47
      %p54 = scmp.eq.s32.totalorder %s21, 1
      %p55 = por %p53, %p54
      %p56 = scmp.ne.s32.totalorder %s47, %s48
      %p57 = scmp.eq.s32.totalorder %s21, 0
      %p58 = por %p56, %p57
      %p59 = scmp.ne.s32.totalorder %s47, %s48
      %p60 = scmp.eq.s32.totalorder %s22, 1
      %p61 = por %p59, %p60
      %p63 = scmp.ne.s32.totalorder %s48, %s62
      %p64 = scmp.eq.s32.totalorder %s22, 0
      %p65 = por %p63, %p64
      %s66 = ssub.s32 %s16, %s23
      %p67 = scmp.eq.s32.totalorder %s66, 0
      %s69 = sadd.s32 %s68, 1
      %s70 = scalar_select %p67, %s68, %s69
      %p73 = pneg %p67
      %p74 = scmp.eq.s32.totalorder %s16, 1
      %p75 = por %p73, %p74
      %p76 = scmp.ne.s32.totalorder %s68, %s71
      %p77 = scmp.eq.s32.totalorder %s16, 0
      %p78 = por %p76, %p77
      %p79 = scmp.ne.s32.totalorder %s68, %s71
      %p80 = scmp.eq.s32.totalorder %s21, 1
      %p81 = por %p79, %p80
      %p82 = scmp.ne.s32.totalorder %s71, %s72
      %p83 = scmp.eq.s32.totalorder %s21, 0
      %p84 = por %p82, %p83
      %p85 = scmp.ne.s32.totalorder %s71, %s72
      %p86 = scmp.eq.s32.totalorder %s22, 1
      %p87 = por %p85, %p86
      %p89 = scmp.ne.s32.totalorder %s72, %s88
      %p90 = scmp.eq.s32.totalorder %s22, 0
      %p91 = por %p89, %p90
      %s92 = ssub.s32 %s16, %s23
      %p93 = scmp.eq.s32.totalorder %s92, 0
      %s95 = sadd.s32 %s94, 1
      %s96 = scalar_select %p93, %s94, %s95
      %p99 = pneg %p93
      %p100 = scmp.eq.s32.totalorder %s16, 1
      %p101 = por %p99, %p100
      %p102 = scmp.ne.s32.totalorder %s94, %s97
      %p103 = scmp.eq.s32.totalorder %s16, 0
      %p104 = por %p102, %p103
      %p105 = scmp.ne.s32.totalorder %s94, %s97
      %p106 = scmp.eq.s32.totalorder %s21, 1
      %p107 = por %p105, %p106
      %p108 = scmp.ne.s32.totalorder %s97, %s98
      %p109 = scmp.eq.s32.totalorder %s21, 0
      %p110 = por %p108, %p109
      %p111 = scmp.ne.s32.totalorder %s97, %s98
      %p112 = scmp.eq.s32.totalorder %s22, 1
      %p113 = por %p111, %p112
      %p115 = scmp.ne.s32.totalorder %s98, %s114
      %p116 = scmp.eq.s32.totalorder %s22, 0
      %p117 = por %p115, %p116
      %s118 = ssub.s32 %s16, %s23
      %p119 = scmp.eq.s32.totalorder %s118, 0
      %s121 = sadd.s32 %s120, 1
      %s122 = scalar_select %p119, %s120, %s121
      %p125 = pneg %p119
      %p126 = scmp.eq.s32.totalorder %s16, 1
      %p127 = por %p125, %p126
      %p128 = scmp.ne.s32.totalorder %s120, %s123
      %p129 = scmp.eq.s32.totalorder %s16, 0
      %p130 = por %p128, %p129
      %p131 = scmp.ne.s32.totalorder %s120, %s123
      %p132 = scmp.eq.s32.totalorder %s21, 1
      %p133 = por %p131, %p132
      %p134 = scmp.ne.s32.totalorder %s123, %s124
      %p135 = scmp.eq.s32.totalorder %s21, 0
      %p136 = por %p134, %p135
      %p137 = scmp.ne.s32.totalorder %s123, %s124
      %p138 = scmp.eq.s32.totalorder %s22, 1
      %p139 = por %p137, %p138
      %p141 = scmp.ne.s32.totalorder %s124, %s140
      %p142 = scmp.eq.s32.totalorder %s22, 0
      %p143 = por %p141, %p142
      %s144 = ssub.s32 %s16, %s23
      %p145 = scmp.eq.s32.totalorder %s144, 0
      %s147 = sadd.s32 %s146, 1
      %s148 = scalar_select %p145, %s146, %s147
      %p151 = pneg %p145
      %p152 = scmp.eq.s32.totalorder %s16, 1
      %p153 = por %p151, %p152
      %p154 = scmp.ne.s32.totalorder %s146, %s149
      %p155 = scmp.eq.s32.totalorder %s16, 0
      %p156 = por %p154, %p155
      %p157 = scmp.ne.s32.totalorder %s146, %s149
      %p158 = scmp.eq.s32.totalorder %s21, 1
      %p159 = por %p157, %p158
      %p160 = scmp.ne.s32.totalorder %s149, %s150
      %p161 = scmp.eq.s32.totalorder %s21, 0
      %p162 = por %p160, %p161
      %p163 = scmp.ne.s32.totalorder %s149, %s150
      %p164 = scmp.eq.s32.totalorder %s22, 1
      %p165 = por %p163, %p164
      %p167 = scmp.ne.s32.totalorder %s150, %s166
      %p168 = scmp.eq.s32.totalorder %s22, 0
      %p169 = por %p167, %p168
      %p170 = scmp.le.s32.totalorder 1, %s16
      %p171 = scmp.lt.s32.totalorder %s16, 3
      %p172 = pnand %p170, %p171
      %p173 = pneg %p172
      // Predicated region
      $region9: #{hierarchical_attention_forward.7} parent=5 // pred_check
        _
      $region10: #{hierarchical_attention_forward.7} parent=5 // pred_check_branch
        %175 = sbr.rel (%p172) target = $region12
      $region11: #{hierarchical_attention_forward.7} parent=5 // pred_region
        %s176 = ssub.s32 %s16, 1
        // Predicated region
        $region13: #{hierarchical_attention_forward.7} parent=11 // pred_check
          %p177 = pneg %p37
        $region14: #{hierarchical_attention_forward.7} parent=11 // pred_check_branch
          %179 = sbr.rel (%p177) target = $region16
        $region15: #{hierarchical_attention_forward.7} parent=11 // pred_region
          %s181 = ssub.s32 128, 128
          %182 = vsyncadd [#allocation6], %s181
          %s184 = sshll.u32 [#allocation5], 4
          %s185 = int_to_ptr.vmem [resolvable:$true] %s184
          %187 = dma.hbm_to_vmem [thread:$0]  %s0, 128, %s185, [#allocation6]
        $region16: #{hierarchical_attention_forward.7} parent=11 // pred_fallthru
          _
        // Predicated region
        $region17: #{hierarchical_attention_forward.7} parent=11 // pred_check
          %p188 = pneg %p58
        $region18: #{hierarchical_attention_forward.7} parent=11 // pred_check_branch
          %190 = sbr.rel (%p188) target = $region20
        $region19: #{hierarchical_attention_forward.7} parent=11 // pred_region
          %s192 = ssub.s32 128, 128
          %193 = vsyncadd [#allocation9], %s192
          %s194 = sshll.u32 [#allocation8], 4
          %s195 = int_to_ptr.vmem [resolvable:$true] %s194
          %200 = dma.hbm_to_vmem [thread:$0]  %s1, 128, %s195, [#allocation9], 32, 32, 2
        $region20: #{hierarchical_attention_forward.7} parent=11 // pred_fallthru
          _
      $region12: #{hierarchical_attention_forward.7} parent=5 // pred_fallthru
        _
      %p201 = scmp.lt.s32.totalorder %s16, 2
      // Predicated region
      $region21: #{hierarchical_attention_forward.7} parent=5 // pred_check
        %p202 = pneg %p201
      $region22: #{hierarchical_attention_forward.7} parent=5 // pred_check_branch
        %204 = sbr.rel (%p202) target = $region24
      $region23: #{hierarchical_attention_forward.7} parent=5 // pred_region
        // Predicated region
        $region25: #{hierarchical_attention_forward.7} parent=23 // pred_check
          %p205 = pneg %p78
        $region26: #{hierarchical_attention_forward.7} parent=23 // pred_check_branch
          %207 = sbr.rel (%p205) target = $region28
        $region27: #{hierarchical_attention_forward.7} parent=23 // pred_region
          %s208 = sand.u32 %s16, 1
          %s209 = scalar_lea.sflag [#allocation6], %s208
          %s210 = sand.u32 %s68, 1
          %s211 = smul.addr %s210, 32
          %s212 = scalar_lea.vmem [#allocation10], %s211
          %s214 = ssub.s32 512, 512
          %215 = vsyncadd %s209, %s214
          %s216 = smul.addr %s16, 4
          %s217 = smul.addr %s216, 128
          %s218 = scalar_lea.hbm %s2, %s217
          %s219 = sshll.u32 %s212, 4
          %s220 = int_to_ptr.vmem [resolvable:$true] %s219
          %225 = dma.hbm_to_vmem [thread:$0]  %s218, 512, %s220, %s209, 128, 128, 8
        $region28: #{hierarchical_attention_forward.7} parent=23 // pred_fallthru
          _
        // Predicated region
        $region29: #{hierarchical_attention_forward.7} parent=23 // pred_check
          %p226 = pneg %p104
        $region30: #{hierarchical_attention_forward.7} parent=23 // pred_check_branch
          %228 = sbr.rel (%p226) target = $region32
        $region31: #{hierarchical_attention_forward.7} parent=23 // pred_region
          %s229 = sand.u32 %s16, 1
          %s230 = scalar_lea.sflag [#allocation6], %s229
          %s231 = sand.u32 %s94, 1
          %s232 = smul.addr %s231, 32
          %s233 = scalar_lea.vmem [#allocation11], %s232
          %s235 = ssub.s32 512, 512
          %236 = vsyncadd %s230, %s235
          %s237 = smul.addr %s16, 4
          %s238 = smul.addr %s237, 128
          %s239 = scalar_lea.hbm %s3, %s238
          %s240 = sshll.u32 %s233, 4
          %s241 = int_to_ptr.vmem [resolvable:$true] %s240
          %246 = dma.hbm_to_vmem [thread:$0]  %s239, 512, %s241, %s230, 128, 128, 8
        $region32: #{hierarchical_attention_forward.7} parent=23 // pred_fallthru
          _
        // Predicated region
        $region33: #{hierarchical_attention_forward.7} parent=23 // pred_check
          %p247 = pneg %p130
        $region34: #{hierarchical_attention_forward.7} parent=23 // pred_check_branch
          %249 = sbr.rel (%p247) target = $region36
        $region35: #{hierarchical_attention_forward.7} parent=23 // pred_region
          %s250 = sand.u32 %s16, 1
          %s251 = scalar_lea.sflag [#allocation6], %s250
          %s252 = sand.u32 %s120, 1
          %s253 = scalar_lea.vmem [#allocation12], %s252
          %s255 = ssub.s32 16, 16
          %256 = vsyncadd %s251, %s255
          %s257 = smul.addr %s16, 16
          %s258 = scalar_lea.hbm %s4, %s257
          %s260 = sshll.u32 %s253, 4
          %s261 = int_to_ptr.vmem [resolvable:$true] %s260
          %263 = dma.hbm_to_vmem [thread:$0]  %s258, 16, %s261, %s251
        $region36: #{hierarchical_attention_forward.7} parent=23 // pred_fallthru
          _
      $region24: #{hierarchical_attention_forward.7} parent=5 // pred_fallthru
        _
      %p264 = scmp.le.s32.totalorder 1, %s16
      %p265 = scmp.lt.s32.totalorder %s16, 3
      %p266 = pnand %p264, %p265
      %p267 = pneg %p266
      // Predicated region
      $region37: #{hierarchical_attention_forward.7} parent=5 // pred_check
        _
      $region38: #{hierarchical_attention_forward.7} parent=5 // pred_check_branch
        %269 = sbr.rel (%p266) target = $region40
      $region39: #{hierarchical_attention_forward.7} parent=5 // pred_region
        %s270 = ssub.s32 %s16, 1
        // Predicated region
        $region41: #{hierarchical_attention_forward.7} parent=39 // pred_check
          %p271 = pneg %p37
        $region42: #{hierarchical_attention_forward.7} parent=39 // pred_check_branch
          %273 = sbr.rel (%p271) target = $region44
        $region43: #{hierarchical_attention_forward.7} parent=39 // pred_region
          %274 = dma.done [#allocation6], 128
        $region44: #{hierarchical_attention_forward.7} parent=39 // pred_fallthru
          _
        // Predicated region
        $region45: #{hierarchical_attention_forward.7} parent=39 // pred_check
          %p275 = pneg %p58
        $region46: #{hierarchical_attention_forward.7} parent=39 // pred_check_branch
          %277 = sbr.rel (%p275) target = $region48
        $region47: #{hierarchical_attention_forward.7} parent=39 // pred_region
          %278 = dma.done [#allocation9], 128
        $region48: #{hierarchical_attention_forward.7} parent=39 // pred_fallthru
          _
        %s279 = sand.u32 %s21, 1
        %s280 = scalar_lea.sflag [#allocation6], %s279
        %s281 = sand.u32 %s71, 1
        %s282 = smul.addr %s281, 32
        %s283 = scalar_lea.vmem [#allocation10], %s282
        // Predicated region
        $region49: #{hierarchical_attention_forward.7} parent=39 // pred_check
          %p284 = pneg %p84
        $region50: #{hierarchical_attention_forward.7} parent=39 // pred_check_branch
          %286 = sbr.rel (%p284) target = $region52
        $region51: #{hierarchical_attention_forward.7} parent=39 // pred_region
          %287 = dma.done %s280, 512
        $region52: #{hierarchical_attention_forward.7} parent=39 // pred_fallthru
          _
        %s288 = sand.u32 %s21, 1
        %s289 = scalar_lea.sflag [#allocation6], %s288
        %s290 = sand.u32 %s97, 1
        %s291 = smul.addr %s290, 32
        %s292 = scalar_lea.vmem [#allocation11], %s291
        // Predicated region
        $region53: #{hierarchical_attention_forward.7} parent=39 // pred_check
          %p293 = pneg %p110
        $region54: #{hierarchical_attention_forward.7} parent=39 // pred_check_branch
          %295 = sbr.rel (%p293) target = $region56
        $region55: #{hierarchical_attention_forward.7} parent=39 // pred_region
          %296 = dma.done %s289, 512
        $region56: #{hierarchical_attention_forward.7} parent=39 // pred_fallthru
          _
        %s297 = sand.u32 %s21, 1
        %s298 = scalar_lea.sflag [#allocation6], %s297
        %s299 = sand.u32 %s123, 1
        %s300 = scalar_lea.vmem [#allocation12], %s299
        // Predicated region
        $region57: #{hierarchical_attention_forward.7} parent=39 // pred_check
          %p301 = pneg %p136
        $region58: #{hierarchical_attention_forward.7} parent=39 // pred_check_branch
          %303 = sbr.rel (%p301) target = $region60
        $region59: #{hierarchical_attention_forward.7} parent=39 // pred_region
          %304 = dma.done %s298, 16
        $region60: #{hierarchical_attention_forward.7} parent=39 // pred_fallthru
          _
        %p305 = pneg %p37
        %p306 = pneg %p34
        %p307 = pneg %p58
        %p308 = pneg %p55
        %s309 = sand.u32 %s21, 1
        %s310 = scalar_lea.sflag [#allocation6], %s309
        %s311 = sand.u32 %s71, 1
        %s312 = smul.addr %s311, 32
        %s313 = scalar_lea.vmem [#allocation10], %s312
        %p314 = pneg %p84
        %p315 = pneg %p81
        %s316 = sand.u32 %s21, 1
        %s317 = scalar_lea.sflag [#allocation6], %s316
        %s318 = sand.u32 %s97, 1
        %s319 = smul.addr %s318, 32
        %s320 = scalar_lea.vmem [#allocation11], %s319
        %p321 = pneg %p110
        %p322 = pneg %p107
        %s323 = sand.u32 %s21, 1
        %s324 = scalar_lea.sflag [#allocation6], %s323
        %s325 = sand.u32 %s123, 1
        %s326 = scalar_lea.vmem [#allocation12], %s325
        %p327 = pneg %p136
        %p328 = pneg %p133
        %p329 = pneg %p162
        %p330 = pneg %p159
        %s331 = sand.u32 %s149, 1
        %s332 = scalar_lea.sflag [#allocation7], %s331
        %s333 = sand.u32 %s149, 1
        %s334 = smul.addr %s333, 8
        %s335 = scalar_lea.vmem [#allocation13], %s334
        %v336 = vld [vmem:[#allocation5] sm:$0xff]
        %v337 = vld [vmem:[%s283] sm:$0xff]
        %v338 = vld [vmem:[%s283 + $0x8] sm:$0xff]
        %v339 = vld [vmem:[%s283 + $0x10] sm:$0xff]
        %v340 = vld [vmem:[%s283 + $0x18] sm:$0xff]
        %v341 = vld [vmem:[%s300] sm:$0x1]
        %v343 = vlaneseq
        %v344 = vshrl.u32 %v343, 7
        %v345 = vsub.s32 0, %v344
        %v346 = vrot.slane %v341, %v345
        %vm348 = vcmask 261120
        %v350 = vsel %vm348, %v336, 0
        %352 = vmatprep.subr.mxu0 0.0
        %353 = vmatpush1.msra.mxu0 %v337
        %354 = vmatprep.subr.mxu0 0.0
        %355 = vmatpush1.msra.mxu0 %v338
        %356 = vmatprep.subr.mxu0 0.0
        %357 = vmatpush1.msra.mxu0 %v339
        %358 = vmatprep.subr.mxu0 0.0
        %359 = vmatpush1.msra.mxu0 %v340
        %360 = vmatprep.subr.mxu0 0.0
        %361 = vmatpush1.msra.mxu0 0.0
        %362 = vmatprep.subr.mxu0 0.0
        %363 = vmatpush1.msra.mxu0 0.0
        %364 = vmatprep.subr.mxu0 0.0
        %365 = vmatpush1.msra.mxu0 0.0
        %366 = vmatprep.subr.mxu0 0.0
        %367 = vmatpush1.msra.mxu0 0.0
        %368 = vmatprep.subr.mxu0 0.0
        %369 = vmatpush1.msra.mxu0 0.0
        %370 = vmatprep.subr.mxu0 0.0
        %371 = vmatpush1.msra.mxu0 0.0
        %372 = vmatprep.subr.mxu0 0.0
        %373 = vmatpush1.msra.mxu0 0.0
        %374 = vmatprep.subr.mxu0 0.0
        %375 = vmatpush1.msra.mxu0 0.0
        %376 = vmatprep.subr.mxu0 0.0
        %377 = vmatpush1.msra.mxu0 0.0
        %378 = vmatprep.subr.mxu0 0.0
        %379 = vmatpush1.msra.mxu0 0.0
        %380 = vmatprep.subr.mxu0 0.0
        %381 = vmatpush1.msra.mxu0 0.0
        %382 = vmatprep.subr.mxu0 0.0
        %383 = vmatpush1.msra.mxu0 0.0
        %384 = vmatprep.subr.mxu0 0.0
        %385 = vmatpush1.msra.mxu0 0.0
        %386 = vmatprep.subr.mxu0 0.0
        %387 = vmatpush1.msra.mxu0 0.0
        %388 = vmatprep.subr.mxu0 0.0
        %389 = vmatpush1.msra.mxu0 0.0
        %390 = vmatprep.subr.mxu0 0.0
        %391 = vmatpush1.msra.mxu0 0.0
        %392 = vmatprep.subr.mxu0 0.0
        %393 = vmatpush1.msra.mxu0 0.0
        %394 = vmatprep.subr.mxu0 0.0
        %395 = vmatpush1.msra.mxu0 0.0
        %396 = vmatprep.subr.mxu0 0.0
        %397 = vmatpush1.msra.mxu0 0.0
        %398 = vmatprep.subr.mxu0 0.0
        %399 = vmatpush1.msra.mxu0 0.0
        %400 = vmatprep.subr.mxu0 0.0
        %401 = vmatpush1.msra.mxu0 0.0
        %402 = vmatprep.subr.mxu0 0.0
        %403 = vmatpush1.msra.mxu0 0.0
        %404 = vmatprep.subr.mxu0 0.0
        %405 = vmatpush1.msra.mxu0 0.0
        %406 = vmatprep.subr.mxu0 0.0
        %407 = vmatpush1.msra.mxu0 0.0
        %408 = vmatprep.subr.mxu0 0.0
        %409 = vmatpush1.msra.mxu0 0.0
        %410 = vmatprep.subr.mxu0 0.0
        %411 = vmatpush1.msra.mxu0 0.0
        %412 = vmatprep.subr.mxu0 0.0
        %413 = vmatpush1.msra.mxu0 0.0
        %414 = vmatprep.subr.mxu0 0.0
        %415 = vmatpush1.msra.mxu0 0.0
        %416 = vmatprep.mubr.f32.mxu0 0.0
        %417 = vmatmul.mubr.f32.gmra.mrb[0].mxu0 %v350
        %v418 = vpop.f32.mrb[0].mxu0
        %v419 = vadd.f32 %v346, %v418
        %v420 = vpop.f32.mrb[0].mxu0
        %421 = vdwg.mxu0
        %422 = vst [vmem:[#allocation2] sm:$0xff] %v419
        %vm423 = vcmask 254976
        %424 = vst.msk [vmem:[#allocation3] sm:$0x3] %vm423, 0.0
        %425 = vst.msk [vmem:[#allocation4] sm:$0x3] %vm423, 0.0
        %p426 = scmp.eq.s32.totalorder %s21, 0
        %s427 = scalar_select %p426, 0, 3
        %s428 = smul.u32 %s427, 2
        %s429 = scalar_lea.vmem [#allocation8], %s428
        %v430 = vld [vmem:[%s429] sm:$0x3]
        %s431 = scalar_lea.vmem [#allocation2], %s428
        %v432 = vld [vmem:[%s431] sm:$0x3]
        %v433 = vld [vmem:[#allocation3] sm:$0x3]
        %v434 = vld [vmem:[%s292] sm:$0xff]
        %v435 = vld [vmem:[%s292 + $0x8] sm:$0xff]
        %v436 = vld [vmem:[%s292 + $0x10] sm:$0xff]
        %v437 = vld [vmem:[%s292 + $0x18] sm:$0xff]
        %v439 = vsel %vm348, %v433, 0
        %441 = vmatprep.subr.mxu0 0.0
        %442 = vmatpush1.msra.mxu0 %v434
        %443 = vmatprep.subr.mxu0 0.0
        %444 = vmatpush1.msra.mxu0 %v435
        %445 = vmatprep.subr.mxu0 0.0
        %446 = vmatpush1.msra.mxu0 %v436
        %447 = vmatprep.subr.mxu0 0.0
        %448 = vmatpush1.msra.mxu0 %v437
        %449 = vmatprep.subr.mxu0 0.0
        %450 = vmatpush1.msra.mxu0 0.0
        %451 = vmatprep.subr.mxu0 0.0
        %452 = vmatpush1.msra.mxu0 0.0
        %453 = vmatprep.subr.mxu0 0.0
        %454 = vmatpush1.msra.mxu0 0.0
        %455 = vmatprep.subr.mxu0 0.0
        %456 = vmatpush1.msra.mxu0 0.0
        %457 = vmatprep.subr.mxu0 0.0
        %458 = vmatpush1.msra.mxu0 0.0
        %459 = vmatprep.subr.mxu0 0.0
        %460 = vmatpush1.msra.mxu0 0.0
        %461 = vmatprep.subr.mxu0 0.0
        %462 = vmatpush1.msra.mxu0 0.0
        %463 = vmatprep.subr.mxu0 0.0
        %464 = vmatpush1.msra.mxu0 0.0
        %465 = vmatprep.subr.mxu0 0.0
        %466 = vmatpush1.msra.mxu0 0.0
        %467 = vmatprep.subr.mxu0 0.0
        %468 = vmatpush1.msra.mxu0 0.0
        %469 = vmatprep.subr.mxu0 0.0
        %470 = vmatpush1.msra.mxu0 0.0
        %471 = vmatprep.subr.mxu0 0.0
        %472 = vmatpush1.msra.mxu0 0.0
        %473 = vmatprep.subr.mxu0 0.0
        %474 = vmatpush1.msra.mxu0 0.0
        %475 = vmatprep.subr.mxu0 0.0
        %476 = vmatpush1.msra.mxu0 0.0
        %477 = vmatprep.subr.mxu0 0.0
        %478 = vmatpush1.msra.mxu0 0.0
        %479 = vmatprep.subr.mxu0 0.0
        %480 = vmatpush1.msra.mxu0 0.0
        %481 = vmatprep.subr.mxu0 0.0
        %482 = vmatpush1.msra.mxu0 0.0
        %483 = vmatprep.subr.mxu0 0.0
        %484 = vmatpush1.msra.mxu0 0.0
        %485 = vmatprep.subr.mxu0 0.0
        %486 = vmatpush1.msra.mxu0 0.0
        %487 = vmatprep.subr.mxu0 0.0
        %488 = vmatpush1.msra.mxu0 0.0
        %489 = vmatprep.subr.mxu0 0.0
        %490 = vmatpush1.msra.mxu0 0.0
        %491 = vmatprep.subr.mxu0 0.0
        %492 = vmatpush1.msra.mxu0 0.0
        %493 = vmatprep.subr.mxu0 0.0
        %494 = vmatpush1.msra.mxu0 0.0
        %495 = vmatprep.subr.mxu0 0.0
        %496 = vmatpush1.msra.mxu0 0.0
        %497 = vmatprep.subr.mxu0 0.0
        %498 = vmatpush1.msra.mxu0 0.0
        %499 = vmatprep.subr.mxu0 0.0
        %500 = vmatpush1.msra.mxu0 0.0
        %501 = vmatprep.subr.mxu0 0.0
        %502 = vmatpush1.msra.mxu0 0.0
        %503 = vmatprep.subr.mxu0 0.0
        %504 = vmatpush1.msra.mxu0 0.0
        %505 = vmatprep.mubr.f32.mxu0 0.0
        %506 = vmatmul.mubr.f32.gmra.mrb[0].mxu0 %v439
        %v507 = vpop.f32.mrb[0].mxu0
        %v508 = vadd.f32 0.0, %v507
        %v509 = vpop.f32.mrb[0].mxu0
        %510 = vdwg.mxu0
        %v511 = vadd.f32 %v432, %v508
        %v512 = vmul.f32 %v511, 0.5
        %v513 = vtanh.pop %v512
        %v514 = vadd.f32 %v513, 1.0
        %v515 = vmul.f32 %v514, 0.5
        %v516 = vtanh.pop %v511
        %v517 = vld [vmem:[#allocation4] sm:$0x3]
        %519 = vrot.lane.b32.xlu0 %v517, 32
        %v520 = vpop.permute.xlu0 %519
        %v522 = vmul.f32 %v515, %v520
        %524 = vrot.lane.b32.xlu0 %v516, 64
        %v525 = vpop.permute.xlu0 %524
        %v527 = vmul.f32 %v515, %v525
        %529 = vrot.lane.b32.xlu0 %v527, 32
        %v530 = vpop.permute.xlu0 %529
        %v532 = vadd.f32 %v522, %v530
        %v533 = vtanh.pop %v532
        %535 = vrot.lane.b32.xlu0 %v533, 64
        %v536 = vpop.permute.xlu0 %535
        %v538 = vmul.f32 %v515, %v536
        %540 = vset.pattern.permute.xlu0 0
        %541 = vperm.xlu0 %540, %v430
        %v542 = vpop.permute.xlu0 %541
        %v544 = vmul.f32 %v542, %v532
        %v545 = vsub.f32 1.0, %v430
        %547 = vset.pattern.permute.xlu0 0
        %548 = vperm.xlu0 %547, %v545
        %v549 = vpop.permute.xlu0 %548
        %v551 = vmul.f32 %v549, %v517
        %553 = vrot.lane.b32.xlu0 %v551, 32
        %v554 = vpop.permute.xlu0 %553
        %v556 = vadd.f32 %v544, %v554
        %558 = vrot.lane.b32.xlu0 %v556, 96
        %v559 = vpop.permute.xlu0 %558
        %561 = vst.msk [vmem:[#allocation4] sm:$0x3] %vm423, %v559
        %v562 = vmul.f32 %v542, %v538
        %v563 = vld [vmem:[#allocation3] sm:$0x3]
        %v564 = vmul.f32 %v549, %v563
        %566 = vrot.lane.b32.xlu0 %v564, 96
        %v567 = vpop.permute.xlu0 %566
        %v569 = vadd.f32 %v562, %v567
        %571 = vrot.lane.b32.xlu0 %v569, 32
        %v572 = vpop.permute.xlu0 %571
        %574 = vst.msk [vmem:[#allocation3] sm:$0x3] %vm423, %v572
        %576 = vrot.lane.b32.xlu0 %v562, 32
        %v577 = vpop.permute.xlu0 %576
        %s579 = scalar_lea.vmem %s335, %s428 [#allocation13]
        %580 = vst.msk [vmem:[%s579] sm:$0x3] %vm423, %v577
        %s581 = scalar_select %p426, 1, 2
        %s582 = smul.u32 %s581, 2
        %s583 = scalar_lea.vmem [#allocation8], %s582
        %v584 = vld [vmem:[%s583] sm:$0x3]
        %s585 = scalar_lea.vmem [#allocation2], %s582
        %v586 = vld [vmem:[%s585] sm:$0x3]
        %v587 = vld [vmem:[#allocation3] sm:$0x3]
        %v588 = vld [vmem:[%s292] sm:$0xff]
        %v589 = vld [vmem:[%s292 + $0x8] sm:$0xff]
        %v590 = vld [vmem:[%s292 + $0x10] sm:$0xff]
        %v591 = vld [vmem:[%s292 + $0x18] sm:$0xff]
        %v593 = vsel %vm348, %v587, 0
        %595 = vmatprep.subr.mxu0 0.0
        %596 = vmatpush1.msra.mxu0 %v588
        %597 = vmatprep.subr.mxu0 0.0
        %598 = vmatpush1.msra.mxu0 %v589
        %599 = vmatprep.subr.mxu0 0.0
        %600 = vmatpush1.msra.mxu0 %v590
        %601 = vmatprep.subr.mxu0 0.0
        %602 = vmatpush1.msra.mxu0 %v591
        %603 = vmatprep.subr.mxu0 0.0
        %604 = vmatpush1.msra.mxu0 0.0
        %605 = vmatprep.subr.mxu0 0.0
        %606 = vmatpush1.msra.mxu0 0.0
        %607 = vmatprep.subr.mxu0 0.0
        %608 = vmatpush1.msra.mxu0 0.0
        %609 = vmatprep.subr.mxu0 0.0
        %610 = vmatpush1.msra.mxu0 0.0
        %611 = vmatprep.subr.mxu0 0.0
        %612 = vmatpush1.msra.mxu0 0.0
        %613 = vmatprep.subr.mxu0 0.0
        %614 = vmatpush1.msra.mxu0 0.0
        %615 = vmatprep.subr.mxu0 0.0
        %616 = vmatpush1.msra.mxu0 0.0
        %617 = vmatprep.subr.mxu0 0.0
        %618 = vmatpush1.msra.mxu0 0.0
        %619 = vmatprep.subr.mxu0 0.0
        %620 = vmatpush1.msra.mxu0 0.0
        %621 = vmatprep.subr.mxu0 0.0
        %622 = vmatpush1.msra.mxu0 0.0
        %623 = vmatprep.subr.mxu0 0.0
        %624 = vmatpush1.msra.mxu0 0.0
        %625 = vmatprep.subr.mxu0 0.0
        %626 = vmatpush1.msra.mxu0 0.0
        %627 = vmatprep.subr.mxu0 0.0
        %628 = vmatpush1.msra.mxu0 0.0
        %629 = vmatprep.subr.mxu0 0.0
        %630 = vmatpush1.msra.mxu0 0.0
        %631 = vmatprep.subr.mxu0 0.0
        %632 = vmatpush1.msra.mxu0 0.0
        %633 = vmatprep.subr.mxu0 0.0
        %634 = vmatpush1.msra.mxu0 0.0
        %635 = vmatprep.subr.mxu0 0.0
        %636 = vmatpush1.msra.mxu0 0.0
        %637 = vmatprep.subr.mxu0 0.0
        %638 = vmatpush1.msra.mxu0 0.0
        %639 = vmatprep.subr.mxu0 0.0
        %640 = vmatpush1.msra.mxu0 0.0
        %641 = vmatprep.subr.mxu0 0.0
        %642 = vmatpush1.msra.mxu0 0.0
        %643 = vmatprep.subr.mxu0 0.0
        %644 = vmatpush1.msra.mxu0 0.0
        %645 = vmatprep.subr.mxu0 0.0
        %646 = vmatpush1.msra.mxu0 0.0
        %647 = vmatprep.subr.mxu0 0.0
        %648 = vmatpush1.msra.mxu0 0.0
        %649 = vmatprep.subr.mxu0 0.0
        %650 = vmatpush1.msra.mxu0 0.0
        %651 = vmatprep.subr.mxu0 0.0
        %652 = vmatpush1.msra.mxu0 0.0
        %653 = vmatprep.subr.mxu0 0.0
        %654 = vmatpush1.msra.mxu0 0.0
        %655 = vmatprep.subr.mxu0 0.0
        %656 = vmatpush1.msra.mxu0 0.0
        %657 = vmatprep.subr.mxu0 0.0
        %658 = vmatpush1.msra.mxu0 0.0
        %659 = vmatprep.mubr.f32.mxu0 0.0
        %660 = vmatmul.mubr.f32.gmra.mrb[0].mxu0 %v593
        %v661 = vpop.f32.mrb[0].mxu0
        %v662 = vadd.f32 0.0, %v661
        %v663 = vpop.f32.mrb[0].mxu0
        %664 = vdwg.mxu0
        %v665 = vadd.f32 %v586, %v662
        %v666 = vmul.f32 %v665, 0.5
        %v667 = vtanh.pop %v666
        %v668 = vadd.f32 %v667, 1.0
        %v669 = vmul.f32 %v668, 0.5
        %v670 = vtanh.pop %v665
        %v671 = vld [vmem:[#allocation4] sm:$0x3]
        %673 = vrot.lane.b32.xlu0 %v671, 32
        %v674 = vpop.permute.xlu0 %673
        %v676 = vmul.f32 %v669, %v674
        %678 = vrot.lane.b32.xlu0 %v670, 64
        %v679 = vpop.permute.xlu0 %678
        %v681 = vmul.f32 %v669, %v679
        %683 = vrot.lane.b32.xlu0 %v681, 32
        %v684 = vpop.permute.xlu0 %683
        %v686 = vadd.f32 %v676, %v684
        %v687 = vtanh.pop %v686
        %689 = vrot.lane.b32.xlu0 %v687, 64
        %v690 = vpop.permute.xlu0 %689
        %v692 = vmul.f32 %v669, %v690
        %694 = vset.pattern.permute.xlu0 0
        %695 = vperm.xlu0 %694, %v584
        %v696 = vpop.permute.xlu0 %695
        %v698 = vmul.f32 %v696, %v686
        %v699 = vsub.f32 1.0, %v584
        %701 = vset.pattern.permute.xlu0 0
        %702 = vperm.xlu0 %701, %v699
        %v703 = vpop.permute.xlu0 %702
        %v705 = vmul.f32 %v703, %v671
        %707 = vrot.lane.b32.xlu0 %v705, 32
        %v708 = vpop.permute.xlu0 %707
        %v710 = vadd.f32 %v698, %v708
        %712 = vrot.lane.b32.xlu0 %v710, 96
        %v713 = vpop.permute.xlu0 %712
        %715 = vst.msk [vmem:[#allocation4] sm:$0x3] %vm423, %v713
        %v716 = vmul.f32 %v696, %v692
        %v717 = vld [vmem:[#allocation3] sm:$0x3]
        %v718 = vmul.f32 %v703, %v717
        %720 = vrot.lane.b32.xlu0 %v718, 96
        %v721 = vpop.permute.xlu0 %720
        %v723 = vadd.f32 %v716, %v721
        %725 = vrot.lane.b32.xlu0 %v723, 32
        %v726 = vpop.permute.xlu0 %725
        %728 = vst.msk [vmem:[#allocation3] sm:$0x3] %vm423, %v726
        %730 = vrot.lane.b32.xlu0 %v716, 32
        %v731 = vpop.permute.xlu0 %730
        %s733 = scalar_lea.vmem %s335, %s582 [#allocation13]
        %734 = vst.msk [vmem:[%s733] sm:$0x3] %vm423, %v731
        %s735 = scalar_select %p426, 2, 1
        %s736 = smul.u32 %s735, 2
        %s737 = scalar_lea.vmem [#allocation8], %s736
        %v738 = vld [vmem:[%s737] sm:$0x3]
        %s739 = scalar_lea.vmem [#allocation2], %s736
        %v740 = vld [vmem:[%s739] sm:$0x3]
        %v741 = vld [vmem:[#allocation3] sm:$0x3]
        %v742 = vld [vmem:[%s292] sm:$0xff]
        %v743 = vld [vmem:[%s292 + $0x8] sm:$0xff]
        %v744 = vld [vmem:[%s292 + $0x10] sm:$0xff]
        %v745 = vld [vmem:[%s292 + $0x18] sm:$0xff]
        %v747 = vsel %vm348, %v741, 0
        %749 = vmatprep.subr.mxu0 0.0
        %750 = vmatpush1.msra.mxu0 %v742
        %751 = vmatprep.subr.mxu0 0.0
        %752 = vmatpush1.msra.mxu0 %v743
        %753 = vmatprep.subr.mxu0 0.0
        %754 = vmatpush1.msra.mxu0 %v744
        %755 = vmatprep.subr.mxu0 0.0
        %756 = vmatpush1.msra.mxu0 %v745
        %757 = vmatprep.subr.mxu0 0.0
        %758 = vmatpush1.msra.mxu0 0.0
        %759 = vmatprep.subr.mxu0 0.0
        %760 = vmatpush1.msra.mxu0 0.0
        %761 = vmatprep.subr.mxu0 0.0
        %762 = vmatpush1.msra.mxu0 0.0
        %763 = vmatprep.subr.mxu0 0.0
        %764 = vmatpush1.msra.mxu0 0.0
        %765 = vmatprep.subr.mxu0 0.0
        %766 = vmatpush1.msra.mxu0 0.0
        %767 = vmatprep.subr.mxu0 0.0
        %768 = vmatpush1.msra.mxu0 0.0
        %769 = vmatprep.subr.mxu0 0.0
        %770 = vmatpush1.msra.mxu0 0.0
        %771 = vmatprep.subr.mxu0 0.0
        %772 = vmatpush1.msra.mxu0 0.0
        %773 = vmatprep.subr.mxu0 0.0
        %774 = vmatpush1.msra.mxu0 0.0
        %775 = vmatprep.subr.mxu0 0.0
        %776 = vmatpush1.msra.mxu0 0.0
        %777 = vmatprep.subr.mxu0 0.0
        %778 = vmatpush1.msra.mxu0 0.0
        %779 = vmatprep.subr.mxu0 0.0
        %780 = vmatpush1.msra.mxu0 0.0
        %781 = vmatprep.subr.mxu0 0.0
        %782 = vmatpush1.msra.mxu0 0.0
        %783 = vmatprep.subr.mxu0 0.0
        %784 = vmatpush1.msra.mxu0 0.0
        %785 = vmatprep.subr.mxu0 0.0
        %786 = vmatpush1.msra.mxu0 0.0
        %787 = vmatprep.subr.mxu0 0.0
        %788 = vmatpush1.msra.mxu0 0.0
        %789 = vmatprep.subr.mxu0 0.0
        %790 = vmatpush1.msra.mxu0 0.0
        %791 = vmatprep.subr.mxu0 0.0
        %792 = vmatpush1.msra.mxu0 0.0
        %793 = vmatprep.subr.mxu0 0.0
        %794 = vmatpush1.msra.mxu0 0.0
        %795 = vmatprep.subr.mxu0 0.0
        %796 = vmatpush1.msra.mxu0 0.0
        %797 = vmatprep.subr.mxu0 0.0
        %798 = vmatpush1.msra.mxu0 0.0
        %799 = vmatprep.subr.mxu0 0.0
        %800 = vmatpush1.msra.mxu0 0.0
        %801 = vmatprep.subr.mxu0 0.0
        %802 = vmatpush1.msra.mxu0 0.0
        %803 = vmatprep.subr.mxu0 0.0
        %804 = vmatpush1.msra.mxu0 0.0
        %805 = vmatprep.subr.mxu0 0.0
        %806 = vmatpush1.msra.mxu0 0.0
        %807 = vmatprep.subr.mxu0 0.0
        %808 = vmatpush1.msra.mxu0 0.0
        %809 = vmatprep.subr.mxu0 0.0
        %810 = vmatpush1.msra.mxu0 0.0
        %811 = vmatprep.subr.mxu0 0.0
        %812 = vmatpush1.msra.mxu0 0.0
        %813 = vmatprep.mubr.f32.mxu0 0.0
        %814 = vmatmul.mubr.f32.gmra.mrb[0].mxu0 %v747
        %v815 = vpop.f32.mrb[0].mxu0
        %v816 = vadd.f32 0.0, %v815
        %v817 = vpop.f32.mrb[0].mxu0
        %818 = vdwg.mxu0
        %v819 = vadd.f32 %v740, %v816
        %v820 = vmul.f32 %v819, 0.5
        %v821 = vtanh.pop %v820
        %v822 = vadd.f32 %v821, 1.0
        %v823 = vmul.f32 %v822, 0.5
        %v824 = vtanh.pop %v819
        %v825 = vld [vmem:[#allocation4] sm:$0x3]
        %827 = vrot.lane.b32.xlu0 %v825, 32
        %v828 = vpop.permute.xlu0 %827
        %v830 = vmul.f32 %v823, %v828
        %832 = vrot.lane.b32.xlu0 %v824, 64
        %v833 = vpop.permute.xlu0 %832
        %v835 = vmul.f32 %v823, %v833
        %837 = vrot.lane.b32.xlu0 %v835, 32
        %v838 = vpop.permute.xlu0 %837
        %v840 = vadd.f32 %v830, %v838
        %v841 = vtanh.pop %v840
        %843 = vrot.lane.b32.xlu0 %v841, 64
        %v844 = vpop.permute.xlu0 %843
        %v846 = vmul.f32 %v823, %v844
        %848 = vset.pattern.permute.xlu0 0
        %849 = vperm.xlu0 %848, %v738
        %v850 = vpop.permute.xlu0 %849
        %v852 = vmul.f32 %v850, %v840
        %v853 = vsub.f32 1.0, %v738
        %855 = vset.pattern.permute.xlu0 0
        %856 = vperm.xlu0 %855, %v853
        %v857 = vpop.permute.xlu0 %856
        %v859 = vmul.f32 %v857, %v825
        %861 = vrot.lane.b32.xlu0 %v859, 32
        %v862 = vpop.permute.xlu0 %861
        %v864 = vadd.f32 %v852, %v862
        %866 = vrot.lane.b32.xlu0 %v864, 96
        %v867 = vpop.permute.xlu0 %866
        %869 = vst.msk [vmem:[#allocation4] sm:$0x3] %vm423, %v867
        %v870 = vmul.f32 %v850, %v846
        %v871 = vld [vmem:[#allocation3] sm:$0x3]
        %v872 = vmul.f32 %v857, %v871
        %874 = vrot.lane.b32.xlu0 %v872, 96
        %v875 = vpop.permute.xlu0 %874
        %v877 = vadd.f32 %v870, %v875
        %879 = vrot.lane.b32.xlu0 %v877, 32
        %v880 = vpop.permute.xlu0 %879
        %882 = vst.msk [vmem:[#allocation3] sm:$0x3] %vm423, %v880
        %884 = vrot.lane.b32.xlu0 %v870, 32
        %v885 = vpop.permute.xlu0 %884
        %s887 = scalar_lea.vmem %s335, %s736 [#allocation13]
        %888 = vst.msk [vmem:[%s887] sm:$0x3] %vm423, %v885
        %s889 = scalar_select %p426, 3, 0
        %s890 = smul.u32 %s889, 2
        %s891 = scalar_lea.vmem [#allocation8], %s890
        %v892 = vld [vmem:[%s891] sm:$0x3]
        %s893 = scalar_lea.vmem [#allocation2], %s890
        %v894 = vld [vmem:[%s893] sm:$0x3]
        %v895 = vld [vmem:[#allocation3] sm:$0x3]
        %v896 = vld [vmem:[%s292] sm:$0xff]
        %v897 = vld [vmem:[%s292 + $0x8] sm:$0xff]
        %v898 = vld [vmem:[%s292 + $0x10] sm:$0xff]
        %v899 = vld [vmem:[%s292 + $0x18] sm:$0xff]
        %v901 = vsel %vm348, %v895, 0
        %903 = vmatprep.subr.mxu0 0.0
        %904 = vmatpush1.msra.mxu0 %v896
        %905 = vmatprep.subr.mxu0 0.0
        %906 = vmatpush1.msra.mxu0 %v897
        %907 = vmatprep.subr.mxu0 0.0
        %908 = vmatpush1.msra.mxu0 %v898
        %909 = vmatprep.subr.mxu0 0.0
        %910 = vmatpush1.msra.mxu0 %v899
        %911 = vmatprep.subr.mxu0 0.0
        %912 = vmatpush1.msra.mxu0 0.0
        %913 = vmatprep.subr.mxu0 0.0
        %914 = vmatpush1.msra.mxu0 0.0
        %915 = vmatprep.subr.mxu0 0.0
        %916 = vmatpush1.msra.mxu0 0.0
        %917 = vmatprep.subr.mxu0 0.0
        %918 = vmatpush1.msra.mxu0 0.0
        %919 = vmatprep.subr.mxu0 0.0
        %920 = vmatpush1.msra.mxu0 0.0
        %921 = vmatprep.subr.mxu0 0.0
        %922 = vmatpush1.msra.mxu0 0.0
        %923 = vmatprep.subr.mxu0 0.0
        %924 = vmatpush1.msra.mxu0 0.0
        %925 = vmatprep.subr.mxu0 0.0
        %926 = vmatpush1.msra.mxu0 0.0
        %927 = vmatprep.subr.mxu0 0.0
        %928 = vmatpush1.msra.mxu0 0.0
        %929 = vmatprep.subr.mxu0 0.0
        %930 = vmatpush1.msra.mxu0 0.0
        %931 = vmatprep.subr.mxu0 0.0
        %932 = vmatpush1.msra.mxu0 0.0
        %933 = vmatprep.subr.mxu0 0.0
        %934 = vmatpush1.msra.mxu0 0.0
        %935 = vmatprep.subr.mxu0 0.0
        %936 = vmatpush1.msra.mxu0 0.0
        %937 = vmatprep.subr.mxu0 0.0
        %938 = vmatpush1.msra.mxu0 0.0
        %939 = vmatprep.subr.mxu0 0.0
        %940 = vmatpush1.msra.mxu0 0.0
        %941 = vmatprep.subr.mxu0 0.0
        %942 = vmatpush1.msra.mxu0 0.0
        %943 = vmatprep.subr.mxu0 0.0
        %944 = vmatpush1.msra.mxu0 0.0
        %945 = vmatprep.subr.mxu0 0.0
        %946 = vmatpush1.msra.mxu0 0.0
        %947 = vmatprep.subr.mxu0 0.0
        %948 = vmatpush1.msra.mxu0 0.0
        %949 = vmatprep.subr.mxu0 0.0
        %950 = vmatpush1.msra.mxu0 0.0
        %951 = vmatprep.subr.mxu0 0.0
        %952 = vmatpush1.msra.mxu0 0.0
        %953 = vmatprep.subr.mxu0 0.0
        %954 = vmatpush1.msra.mxu0 0.0
        %955 = vmatprep.subr.mxu0 0.0
        %956 = vmatpush1.msra.mxu0 0.0
        %957 = vmatprep.subr.mxu0 0.0
        %958 = vmatpush1.msra.mxu0 0.0
        %959 = vmatprep.subr.mxu0 0.0
        %960 = vmatpush1.msra.mxu0 0.0
        %961 = vmatprep.subr.mxu0 0.0
        %962 = vmatpush1.msra.mxu0 0.0
        %963 = vmatprep.subr.mxu0 0.0
        %964 = vmatpush1.msra.mxu0 0.0
        %965 = vmatprep.subr.mxu0 0.0
        %966 = vmatpush1.msra.mxu0 0.0
        %967 = vmatprep.mubr.f32.mxu0 0.0
        %968 = vmatmul.mubr.f32.gmra.mrb[0].mxu0 %v901
        %v969 = vpop.f32.mrb[0].mxu0
        %v970 = vadd.f32 0.0, %v969
        %v971 = vpop.f32.mrb[0].mxu0
        %972 = vdwg.mxu0
        %v973 = vadd.f32 %v894, %v970
        %v974 = vmul.f32 %v973, 0.5
        %v975 = vtanh.pop %v974
        %v976 = vadd.f32 %v975, 1.0
        %v977 = vmul.f32 %v976, 0.5
        %v978 = vtanh.pop %v973
        %v979 = vld [vmem:[#allocation4] sm:$0x3]
        %981 = vrot.lane.b32.xlu0 %v979, 32
        %v982 = vpop.permute.xlu0 %981
        %v984 = vmul.f32 %v977, %v982
        %986 = vrot.lane.b32.xlu0 %v978, 64
        %v987 = vpop.permute.xlu0 %986
        %v989 = vmul.f32 %v977, %v987
        %991 = vrot.lane.b32.xlu0 %v989, 32
        %v992 = vpop.permute.xlu0 %991
        %v994 = vadd.f32 %v984, %v992
        %v995 = vtanh.pop %v994
        %997 = vrot.lane.b32.xlu0 %v995, 64
        %v998 = vpop.permute.xlu0 %997
        %v1000 = vmul.f32 %v977, %v998
        %1002 = vset.pattern.permute.xlu0 0
        %1003 = vperm.xlu0 %1002, %v892
        %v1004 = vpop.permute.xlu0 %1003
        %v1006 = vmul.f32 %v1004, %v994
        %v1007 = vsub.f32 1.0, %v892
        %1009 = vset.pattern.permute.xlu0 0
        %1010 = vperm.xlu0 %1009, %v1007
        %v1011 = vpop.permute.xlu0 %1010
        %v1013 = vmul.f32 %v1011, %v979
        %1015 = vrot.lane.b32.xlu0 %v1013, 32
        %v1016 = vpop.permute.xlu0 %1015
        %v1018 = vadd.f32 %v1006, %v1016
        %1020 = vrot.lane.b32.xlu0 %v1018, 96
        %v1021 = vpop.permute.xlu0 %1020
        %1023 = vst.msk [vmem:[#allocation4] sm:$0x3] %vm423, %v1021
        %v1024 = vmul.f32 %v1004, %v1000
        %v1025 = vld [vmem:[#allocation3] sm:$0x3]
        %v1026 = vmul.f32 %v1011, %v1025
        %1028 = vrot.lane.b32.xlu0 %v1026, 96
        %v1029 = vpop.permute.xlu0 %1028
        %v1031 = vadd.f32 %v1024, %v1029
        %1033 = vrot.lane.b32.xlu0 %v1031, 32
        %v1034 = vpop.permute.xlu0 %1033
        %1036 = vst.msk [vmem:[#allocation3] sm:$0x3] %vm423, %v1034
        %1038 = vrot.lane.b32.xlu0 %v1024, 32
        %v1039 = vpop.permute.xlu0 %1038
        %s1041 = scalar_lea.vmem %s335, %s890 [#allocation13]
        %1042 = vst.msk [vmem:[%s1041] sm:$0x3] %vm423, %v1039
        %s1043 = sand.u32 %s149, 1
        %s1044 = scalar_lea.sflag [#allocation7], %s1043
        %s1045 = sand.u32 %s149, 1
        %s1046 = smul.addr %s1045, 8
        %s1047 = scalar_lea.vmem [#allocation13], %s1046
        // Predicated region
        $region61: #{hierarchical_attention_forward.7} parent=39 // pred_check
          %p1048 = pneg %p159
        $region62: #{hierarchical_attention_forward.7} parent=39 // pred_check_branch
          %1050 = sbr.rel (%p1048) target = $region64
        $region63: #{hierarchical_attention_forward.7} parent=39 // pred_region
          %s1052 = ssub.s32 128, 128
          %1053 = vsyncadd %s1044, %s1052
          %s1054 = smul.addr %s21, 4
          %s1055 = smul.addr %s1054, 32
          %s1056 = scalar_lea.hbm %s5, %s1055
          %s1057 = sshll.u32 %s1047, 4
          %s1058 = int_to_ptr.vmem [resolvable:$true] %s1057
          %1063 = dma.vmem_to_hbm [thread:$0]  %s1058, 128, %s1056, %s1044, 32, 32, 2
        $region64: #{hierarchical_attention_forward.7} parent=39 // pred_fallthru
          _
      $region40: #{hierarchical_attention_forward.7} parent=5 // pred_fallthru
        _
      %p1064 = scmp.le.s32.totalorder 2, %s16
      // Predicated region
      $region65: #{hierarchical_attention_forward.7} parent=5 // pred_check
        %p1065 = pneg %p1064
      $region66: #{hierarchical_attention_forward.7} parent=5 // pred_check_branch
        %1067 = sbr.rel (%p1065) target = $region68
      $region67: #{hierarchical_attention_forward.7} parent=5 // pred_region
        %s1068 = ssub.s32 %s16, 2
        // Predicated region
        $region69: #{hierarchical_attention_forward.7} parent=67 // pred_check
          %p1069 = pneg %p165
        $region70: #{hierarchical_attention_forward.7} parent=67 // pred_check_branch
          %1071 = sbr.rel (%p1069) target = $region72
        $region71: #{hierarchical_attention_forward.7} parent=67 // pred_region
          %s1072 = sand.u32 %s150, 1
          %s1073 = scalar_lea.sflag [#allocation7], %s1072
          %s1074 = sand.u32 %s150, 1
          %s1075 = smul.addr %s1074, 8
          %s1076 = scalar_lea.vmem [#allocation13], %s1075
          %1077 = dma.done %s1073, 128
        $region72: #{hierarchical_attention_forward.7} parent=67 // pred_fallthru
          _
      $region68: #{hierarchical_attention_forward.7} parent=5 // pred_fallthru
        _
    $region6: #{hierarchical_attention_forward.7} parent=1 // loop_footer
      %s20 = sadd.s32 1, %s16
    $region7: #{hierarchical_attention_forward.7} parent=1 // loop_footer_branch
      %15 = sbr.rel target = $region3
    $region8: #{hierarchical_attention_forward.7} parent=1 // loop_exit
      _
    %1078 = vsyncpa [#allocation6], 1
    %s1079 = scalar_lea.sflag [#allocation6], 1
    %1080 = vsyncpa %s1079, 1
    %1081 = vsyncpa [#allocation9], 1
    %1082 = vsyncpa [#allocation7], 1
    %s1083 = scalar_lea.sflag [#allocation7], 1
    %1084 = vsyncpa %s1083, 1

// kernel: hierarchical_attention_forward.5
$region0: #{hierarchical_attention_forward.5}
  #allocation0 [shape = 'u32[]', space=smem, size = 0x4, offset = 0x4, fixed_abs, tag = 'smem constant byte address 0x4 - core index']
  #allocation1 [shape = 'u32[144,128]{1,0:T(1,128)}', space=vmem, size = 0x12000, scoped, tag = 'internal scratch']
  #allocation2 [shape = 'f32[64,64]{1,0:T(8,128)}', space=vmem, size = 0x8000, scoped, tag = 'scratch operand']
  #allocation3 [shape = 'f32[8,16]{1,0:T(8,128)}', space=vmem, size = 0x1000, scoped, tag = 'scratch operand']
  #allocation4 [shape = 'f32[8,16]{1,0:T(8,128)}', space=vmem, size = 0x1000, scoped, tag = 'scratch operand']
  %s0 = inlined_call_operand.hbm [shape: f32[64,16], index: 0, kind: input, shape index: {}]
  %s1 = inlined_call_operand.hbm [shape: f32[8,8,1], index: 1, kind: input, shape index: {}]
  %s2 = inlined_call_operand.hbm [shape: f32[2,16,64], index: 2, kind: input, shape index: {}]
  %s3 = inlined_call_operand.hbm [shape: f32[2,16,64], index: 3, kind: input, shape index: {}]
  %s4 = inlined_call_operand.hbm [shape: f32[2,1,64], index: 4, kind: input, shape index: {}]
  %s5 = inlined_call_operand.hbm [shape: f32[2,8,8,16], index: 5, kind: output, shape index: {}]
  %s6 = sld [smem:[#allocation0]]
  $region73: #{hierarchical_attention_forward.5} parent=0
    _
  %s8 = ssub.s32 1, %s6
  %s9 = scalar_select 0, %s8, %s6
  $region1: #{hierarchical_attention_forward.5} parent=0
    #allocation5 [shape = 'u8[32768]{0}', space=vmem, size = 0x8000, scoped, tag = 'input window, operand 0, single buffered']
    #allocation6 [shape = 's32[2]{0}', space=sflag, size = 0x8, scoped, tag = 'scoped memory for hierarchical_attention_forward.5']
    #allocation7 [shape = 's32[2]{0}', space=sflag, size = 0x8, scoped, tag = 'scoped memory for hierarchical_attention_forward.5']
    #allocation8 [shape = 'u8[32768]{0}', space=vmem, size = 0x8000, scoped, tag = 'input window, operand 1, single buffered']
    #allocation9 [shape = 's32[1]{0}', space=sflag, size = 0x4, scoped, tag = 'scoped memory for hierarchical_attention_forward.5']
    #allocation10 [shape = 'u8[16384]{0}', space=vmem, size = 0x4000, scoped, tag = 'input window, operand 2']
    #allocation11 [shape = 'u8[16384]{0}', space=vmem, size = 0x4000, scoped, tag = 'input window, operand 3']
    #allocation12 [shape = 'u8[1024]{0}', space=vmem, size = 0x400, scoped, tag = 'input window, operand 4']
    #allocation13 [shape = 'u8[65536]{0}', space=vmem, size = 0x10000, scoped, tag = 'output window, operand 0']
    %10 = vsyncpa [#allocation6], 0
    %11 = vsyncpa [#allocation9], 0
    %12 = vsyncpa [#allocation7], 0
    %s13 = scalar_lea.sflag [#allocation7], 1
    %14 = vsyncpa %s13, 0
    loop: start=0, step=1, limit=4
    $region2: #{hierarchical_attention_forward.5} parent=1 // loop_pre_header
      _
    $region3: #{hierarchical_attention_forward.5} parent=1 // loop_header
      %s16 = sphi 0, %s20
      %p17 = scmp.ge.s32.totalorder %s16, 4
      %s24 = sphi 0, %s24
      %s26 = sphi 0, %s24
      %s27 = sphi 0, %s26
      %s41 = sphi 0, %s27
      %s45 = sphi 0, %s45
      %s47 = sphi 0, %s45
      %s48 = sphi 0, %s47
      %s62 = sphi 0, %s48
      %s68 = sphi 0, %s70
      %s71 = sphi 0, %s68
      %s72 = sphi 0, %s71
      %s88 = sphi 0, %s72
      %s94 = sphi 0, %s96
      %s97 = sphi 0, %s94
      %s98 = sphi 0, %s97
      %s114 = sphi 0, %s98
      %s120 = sphi 0, %s122
      %s123 = sphi 0, %s120
      %s124 = sphi 0, %s123
      %s140 = sphi 0, %s124
      %s146 = sphi 0, %s148
      %s149 = sphi 0, %s146
      %s150 = sphi 0, %s149
      %s166 = sphi 0, %s150
    $region4: #{hierarchical_attention_forward.5} parent=1 // loop_header_branch
      %19 = sbr.rel (%p17) target = $region8
    $region5: #{hierarchical_attention_forward.5} parent=1 // loop_body
      %s21 = ssub.s32 %s16, 1
      %s22 = ssub.s32 %s16, 2
      %s23 = sadd.s32 %s16, 1
      %s25 = sadd.s32 %s24, 1
      %p28 = scmp.eq.s32.totalorder %s16, 1
      %p29 = scmp.ne.s32.totalorder %s24, %s26
      %p30 = scmp.eq.s32.totalorder %s16, 0
      %p31 = por %p29, %p30
      %p32 = scmp.ne.s32.totalorder %s24, %s26
      %p33 = scmp.eq.s32.totalorder %s21, 1
      %p34 = por %p32, %p33
      %p35 = scmp.ne.s32.totalorder %s26, %s27
      %p36 = scmp.eq.s32.totalorder %s21, 0
      %p37 = por %p35, %p36
      %p38 = scmp.ne.s32.totalorder %s26, %s27
      %p39 = scmp.eq.s32.totalorder %s22, 1
      %p40 = por %p38, %p39
      %p42 = scmp.ne.s32.totalorder %s27, %s41
      %p43 = scmp.eq.s32.totalorder %s22, 0
      %p44 = por %p42, %p43
      %s46 = sadd.s32 %s45, 1
      %p49 = scmp.eq.s32.totalorder %s16, 1
      %p50 = scmp.ne.s32.totalorder %s45, %s47
      %p51 = scmp.eq.s32.totalorder %s16, 0
      %p52 = por %p50, %p51
      %p53 = scmp.ne.s32.totalorder %s45, %s47
      %p54 = scmp.eq.s32.totalorder %s21, 1
      %p55 = por %p53, %p54
      %p56 = scmp.ne.s32.totalorder %s47, %s48
      %p57 = scmp.eq.s32.totalorder %s21, 0
      %p58 = por %p56, %p57
      %p59 = scmp.ne.s32.totalorder %s47, %s48
      %p60 = scmp.eq.s32.totalorder %s22, 1
      %p61 = por %p59, %p60
      %p63 = scmp.ne.s32.totalorder %s48, %s62
      %p64 = scmp.eq.s32.totalorder %s22, 0
      %p65 = por %p63, %p64
      %s66 = ssub.s32 %s16, %s23
      %p67 = scmp.eq.s32.totalorder %s66, 0
      %s69 = sadd.s32 %s68, 1
      %s70 = scalar_select %p67, %s68, %s69
      %p73 = pneg %p67
      %p74 = scmp.eq.s32.totalorder %s16, 1
      %p75 = por %p73, %p74
      %p76 = scmp.ne.s32.totalorder %s68, %s71
      %p77 = scmp.eq.s32.totalorder %s16, 0
      %p78 = por %p76, %p77
      %p79 = scmp.ne.s32.totalorder %s68, %s71
      %p80 = scmp.eq.s32.totalorder %s21, 1
      %p81 = por %p79, %p80
      %p82 = scmp.ne.s32.totalorder %s71, %s72
      %p83 = scmp.eq.s32.totalorder %s21, 0
      %p84 = por %p82, %p83
      %p85 = scmp.ne.s32.totalorder %s71, %s72
      %p86 = scmp.eq.s32.totalorder %s22, 1
      %p87 = por %p85, %p86
      %p89 = scmp.ne.s32.totalorder %s72, %s88
      %p90 = scmp.eq.s32.totalorder %s22, 0
      %p91 = por %p89, %p90
      %s92 = ssub.s32 %s16, %s23
      %p93 = scmp.eq.s32.totalorder %s92, 0
      %s95 = sadd.s32 %s94, 1
      %s96 = scalar_select %p93, %s94, %s95
      %p99 = pneg %p93
      %p100 = scmp.eq.s32.totalorder %s16, 1
      %p101 = por %p99, %p100
      %p102 = scmp.ne.s32.totalorder %s94, %s97
      %p103 = scmp.eq.s32.totalorder %s16, 0
      %p104 = por %p102, %p103
      %p105 = scmp.ne.s32.totalorder %s94, %s97
      %p106 = scmp.eq.s32.totalorder %s21, 1
      %p107 = por %p105, %p106
      %p108 = scmp.ne.s32.totalorder %s97, %s98
      %p109 = scmp.eq.s32.totalorder %s21, 0
      %p110 = por %p108, %p109
      %p111 = scmp.ne.s32.totalorder %s97, %s98
      %p112 = scmp.eq.s32.totalorder %s22, 1
      %p113 = por %p111, %p112
      %p115 = scmp.ne.s32.totalorder %s98, %s114
      %p116 = scmp.eq.s32.totalorder %s22, 0
      %p117 = por %p115, %p116
      %s118 = ssub.s32 %s16, %s23
      %p119 = scmp.eq.s32.totalorder %s118, 0
      %s121 = sadd.s32 %s120, 1
      %s122 = scalar_select %p119, %s120, %s121
      %p125 = pneg %p119
      %p126 = scmp.eq.s32.totalorder %s16, 1
      %p127 = por %p125, %p126
      %p128 = scmp.ne.s32.totalorder %s120, %s123
      %p129 = scmp.eq.s32.totalorder %s16, 0
      %p130 = por %p128, %p129
      %p131 = scmp.ne.s32.totalorder %s120, %s123
      %p132 = scmp.eq.s32.totalorder %s21, 1
      %p133 = por %p131, %p132
      %p134 = scmp.ne.s32.totalorder %s123, %s124
      %p135 = scmp.eq.s32.totalorder %s21, 0
      %p136 = por %p134, %p135
      %p137 = scmp.ne.s32.totalorder %s123, %s124
      %p138 = scmp.eq.s32.totalorder %s22, 1
      %p139 = por %p137, %p138
      %p141 = scmp.ne.s32.totalorder %s124, %s140
      %p142 = scmp.eq.s32.totalorder %s22, 0
      %p143 = por %p141, %p142
      %s144 = ssub.s32 %s16, %s23
      %p145 = scmp.eq.s32.totalorder %s144, 0
      %s147 = sadd.s32 %s146, 1
      %s148 = scalar_select %p145, %s146, %s147
      %p151 = pneg %p145
      %p152 = scmp.eq.s32.totalorder %s16, 1
      %p153 = por %p151, %p152
      %p154 = scmp.ne.s32.totalorder %s146, %s149
      %p155 = scmp.eq.s32.totalorder %s16, 0
      %p156 = por %p154, %p155
      %p157 = scmp.ne.s32.totalorder %s146, %s149
      %p158 = scmp.eq.s32.totalorder %s21, 1
      %p159 = por %p157, %p158
      %p160 = scmp.ne.s32.totalorder %s149, %s150
      %p161 = scmp.eq.s32.totalorder %s21, 0
      %p162 = por %p160, %p161
      %p163 = scmp.ne.s32.totalorder %s149, %s150
      %p164 = scmp.eq.s32.totalorder %s22, 1
      %p165 = por %p163, %p164
      %p167 = scmp.ne.s32.totalorder %s150, %s166
      %p168 = scmp.eq.s32.totalorder %s22, 0
      %p169 = por %p167, %p168
      %p170 = scmp.le.s32.totalorder 1, %s16
      %p171 = scmp.lt.s32.totalorder %s16, 3
      %p172 = pnand %p170, %p171
      %p173 = pneg %p172
      // Predicated region
      $region9: #{hierarchical_attention_forward.5} parent=5 // pred_check
        _
      $region10: #{hierarchical_attention_forward.5} parent=5 // pred_check_branch
        %175 = sbr.rel (%p172) target = $region12
      $region11: #{hierarchical_attention_forward.5} parent=5 // pred_region
        %s176 = ssub.s32 %s16, 1
        // Predicated region
        $region13: #{hierarchical_attention_forward.5} parent=11 // pred_check
          %p177 = pneg %p37
        $region14: #{hierarchical_attention_forward.5} parent=11 // pred_check_branch
          %179 = sbr.rel (%p177) target = $region16
        $region15: #{hierarchical_attention_forward.5} parent=11 // pred_region
          %s181 = ssub.s32 1024, 1024
          %182 = vsyncadd [#allocation6], %s181
          %s183 = sshll.u32 [#allocation5], 4
          %s184 = int_to_ptr.vmem [resolvable:$true] %s183
          %189 = dma.hbm_to_vmem [thread:$0]  %s0, 1024, %s184, [#allocation6], 128, 128, 8
        $region16: #{hierarchical_attention_forward.5} parent=11 // pred_fallthru
          _
        // Predicated region
        $region17: #{hierarchical_attention_forward.5} parent=11 // pred_check
          %p190 = pneg %p58
        $region18: #{hierarchical_attention_forward.5} parent=11 // pred_check_branch
          %192 = sbr.rel (%p190) target = $region20
        $region19: #{hierarchical_attention_forward.5} parent=11 // pred_region
          %s194 = ssub.s32 1024, 1024
          %195 = vsyncadd [#allocation9], %s194
          %s196 = sshll.u32 [#allocation8], 4
          %s197 = int_to_ptr.vmem [resolvable:$true] %s196
          %202 = dma.hbm_to_vmem [thread:$0]  %s1, 1024, %s197, [#allocation9], 128, 128, 8
        $region20: #{hierarchical_attention_forward.5} parent=11 // pred_fallthru
          _
      $region12: #{hierarchical_attention_forward.5} parent=5 // pred_fallthru
        _
      %p203 = scmp.lt.s32.totalorder %s16, 2
      // Predicated region
      $region21: #{hierarchical_attention_forward.5} parent=5 // pred_check
        %p204 = pneg %p203
      $region22: #{hierarchical_attention_forward.5} parent=5 // pred_check_branch
        %206 = sbr.rel (%p204) target = $region24
      $region23: #{hierarchical_attention_forward.5} parent=5 // pred_region
        // Predicated region
        $region25: #{hierarchical_attention_forward.5} parent=23 // pred_check
          %p207 = pneg %p78
        $region26: #{hierarchical_attention_forward.5} parent=23 // pred_check_branch
          %209 = sbr.rel (%p207) target = $region28
        $region27: #{hierarchical_attention_forward.5} parent=23 // pred_region
          %s210 = sand.u32 %s16, 1
          %s211 = scalar_lea.sflag [#allocation6], %s210
          %s212 = sand.u32 %s68, 1
          %s213 = smul.addr %s212, 16
          %s214 = scalar_lea.vmem [#allocation10], %s213
          %s216 = ssub.s32 256, 256
          %217 = vsyncadd %s211, %s216
          %s218 = smul.addr %s16, 2
          %s219 = smul.addr %s218, 128
          %s220 = scalar_lea.hbm %s2, %s219
          %s221 = sshll.u32 %s214, 4
          %s222 = int_to_ptr.vmem [resolvable:$true] %s221
          %227 = dma.hbm_to_vmem [thread:$0]  %s220, 256, %s222, %s211, 128, 128, 8
        $region28: #{hierarchical_attention_forward.5} parent=23 // pred_fallthru
          _
        // Predicated region
        $region29: #{hierarchical_attention_forward.5} parent=23 // pred_check
          %p228 = pneg %p104
        $region30: #{hierarchical_attention_forward.5} parent=23 // pred_check_branch
          %230 = sbr.rel (%p228) target = $region32
        $region31: #{hierarchical_attention_forward.5} parent=23 // pred_region
          %s231 = sand.u32 %s16, 1
          %s232 = scalar_lea.sflag [#allocation6], %s231
          %s233 = sand.u32 %s94, 1
          %s234 = smul.addr %s233, 16
          %s235 = scalar_lea.vmem [#allocation11], %s234
          %s237 = ssub.s32 256, 256
          %238 = vsyncadd %s232, %s237
          %s239 = smul.addr %s16, 2
          %s240 = smul.addr %s239, 128
          %s241 = scalar_lea.hbm %s3, %s240
          %s242 = sshll.u32 %s235, 4
          %s243 = int_to_ptr.vmem [resolvable:$true] %s242
          %248 = dma.hbm_to_vmem [thread:$0]  %s241, 256, %s243, %s232, 128, 128, 8
        $region32: #{hierarchical_attention_forward.5} parent=23 // pred_fallthru
          _
        // Predicated region
        $region33: #{hierarchical_attention_forward.5} parent=23 // pred_check
          %p249 = pneg %p130
        $region34: #{hierarchical_attention_forward.5} parent=23 // pred_check_branch
          %251 = sbr.rel (%p249) target = $region36
        $region35: #{hierarchical_attention_forward.5} parent=23 // pred_region
          %s252 = sand.u32 %s16, 1
          %s253 = scalar_lea.sflag [#allocation6], %s252
          %s254 = sand.u32 %s120, 1
          %s255 = scalar_lea.vmem [#allocation12], %s254
          %s257 = ssub.s32 16, 16
          %258 = vsyncadd %s253, %s257
          %s259 = smul.addr %s16, 16
          %s260 = scalar_lea.hbm %s4, %s259
          %s262 = sshll.u32 %s255, 4
          %s263 = int_to_ptr.vmem [resolvable:$true] %s262
          %265 = dma.hbm_to_vmem [thread:$0]  %s260, 16, %s263, %s253
        $region36: #{hierarchical_attention_forward.5} parent=23 // pred_fallthru
          _
      $region24: #{hierarchical_attention_forward.5} parent=5 // pred_fallthru
        _
      %p266 = scmp.le.s32.totalorder 1, %s16
      %p267 = scmp.lt.s32.totalorder %s16, 3
      %p268 = pnand %p266, %p267
      %p269 = pneg %p268
      // Predicated region
      $region37: #{hierarchical_attention_forward.5} parent=5 // pred_check
        _
      $region38: #{hierarchical_attention_forward.5} parent=5 // pred_check_branch
        %271 = sbr.rel (%p268) target = $region40
      $region39: #{hierarchical_attention_forward.5} parent=5 // pred_region
        %s272 = ssub.s32 %s16, 1
        // Predicated region
        $region41: #{hierarchical_attention_forward.5} parent=39 // pred_check
          %p273 = pneg %p37
        $region42: #{hierarchical_attention_forward.5} parent=39 // pred_check_branch
          %275 = sbr.rel (%p273) target = $region44
        $region43: #{hierarchical_attention_forward.5} parent=39 // pred_region
          %276 = dma.done [#allocation6], 1024
        $region44: #{hierarchical_attention_forward.5} parent=39 // pred_fallthru
          _
        // Predicated region
        $region45: #{hierarchical_attention_forward.5} parent=39 // pred_check
          %p277 = pneg %p58
        $region46: #{hierarchical_attention_forward.5} parent=39 // pred_check_branch
          %279 = sbr.rel (%p277) target = $region48
        $region47: #{hierarchical_attention_forward.5} parent=39 // pred_region
          %280 = dma.done [#allocation9], 1024
        $region48: #{hierarchical_attention_forward.5} parent=39 // pred_fallthru
          _
        %s281 = sand.u32 %s21, 1
        %s282 = scalar_lea.sflag [#allocation6], %s281
        %s283 = sand.u32 %s71, 1
        %s284 = smul.addr %s283, 16
        %s285 = scalar_lea.vmem [#allocation10], %s284
        // Predicated region
        $region49: #{hierarchical_attention_forward.5} parent=39 // pred_check
          %p286 = pneg %p84
        $region50: #{hierarchical_attention_forward.5} parent=39 // pred_check_branch
          %288 = sbr.rel (%p286) target = $region52
        $region51: #{hierarchical_attention_forward.5} parent=39 // pred_region
          %289 = dma.done %s282, 256
        $region52: #{hierarchical_attention_forward.5} parent=39 // pred_fallthru
          _
        %s290 = sand.u32 %s21, 1
        %s291 = scalar_lea.sflag [#allocation6], %s290
        %s292 = sand.u32 %s97, 1
        %s293 = smul.addr %s292, 16
        %s294 = scalar_lea.vmem [#allocation11], %s293
        // Predicated region
        $region53: #{hierarchical_attention_forward.5} parent=39 // pred_check
          %p295 = pneg %p110
        $region54: #{hierarchical_attention_forward.5} parent=39 // pred_check_branch
          %297 = sbr.rel (%p295) target = $region56
        $region55: #{hierarchical_attention_forward.5} parent=39 // pred_region
          %298 = dma.done %s291, 256
        $region56: #{hierarchical_attention_forward.5} parent=39 // pred_fallthru
          _
        %s299 = sand.u32 %s21, 1
        %s300 = scalar_lea.sflag [#allocation6], %s299
        %s301 = sand.u32 %s123, 1
        %s302 = scalar_lea.vmem [#allocation12], %s301
        // Predicated region
        $region57: #{hierarchical_attention_forward.5} parent=39 // pred_check
          %p303 = pneg %p136
        $region58: #{hierarchical_attention_forward.5} parent=39 // pred_check_branch
          %305 = sbr.rel (%p303) target = $region60
        $region59: #{hierarchical_attention_forward.5} parent=39 // pred_region
          %306 = dma.done %s300, 16
        $region60: #{hierarchical_attention_forward.5} parent=39 // pred_fallthru
          _
        %p307 = pneg %p37
        %p308 = pneg %p34
        %p309 = pneg %p58
        %p310 = pneg %p55
        %s311 = sand.u32 %s21, 1
        %s312 = scalar_lea.sflag [#allocation6], %s311
        %s313 = sand.u32 %s71, 1
        %s314 = smul.addr %s313, 16
        %s315 = scalar_lea.vmem [#allocation10], %s314
        %p316 = pneg %p84
        %p317 = pneg %p81
        %s318 = sand.u32 %s21, 1
        %s319 = scalar_lea.sflag [#allocation6], %s318
        %s320 = sand.u32 %s97, 1
        %s321 = smul.addr %s320, 16
        %s322 = scalar_lea.vmem [#allocation11], %s321
        %p323 = pneg %p110
        %p324 = pneg %p107
        %s325 = sand.u32 %s21, 1
        %s326 = scalar_lea.sflag [#allocation6], %s325
        %s327 = sand.u32 %s123, 1
        %s328 = scalar_lea.vmem [#allocation12], %s327
        %p329 = pneg %p136
        %p330 = pneg %p133
        %p331 = pneg %p162
        %p332 = pneg %p159
        %s333 = sand.u32 %s149, 1
        %s334 = scalar_lea.sflag [#allocation7], %s333
        %s335 = sand.u32 %s149, 1
        %s336 = smul.addr %s335, 64
        %s337 = scalar_lea.vmem [#allocation13], %s336
        %v338 = vld [vmem:[#allocation5] sm:$0xff]
        %v339 = vld [vmem:[#allocation5 + $0x8] sm:$0xff]
        %v340 = vld [vmem:[#allocation5 + $0x10] sm:$0xff]
        %v341 = vld [vmem:[#allocation5 + $0x18] sm:$0xff]
        %v342 = vld [vmem:[#allocation5 + $0x20] sm:$0xff]
        %v343 = vld [vmem:[#allocation5 + $0x28] sm:$0xff]
        %v344 = vld [vmem:[#allocation5 + $0x30] sm:$0xff]
        %v345 = vld [vmem:[#allocation5 + $0x38] sm:$0xff]
        %v346 = vld [vmem:[%s285] sm:$0xff]
        %v347 = vld [vmem:[%s285 + $0x8] sm:$0xff]
        %v348 = vld [vmem:[%s302] sm:$0x1]
        %v350 = vlaneseq
        %v351 = vshrl.u32 %v350, 7
        %v352 = vsub.s32 0, %v351
        %v353 = vrot.slane %v348, %v352
        %vm355 = vcmask 130048
        %v357 = vsel %vm355, %v338, 0
        %v360 = vsel %vm355, %v339, 0
        %v363 = vsel %vm355, %v340, 0
        %v366 = vsel %vm355, %v341, 0
        %v369 = vsel %vm355, %v342, 0
        %v372 = vsel %vm355, %v343, 0
        %v375 = vsel %vm355, %v344, 0
        %v378 = vsel %vm355, %v345, 0
        %380 = vmatprep.subr.mxu0 0.0
        %381 = vmatpush1.msra.mxu0 %v346
        %382 = vmatprep.subr.mxu0 0.0
        %383 = vmatpush1.msra.mxu0 %v347
        %384 = vmatprep.subr.mxu0 0.0
        %385 = vmatpush1.msra.mxu0 0.0
        %386 = vmatprep.subr.mxu0 0.0
        %387 = vmatpush1.msra.mxu0 0.0
        %388 = vmatprep.subr.mxu0 0.0
        %389 = vmatpush1.msra.mxu0 0.0
        %390 = vmatprep.subr.mxu0 0.0
        %391 = vmatpush1.msra.mxu0 0.0
        %392 = vmatprep.subr.mxu0 0.0
        %393 = vmatpush1.msra.mxu0 0.0
        %394 = vmatprep.subr.mxu0 0.0
        %395 = vmatpush1.msra.mxu0 0.0
        %396 = vmatprep.subr.mxu0 0.0
        %397 = vmatpush1.msra.mxu0 0.0
        %398 = vmatprep.subr.mxu0 0.0
        %399 = vmatpush1.msra.mxu0 0.0
        %400 = vmatprep.subr.mxu0 0.0
        %401 = vmatpush1.msra.mxu0 0.0
        %402 = vmatprep.subr.mxu0 0.0
        %403 = vmatpush1.msra.mxu0 0.0
        %404 = vmatprep.subr.mxu0 0.0
        %405 = vmatpush1.msra.mxu0 0.0
        %406 = vmatprep.subr.mxu0 0.0
        %407 = vmatpush1.msra.mxu0 0.0
        %408 = vmatprep.subr.mxu0 0.0
        %409 = vmatpush1.msra.mxu0 0.0
        %410 = vmatprep.subr.mxu0 0.0
        %411 = vmatpush1.msra.mxu0 0.0
        %412 = vmatprep.subr.mxu0 0.0
        %413 = vmatpush1.msra.mxu0 0.0
        %414 = vmatprep.subr.mxu0 0.0
        %415 = vmatpush1.msra.mxu0 0.0
        %416 = vmatprep.subr.mxu0 0.0
        %417 = vmatpush1.msra.mxu0 0.0
        %418 = vmatprep.subr.mxu0 0.0
        %419 = vmatpush1.msra.mxu0 0.0
        %420 = vmatprep.subr.mxu0 0.0
        %421 = vmatpush1.msra.mxu0 0.0
        %422 = vmatprep.subr.mxu0 0.0
        %423 = vmatpush1.msra.mxu0 0.0
        %424 = vmatprep.subr.mxu0 0.0
        %425 = vmatpush1.msra.mxu0 0.0
        %426 = vmatprep.subr.mxu0 0.0
        %427 = vmatpush1.msra.mxu0 0.0
        %428 = vmatprep.subr.mxu0 0.0
        %429 = vmatpush1.msra.mxu0 0.0
        %430 = vmatprep.subr.mxu0 0.0
        %431 = vmatpush1.msra.mxu0 0.0
        %432 = vmatprep.subr.mxu0 0.0
        %433 = vmatpush1.msra.mxu0 0.0
        %434 = vmatprep.subr.mxu0 0.0
        %435 = vmatpush1.msra.mxu0 0.0
        %436 = vmatprep.subr.mxu0 0.0
        %437 = vmatpush1.msra.mxu0 0.0
        %438 = vmatprep.subr.mxu0 0.0
        %439 = vmatpush1.msra.mxu0 0.0
        %440 = vmatprep.subr.mxu0 0.0
        %441 = vmatpush1.msra.mxu0 0.0
        %442 = vmatprep.subr.mxu0 0.0
        %443 = vmatpush1.msra.mxu0 0.0
        %444 = vmatprep.mubr.f32.mxu0 0.0
        %445 = vmatmul.mubr.f32.gmra.mrb[0].mxu0 %v357
        %v446 = vpop.f32.mrb[0].mxu0
        %v447 = vadd.f32 %v353, %v446
        %v448 = vpop.f32.mrb[0].mxu0
        %449 = vmatprep.mubr.f32.mxu0 0.0
        %450 = vmatmul.mubr.f32.gmra.mrb[0].mxu0 %v360
        %v451 = vpop.f32.mrb[0].mxu0
        %v452 = vadd.f32 %v353, %v451
        %v453 = vpop.f32.mrb[0].mxu0
        %454 = vmatprep.mubr.f32.mxu0 0.0
        %455 = vmatmul.mubr.f32.gmra.mrb[0].mxu0 %v363
        %v456 = vpop.f32.mrb[0].mxu0
        %v457 = vadd.f32 %v353, %v456
        %v458 = vpop.f32.mrb[0].mxu0
        %459 = vmatprep.mubr.f32.mxu0 0.0
        %460 = vmatmul.mubr.f32.gmra.mrb[0].mxu0 %v366
        %v461 = vpop.f32.mrb[0].mxu0
        %v462 = vadd.f32 %v353, %v461
        %v463 = vpop.f32.mrb[0].mxu0
        %464 = vmatprep.mubr.f32.mxu0 0.0
        %465 = vmatmul.mubr.f32.gmra.mrb[0].mxu0 %v369
        %v466 = vpop.f32.mrb[0].mxu0
        %v467 = vadd.f32 %v353, %v466
        %v468 = vpop.f32.mrb[0].mxu0
        %469 = vmatprep.mubr.f32.mxu0 0.0
        %470 = vmatmul.mubr.f32.gmra.mrb[0].mxu0 %v372
        %v471 = vpop.f32.mrb[0].mxu0
        %v472 = vadd.f32 %v353, %v471
        %v473 = vpop.f32.mrb[0].mxu0
        %474 = vmatprep.mubr.f32.mxu0 0.0
        %475 = vmatmul.mubr.f32.gmra.mrb[0].mxu0 %v375
        %v476 = vpop.f32.mrb[0].mxu0
        %v477 = vadd.f32 %v353, %v476
        %v478 = vpop.f32.mrb[0].mxu0
        %479 = vmatprep.mubr.f32.mxu0 0.0
        %480 = vmatmul.mubr.f32.gmra.mrb[0].mxu0 %v378
        %v481 = vpop.f32.mrb[0].mxu0
        %v482 = vadd.f32 %v353, %v481
        %v483 = vpop.f32.mrb[0].mxu0
        %484 = vdwg.mxu0
        %vm485 = vcmask 523264
        %486 = vst.msk [vmem:[#allocation2] sm:$0xff] %vm485, %v447
        %487 = vst.msk [vmem:[#allocation2 + $0x8] sm:$0xff] %vm485, %v452
        %488 = vst.msk [vmem:[#allocation2 + $0x10] sm:$0xff] %vm485, %v457
        %489 = vst.msk [vmem:[#allocation2 + $0x18] sm:$0xff] %vm485, %v462
        %490 = vst.msk [vmem:[#allocation2 + $0x20] sm:$0xff] %vm485, %v467
        %491 = vst.msk [vmem:[#allocation2 + $0x28] sm:$0xff] %vm485, %v472
        %492 = vst.msk [vmem:[#allocation2 + $0x30] sm:$0xff] %vm485, %v477
        %493 = vst.msk [vmem:[#allocation2 + $0x38] sm:$0xff] %vm485, %v482
        %494 = vst.msk [vmem:[#allocation3] sm:$0xff] %vm355, 0.0
        %495 = vst.msk [vmem:[#allocation4] sm:$0xff] %vm355, 0.0
        %p496 = scmp.eq.s32.totalorder %s21, 0
        %s497 = scalar_select %p496, 0, 7
        %s498 = smul.u32 %s497, 8
        %s499 = scalar_lea.vmem [#allocation8], %s498
        %v500 = vld [vmem:[%s499] sm:$0xff]
        %s501 = scalar_lea.vmem [#allocation2], %s498
        %v502 = vld [vmem:[%s501] sm:$0xff]
        %v503 = vld [vmem:[#allocation3] sm:$0xff]
        %v504 = vld [vmem:[%s294] sm:$0xff]
        %v505 = vld [vmem:[%s294 + $0x8] sm:$0xff]
        %v507 = vsel %vm355, %v503, 0
        %509 = vmatprep.subr.mxu0 0.0
        %510 = vmatpush1.msra.mxu0 %v504
        %511 = vmatprep.subr.mxu0 0.0
        %512 = vmatpush1.msra.mxu0 %v505
        %513 = vmatprep.subr.mxu0 0.0
        %514 = vmatpush1.msra.mxu0 0.0
        %515 = vmatprep.subr.mxu0 0.0
        %516 = vmatpush1.msra.mxu0 0.0
        %517 = vmatprep.subr.mxu0 0.0
        %518 = vmatpush1.msra.mxu0 0.0
        %519 = vmatprep.subr.mxu0 0.0
        %520 = vmatpush1.msra.mxu0 0.0
        %521 = vmatprep.subr.mxu0 0.0
        %522 = vmatpush1.msra.mxu0 0.0
        %523 = vmatprep.subr.mxu0 0.0
        %524 = vmatpush1.msra.mxu0 0.0
        %525 = vmatprep.subr.mxu0 0.0
        %526 = vmatpush1.msra.mxu0 0.0
        %527 = vmatprep.subr.mxu0 0.0
        %528 = vmatpush1.msra.mxu0 0.0
        %529 = vmatprep.subr.mxu0 0.0
        %530 = vmatpush1.msra.mxu0 0.0
        %531 = vmatprep.subr.mxu0 0.0
        %532 = vmatpush1.msra.mxu0 0.0
        %533 = vmatprep.subr.mxu0 0.0
        %534 = vmatpush1.msra.mxu0 0.0
        %535 = vmatprep.subr.mxu0 0.0
        %536 = vmatpush1.msra.mxu0 0.0
        %537 = vmatprep.subr.mxu0 0.0
        %538 = vmatpush1.msra.mxu0 0.0
        %539 = vmatprep.subr.mxu0 0.0
        %540 = vmatpush1.msra.mxu0 0.0
        %541 = vmatprep.subr.mxu0 0.0
        %542 = vmatpush1.msra.mxu0 0.0
        %543 = vmatprep.subr.mxu0 0.0
        %544 = vmatpush1.msra.mxu0 0.0
        %545 = vmatprep.subr.mxu0 0.0
        %546 = vmatpush1.msra.mxu0 0.0
        %547 = vmatprep.subr.mxu0 0.0
        %548 = vmatpush1.msra.mxu0 0.0
        %549 = vmatprep.subr.mxu0 0.0
        %550 = vmatpush1.msra.mxu0 0.0
        %551 = vmatprep.subr.mxu0 0.0
        %552 = vmatpush1.msra.mxu0 0.0
        %553 = vmatprep.subr.mxu0 0.0
        %554 = vmatpush1.msra.mxu0 0.0
        %555 = vmatprep.subr.mxu0 0.0
        %556 = vmatpush1.msra.mxu0 0.0
        %557 = vmatprep.subr.mxu0 0.0
        %558 = vmatpush1.msra.mxu0 0.0
        %559 = vmatprep.subr.mxu0 0.0
        %560 = vmatpush1.msra.mxu0 0.0
        %561 = vmatprep.subr.mxu0 0.0
        %562 = vmatpush1.msra.mxu0 0.0
        %563 = vmatprep.subr.mxu0 0.0
        %564 = vmatpush1.msra.mxu0 0.0
        %565 = vmatprep.subr.mxu0 0.0
        %566 = vmatpush1.msra.mxu0 0.0
        %567 = vmatprep.subr.mxu0 0.0
        %568 = vmatpush1.msra.mxu0 0.0
        %569 = vmatprep.subr.mxu0 0.0
        %570 = vmatpush1.msra.mxu0 0.0
        %571 = vmatprep.subr.mxu0 0.0
        %572 = vmatpush1.msra.mxu0 0.0
        %573 = vmatprep.mubr.f32.mxu0 0.0
        %574 = vmatmul.mubr.f32.gmra.mrb[0].mxu0 %v507
        %v575 = vpop.f32.mrb[0].mxu0
        %v576 = vadd.f32 0.0, %v575
        %v577 = vpop.f32.mrb[0].mxu0
        %578 = vdwg.mxu0
        %v579 = vadd.f32 %v502, %v576
        %v580 = vmul.f32 %v579, 0.5
        %v581 = vtanh.pop %v580
        %v582 = vadd.f32 %v581, 1.0
        %v583 = vmul.f32 %v582, 0.5
        %v584 = vtanh.pop %v579
        %v585 = vld [vmem:[#allocation4] sm:$0xff]
        %587 = vrot.lane.b32.xlu0 %v585, 16
        %v588 = vpop.permute.xlu0 %587
        %v590 = vmul.f32 %v583, %v588
        %592 = vrot.lane.b32.xlu0 %v584, 96
        %v593 = vpop.permute.xlu0 %592
        %v595 = vmul.f32 %v583, %v593
        %597 = vrot.lane.b32.xlu0 %v595, 16
        %v598 = vpop.permute.xlu0 %597
        %v600 = vadd.f32 %v590, %v598
        %v601 = vtanh.pop %v600
        %603 = vrot.lane.b32.xlu0 %v601, 32
        %v604 = vpop.permute.xlu0 %603
        %v606 = vmul.f32 %v583, %v604
        %608 = vset.pattern.permute.xlu0 0
        %609 = vperm.xlu0 %608, %v500
        %v610 = vpop.permute.xlu0 %609
        %v612 = vmul.f32 %v610, %v600
        %v613 = vsub.f32 1.0, %v500
        %615 = vset.pattern.permute.xlu0 0
        %616 = vperm.xlu0 %615, %v613
        %v617 = vpop.permute.xlu0 %616
        %v619 = vmul.f32 %v617, %v585
        %621 = vrot.lane.b32.xlu0 %v619, 16
        %v622 = vpop.permute.xlu0 %621
        %v624 = vadd.f32 %v612, %v622
        %626 = vrot.lane.b32.xlu0 %v624, 112
        %v627 = vpop.permute.xlu0 %626
        %629 = vst.msk [vmem:[#allocation4] sm:$0xff] %vm355, %v627
        %v630 = vmul.f32 %v610, %v606
        %v631 = vld [vmem:[#allocation3] sm:$0xff]
        %v632 = vmul.f32 %v617, %v631
        %634 = vrot.lane.b32.xlu0 %v632, 48
        %v635 = vpop.permute.xlu0 %634
        %v637 = vadd.f32 %v630, %v635
        %639 = vrot.lane.b32.xlu0 %v637, 80
        %v640 = vpop.permute.xlu0 %639
        %642 = vst.msk [vmem:[#allocation3] sm:$0xff] %vm355, %v640
        %644 = vrot.lane.b32.xlu0 %v630, 80
        %v645 = vpop.permute.xlu0 %644
        %s647 = scalar_lea.vmem %s337, %s498 [#allocation13]
        %648 = vst.msk [vmem:[%s647] sm:$0xff] %vm355, %v645
        %s649 = scalar_select %p496, 1, 6
        %s650 = smul.u32 %s649, 8
        %s651 = scalar_lea.vmem [#allocation8], %s650
        %v652 = vld [vmem:[%s651] sm:$0xff]
        %s653 = scalar_lea.vmem [#allocation2], %s650
        %v654 = vld [vmem:[%s653] sm:$0xff]
        %v655 = vld [vmem:[#allocation3] sm:$0xff]
        %v656 = vld [vmem:[%s294] sm:$0xff]
        %v657 = vld [vmem:[%s294 + $0x8] sm:$0xff]
        %v659 = vsel %vm355, %v655, 0
        %661 = vmatprep.subr.mxu0 0.0
        %662 = vmatpush1.msra.mxu0 %v656
        %663 = vmatprep.subr.mxu0 0.0
        %664 = vmatpush1.msra.mxu0 %v657
        %665 = vmatprep.subr.mxu0 0.0
        %666 = vmatpush1.msra.mxu0 0.0
        %667 = vmatprep.subr.mxu0 0.0
        %668 = vmatpush1.msra.mxu0 0.0
        %669 = vmatprep.subr.mxu0 0.0
        %670 = vmatpush1.msra.mxu0 0.0
        %671 = vmatprep.subr.mxu0 0.0
        %672 = vmatpush1.msra.mxu0 0.0
        %673 = vmatprep.subr.mxu0 0.0
        %674 = vmatpush1.msra.mxu0 0.0
        %675 = vmatprep.subr.mxu0 0.0
        %676 = vmatpush1.msra.mxu0 0.0
        %677 = vmatprep.subr.mxu0 0.0
        %678 = vmatpush1.msra.mxu0 0.0
        %679 = vmatprep.subr.mxu0 0.0
        %680 = vmatpush1.msra.mxu0 0.0
        %681 = vmatprep.subr.mxu0 0.0
        %682 = vmatpush1.msra.mxu0 0.0
        %683 = vmatprep.subr.mxu0 0.0
        %684 = vmatpush1.msra.mxu0 0.0
        %685 = vmatprep.subr.mxu0 0.0
        %686 = vmatpush1.msra.mxu0 0.0
        %687 = vmatprep.subr.mxu0 0.0
        %688 = vmatpush1.msra.mxu0 0.0
        %689 = vmatprep.subr.mxu0 0.0
        %690 = vmatpush1.msra.mxu0 0.0
        %691 = vmatprep.subr.mxu0 0.0
        %692 = vmatpush1.msra.mxu0 0.0
        %693 = vmatprep.subr.mxu0 0.0
        %694 = vmatpush1.msra.mxu0 0.0
        %695 = vmatprep.subr.mxu0 0.0
        %696 = vmatpush1.msra.mxu0 0.0
        %697 = vmatprep.subr.mxu0 0.0
        %698 = vmatpush1.msra.mxu0 0.0
        %699 = vmatprep.subr.mxu0 0.0
        %700 = vmatpush1.msra.mxu0 0.0
        %701 = vmatprep.subr.mxu0 0.0
        %702 = vmatpush1.msra.mxu0 0.0
        %703 = vmatprep.subr.mxu0 0.0
        %704 = vmatpush1.msra.mxu0 0.0
        %705 = vmatprep.subr.mxu0 0.0
        %706 = vmatpush1.msra.mxu0 0.0
        %707 = vmatprep.subr.mxu0 0.0
        %708 = vmatpush1.msra.mxu0 0.0
        %709 = vmatprep.subr.mxu0 0.0
        %710 = vmatpush1.msra.mxu0 0.0
        %711 = vmatprep.subr.mxu0 0.0
        %712 = vmatpush1.msra.mxu0 0.0
        %713 = vmatprep.subr.mxu0 0.0
        %714 = vmatpush1.msra.mxu0 0.0
        %715 = vmatprep.subr.mxu0 0.0
        %716 = vmatpush1.msra.mxu0 0.0
        %717 = vmatprep.subr.mxu0 0.0
        %718 = vmatpush1.msra.mxu0 0.0
        %719 = vmatprep.subr.mxu0 0.0
        %720 = vmatpush1.msra.mxu0 0.0
        %721 = vmatprep.subr.mxu0 0.0
        %722 = vmatpush1.msra.mxu0 0.0
        %723 = vmatprep.subr.mxu0 0.0
        %724 = vmatpush1.msra.mxu0 0.0
        %725 = vmatprep.mubr.f32.mxu0 0.0
        %726 = vmatmul.mubr.f32.gmra.mrb[0].mxu0 %v659
        %v727 = vpop.f32.mrb[0].mxu0
        %v728 = vadd.f32 0.0, %v727
        %v729 = vpop.f32.mrb[0].mxu0
        %730 = vdwg.mxu0
        %v731 = vadd.f32 %v654, %v728
        %v732 = vmul.f32 %v731, 0.5
        %v733 = vtanh.pop %v732
        %v734 = vadd.f32 %v733, 1.0
        %v735 = vmul.f32 %v734, 0.5
        %v736 = vtanh.pop %v731
        %v737 = vld [vmem:[#allocation4] sm:$0xff]
        %739 = vrot.lane.b32.xlu0 %v737, 16
        %v740 = vpop.permute.xlu0 %739
        %v742 = vmul.f32 %v735, %v740
        %744 = vrot.lane.b32.xlu0 %v736, 96
        %v745 = vpop.permute.xlu0 %744
        %v747 = vmul.f32 %v735, %v745
        %749 = vrot.lane.b32.xlu0 %v747, 16
        %v750 = vpop.permute.xlu0 %749
        %v752 = vadd.f32 %v742, %v750
        %v753 = vtanh.pop %v752
        %755 = vrot.lane.b32.xlu0 %v753, 32
        %v756 = vpop.permute.xlu0 %755
        %v758 = vmul.f32 %v735, %v756
        %760 = vset.pattern.permute.xlu0 0
        %761 = vperm.xlu0 %760, %v652
        %v762 = vpop.permute.xlu0 %761
        %v764 = vmul.f32 %v762, %v752
        %v765 = vsub.f32 1.0, %v652
        %767 = vset.pattern.permute.xlu0 0
        %768 = vperm.xlu0 %767, %v765
        %v769 = vpop.permute.xlu0 %768
        %v771 = vmul.f32 %v769, %v737
        %773 = vrot.lane.b32.xlu0 %v771, 16
        %v774 = vpop.permute.xlu0 %773
        %v776 = vadd.f32 %v764, %v774
        %778 = vrot.lane.b32.xlu0 %v776, 112
        %v779 = vpop.permute.xlu0 %778
        %781 = vst.msk [vmem:[#allocation4] sm:$0xff] %vm355, %v779
        %v782 = vmul.f32 %v762, %v758
        %v783 = vld [vmem:[#allocation3] sm:$0xff]
        %v784 = vmul.f32 %v769, %v783
        %786 = vrot.lane.b32.xlu0 %v784, 48
        %v787 = vpop.permute.xlu0 %786
        %v789 = vadd.f32 %v782, %v787
        %791 = vrot.lane.b32.xlu0 %v789, 80
        %v792 = vpop.permute.xlu0 %791
        %794 = vst.msk [vmem:[#allocation3] sm:$0xff] %vm355, %v792
        %796 = vrot.lane.b32.xlu0 %v782, 80
        %v797 = vpop.permute.xlu0 %796
        %s799 = scalar_lea.vmem %s337, %s650 [#allocation13]
        %800 = vst.msk [vmem:[%s799] sm:$0xff] %vm355, %v797
        %s801 = scalar_select %p496, 2, 5
        %s802 = smul.u32 %s801, 8
        %s803 = scalar_lea.vmem [#allocation8], %s802
        %v804 = vld [vmem:[%s803] sm:$0xff]
        %s805 = scalar_lea.vmem [#allocation2], %s802
        %v806 = vld [vmem:[%s805] sm:$0xff]
        %v807 = vld [vmem:[#allocation3] sm:$0xff]
        %v808 = vld [vmem:[%s294] sm:$0xff]
        %v809 = vld [vmem:[%s294 + $0x8] sm:$0xff]
        %v811 = vsel %vm355, %v807, 0
        %813 = vmatprep.subr.mxu0 0.0
        %814 = vmatpush1.msra.mxu0 %v808
        %815 = vmatprep.subr.mxu0 0.0
        %816 = vmatpush1.msra.mxu0 %v809
        %817 = vmatprep.subr.mxu0 0.0
        %818 = vmatpush1.msra.mxu0 0.0
        %819 = vmatprep.subr.mxu0 0.0
        %820 = vmatpush1.msra.mxu0 0.0
        %821 = vmatprep.subr.mxu0 0.0
        %822 = vmatpush1.msra.mxu0 0.0
        %823 = vmatprep.subr.mxu0 0.0
        %824 = vmatpush1.msra.mxu0 0.0
        %825 = vmatprep.subr.mxu0 0.0
        %826 = vmatpush1.msra.mxu0 0.0
        %827 = vmatprep.subr.mxu0 0.0
        %828 = vmatpush1.msra.mxu0 0.0
        %829 = vmatprep.subr.mxu0 0.0
        %830 = vmatpush1.msra.mxu0 0.0
        %831 = vmatprep.subr.mxu0 0.0
        %832 = vmatpush1.msra.mxu0 0.0
        %833 = vmatprep.subr.mxu0 0.0
        %834 = vmatpush1.msra.mxu0 0.0
        %835 = vmatprep.subr.mxu0 0.0
        %836 = vmatpush1.msra.mxu0 0.0
        %837 = vmatprep.subr.mxu0 0.0
        %838 = vmatpush1.msra.mxu0 0.0
        %839 = vmatprep.subr.mxu0 0.0
        %840 = vmatpush1.msra.mxu0 0.0
        %841 = vmatprep.subr.mxu0 0.0
        %842 = vmatpush1.msra.mxu0 0.0
        %843 = vmatprep.subr.mxu0 0.0
        %844 = vmatpush1.msra.mxu0 0.0
        %845 = vmatprep.subr.mxu0 0.0
        %846 = vmatpush1.msra.mxu0 0.0
        %847 = vmatprep.subr.mxu0 0.0
        %848 = vmatpush1.msra.mxu0 0.0
        %849 = vmatprep.subr.mxu0 0.0
        %850 = vmatpush1.msra.mxu0 0.0
        %851 = vmatprep.subr.mxu0 0.0
        %852 = vmatpush1.msra.mxu0 0.0
        %853 = vmatprep.subr.mxu0 0.0
        %854 = vmatpush1.msra.mxu0 0.0
        %855 = vmatprep.subr.mxu0 0.0
        %856 = vmatpush1.msra.mxu0 0.0
        %857 = vmatprep.subr.mxu0 0.0
        %858 = vmatpush1.msra.mxu0 0.0
        %859 = vmatprep.subr.mxu0 0.0
        %860 = vmatpush1.msra.mxu0 0.0
        %861 = vmatprep.subr.mxu0 0.0
        %862 = vmatpush1.msra.mxu0 0.0
        %863 = vmatprep.subr.mxu0 0.0
        %864 = vmatpush1.msra.mxu0 0.0
        %865 = vmatprep.subr.mxu0 0.0
        %866 = vmatpush1.msra.mxu0 0.0
        %867 = vmatprep.subr.mxu0 0.0
        %868 = vmatpush1.msra.mxu0 0.0
        %869 = vmatprep.subr.mxu0 0.0
        %870 = vmatpush1.msra.mxu0 0.0
        %871 = vmatprep.subr.mxu0 0.0
        %872 = vmatpush1.msra.mxu0 0.0
        %873 = vmatprep.subr.mxu0 0.0
        %874 = vmatpush1.msra.mxu0 0.0
        %875 = vmatprep.subr.mxu0 0.0
        %876 = vmatpush1.msra.mxu0 0.0
        %877 = vmatprep.mubr.f32.mxu0 0.0
        %878 = vmatmul.mubr.f32.gmra.mrb[0].mxu0 %v811
        %v879 = vpop.f32.mrb[0].mxu0
        %v880 = vadd.f32 0.0, %v879
        %v881 = vpop.f32.mrb[0].mxu0
        %882 = vdwg.mxu0
        %v883 = vadd.f32 %v806, %v880
        %v884 = vmul.f32 %v883, 0.5
        %v885 = vtanh.pop %v884
        %v886 = vadd.f32 %v885, 1.0
        %v887 = vmul.f32 %v886, 0.5
        %v888 = vtanh.pop %v883
        %v889 = vld [vmem:[#allocation4] sm:$0xff]
        %891 = vrot.lane.b32.xlu0 %v889, 16
        %v892 = vpop.permute.xlu0 %891
        %v894 = vmul.f32 %v887, %v892
        %896 = vrot.lane.b32.xlu0 %v888, 96
        %v897 = vpop.permute.xlu0 %896
        %v899 = vmul.f32 %v887, %v897
        %901 = vrot.lane.b32.xlu0 %v899, 16
        %v902 = vpop.permute.xlu0 %901
        %v904 = vadd.f32 %v894, %v902
        %v905 = vtanh.pop %v904
        %907 = vrot.lane.b32.xlu0 %v905, 32
        %v908 = vpop.permute.xlu0 %907
        %v910 = vmul.f32 %v887, %v908
        %912 = vset.pattern.permute.xlu0 0
        %913 = vperm.xlu0 %912, %v804
        %v914 = vpop.permute.xlu0 %913
        %v916 = vmul.f32 %v914, %v904
        %v917 = vsub.f32 1.0, %v804
        %919 = vset.pattern.permute.xlu0 0
        %920 = vperm.xlu0 %919, %v917
        %v921 = vpop.permute.xlu0 %920
        %v923 = vmul.f32 %v921, %v889
        %925 = vrot.lane.b32.xlu0 %v923, 16
        %v926 = vpop.permute.xlu0 %925
        %v928 = vadd.f32 %v916, %v926
        %930 = vrot.lane.b32.xlu0 %v928, 112
        %v931 = vpop.permute.xlu0 %930
        %933 = vst.msk [vmem:[#allocation4] sm:$0xff] %vm355, %v931
        %v934 = vmul.f32 %v914, %v910
        %v935 = vld [vmem:[#allocation3] sm:$0xff]
        %v936 = vmul.f32 %v921, %v935
        %938 = vrot.lane.b32.xlu0 %v936, 48
        %v939 = vpop.permute.xlu0 %938
        %v941 = vadd.f32 %v934, %v939
        %943 = vrot.lane.b32.xlu0 %v941, 80
        %v944 = vpop.permute.xlu0 %943
        %946 = vst.msk [vmem:[#allocation3] sm:$0xff] %vm355, %v944
        %948 = vrot.lane.b32.xlu0 %v934, 80
        %v949 = vpop.permute.xlu0 %948
        %s951 = scalar_lea.vmem %s337, %s802 [#allocation13]
        %952 = vst.msk [vmem:[%s951] sm:$0xff] %vm355, %v949
        %s953 = scalar_select %p496, 3, 4
        %s954 = smul.u32 %s953, 8
        %s955 = scalar_lea.vmem [#allocation8], %s954
        %v956 = vld [vmem:[%s955] sm:$0xff]
        %s957 = scalar_lea.vmem [#allocation2], %s954
        %v958 = vld [vmem:[%s957] sm:$0xff]
        %v959 = vld [vmem:[#allocation3] sm:$0xff]
        %v960 = vld [vmem:[%s294] sm:$0xff]
        %v961 = vld [vmem:[%s294 + $0x8] sm:$0xff]
        %v963 = vsel %vm355, %v959, 0
        %965 = vmatprep.subr.mxu0 0.0
        %966 = vmatpush1.msra.mxu0 %v960
        %967 = vmatprep.subr.mxu0 0.0
        %968 = vmatpush1.msra.mxu0 %v961
        %969 = vmatprep.subr.mxu0 0.0
        %970 = vmatpush1.msra.mxu0 0.0
        %971 = vmatprep.subr.mxu0 0.0
        %972 = vmatpush1.msra.mxu0 0.0
        %973 = vmatprep.subr.mxu0 0.0
        %974 = vmatpush1.msra.mxu0 0.0
        %975 = vmatprep.subr.mxu0 0.0
        %976 = vmatpush1.msra.mxu0 0.0
        %977 = vmatprep.subr.mxu0 0.0
        %978 = vmatpush1.msra.mxu0 0.0
        %979 = vmatprep.subr.mxu0 0.0
        %980 = vmatpush1.msra.mxu0 0.0
        %981 = vmatprep.subr.mxu0 0.0
        %982 = vmatpush1.msra.mxu0 0.0
        %983 = vmatprep.subr.mxu0 0.0
        %984 = vmatpush1.msra.mxu0 0.0
        %985 = vmatprep.subr.mxu0 0.0
        %986 = vmatpush1.msra.mxu0 0.0
        %987 = vmatprep.subr.mxu0 0.0
        %988 = vmatpush1.msra.mxu0 0.0
        %989 = vmatprep.subr.mxu0 0.0
        %990 = vmatpush1.msra.mxu0 0.0
        %991 = vmatprep.subr.mxu0 0.0
        %992 = vmatpush1.msra.mxu0 0.0
        %993 = vmatprep.subr.mxu0 0.0
        %994 = vmatpush1.msra.mxu0 0.0
        %995 = vmatprep.subr.mxu0 0.0
        %996 = vmatpush1.msra.mxu0 0.0
        %997 = vmatprep.subr.mxu0 0.0
        %998 = vmatpush1.msra.mxu0 0.0
        %999 = vmatprep.subr.mxu0 0.0
        %1000 = vmatpush1.msra.mxu0 0.0
        %1001 = vmatprep.subr.mxu0 0.0
        %1002 = vmatpush1.msra.mxu0 0.0
        %1003 = vmatprep.subr.mxu0 0.0
        %1004 = vmatpush1.msra.mxu0 0.0
        %1005 = vmatprep.subr.mxu0 0.0
        %1006 = vmatpush1.msra.mxu0 0.0
        %1007 = vmatprep.subr.mxu0 0.0
        %1008 = vmatpush1.msra.mxu0 0.0
        %1009 = vmatprep.subr.mxu0 0.0
        %1010 = vmatpush1.msra.mxu0 0.0
        %1011 = vmatprep.subr.mxu0 0.0
        %1012 = vmatpush1.msra.mxu0 0.0
        %1013 = vmatprep.subr.mxu0 0.0
        %1014 = vmatpush1.msra.mxu0 0.0
        %1015 = vmatprep.subr.mxu0 0.0
        %1016 = vmatpush1.msra.mxu0 0.0
        %1017 = vmatprep.subr.mxu0 0.0
        %1018 = vmatpush1.msra.mxu0 0.0
        %1019 = vmatprep.subr.mxu0 0.0
        %1020 = vmatpush1.msra.mxu0 0.0
        %1021 = vmatprep.subr.mxu0 0.0
        %1022 = vmatpush1.msra.mxu0 0.0
        %1023 = vmatprep.subr.mxu0 0.0
        %1024 = vmatpush1.msra.mxu0 0.0
        %1025 = vmatprep.subr.mxu0 0.0
        %1026 = vmatpush1.msra.mxu0 0.0
        %1027 = vmatprep.subr.mxu0 0.0
        %1028 = vmatpush1.msra.mxu0 0.0
        %1029 = vmatprep.mubr.f32.mxu0 0.0
        %1030 = vmatmul.mubr.f32.gmra.mrb[0].mxu0 %v963
        %v1031 = vpop.f32.mrb[0].mxu0
        %v1032 = vadd.f32 0.0, %v1031
        %v1033 = vpop.f32.mrb[0].mxu0
        %1034 = vdwg.mxu0
        %v1035 = vadd.f32 %v958, %v1032
        %v1036 = vmul.f32 %v1035, 0.5
        %v1037 = vtanh.pop %v1036
        %v1038 = vadd.f32 %v1037, 1.0
        %v1039 = vmul.f32 %v1038, 0.5
        %v1040 = vtanh.pop %v1035
        %v1041 = vld [vmem:[#allocation4] sm:$0xff]
        %1043 = vrot.lane.b32.xlu0 %v1041, 16
        %v1044 = vpop.permute.xlu0 %1043
        %v1046 = vmul.f32 %v1039, %v1044
        %1048 = vrot.lane.b32.xlu0 %v1040, 96
        %v1049 = vpop.permute.xlu0 %1048
        %v1051 = vmul.f32 %v1039, %v1049
        %1053 = vrot.lane.b32.xlu0 %v1051, 16
        %v1054 = vpop.permute.xlu0 %1053
        %v1056 = vadd.f32 %v1046, %v1054
        %v1057 = vtanh.pop %v1056
        %1059 = vrot.lane.b32.xlu0 %v1057, 32
        %v1060 = vpop.permute.xlu0 %1059
        %v1062 = vmul.f32 %v1039, %v1060
        %1064 = vset.pattern.permute.xlu0 0
        %1065 = vperm.xlu0 %1064, %v956
        %v1066 = vpop.permute.xlu0 %1065
        %v1068 = vmul.f32 %v1066, %v1056
        %v1069 = vsub.f32 1.0, %v956
        %1071 = vset.pattern.permute.xlu0 0
        %1072 = vperm.xlu0 %1071, %v1069
        %v1073 = vpop.permute.xlu0 %1072
        %v1075 = vmul.f32 %v1073, %v1041
        %1077 = vrot.lane.b32.xlu0 %v1075, 16
        %v1078 = vpop.permute.xlu0 %1077
        %v1080 = vadd.f32 %v1068, %v1078
        %1082 = vrot.lane.b32.xlu0 %v1080, 112
        %v1083 = vpop.permute.xlu0 %1082
        %1085 = vst.msk [vmem:[#allocation4] sm:$0xff] %vm355, %v1083
        %v1086 = vmul.f32 %v1066, %v1062
        %v1087 = vld [vmem:[#allocation3] sm:$0xff]
        %v1088 = vmul.f32 %v1073, %v1087
        %1090 = vrot.lane.b32.xlu0 %v1088, 48
        %v1091 = vpop.permute.xlu0 %1090
        %v1093 = vadd.f32 %v1086, %v1091
        %1095 = vrot.lane.b32.xlu0 %v1093, 80
        %v1096 = vpop.permute.xlu0 %1095
        %1098 = vst.msk [vmem:[#allocation3] sm:$0xff] %vm355, %v1096
        %1100 = vrot.lane.b32.xlu0 %v1086, 80
        %v1101 = vpop.permute.xlu0 %1100
        %s1103 = scalar_lea.vmem %s337, %s954 [#allocation13]
        %1104 = vst.msk [vmem:[%s1103] sm:$0xff] %vm355, %v1101
        %s1105 = scalar_select %p496, 4, 3
        %s1106 = smul.u32 %s1105, 8
        %s1107 = scalar_lea.vmem [#allocation8], %s1106
        %v1108 = vld [vmem:[%s1107] sm:$0xff]
        %s1109 = scalar_lea.vmem [#allocation2], %s1106
        %v1110 = vld [vmem:[%s1109] sm:$0xff]
        %v1111 = vld [vmem:[#allocation3] sm:$0xff]
        %v1112 = vld [vmem:[%s294] sm:$0xff]
        %v1113 = vld [vmem:[%s294 + $0x8] sm:$0xff]
        %v1115 = vsel %vm355, %v1111, 0
        %1117 = vmatprep.subr.mxu0 0.0
        %1118 = vmatpush1.msra.mxu0 %v1112
        %1119 = vmatprep.subr.mxu0 0.0
        %1120 = vmatpush1.msra.mxu0 %v1113
        %1121 = vmatprep.subr.mxu0 0.0
        %1122 = vmatpush1.msra.mxu0 0.0
        %1123 = vmatprep.subr.mxu0 0.0
        %1124 = vmatpush1.msra.mxu0 0.0
        %1125 = vmatprep.subr.mxu0 0.0
        %1126 = vmatpush1.msra.mxu0 0.0
        %1127 = vmatprep.subr.mxu0 0.0
        %1128 = vmatpush1.msra.mxu0 0.0
        %1129 = vmatprep.subr.mxu0 0.0
        %1130 = vmatpush1.msra.mxu0 0.0
        %1131 = vmatprep.subr.mxu0 0.0
        %1132 = vmatpush1.msra.mxu0 0.0
        %1133 = vmatprep.subr.mxu0 0.0
        %1134 = vmatpush1.msra.mxu0 0.0
        %1135 = vmatprep.subr.mxu0 0.0
        %1136 = vmatpush1.msra.mxu0 0.0
        %1137 = vmatprep.subr.mxu0 0.0
        %1138 = vmatpush1.msra.mxu0 0.0
        %1139 = vmatprep.subr.mxu0 0.0
        %1140 = vmatpush1.msra.mxu0 0.0
        %1141 = vmatprep.subr.mxu0 0.0
        %1142 = vmatpush1.msra.mxu0 0.0
        %1143 = vmatprep.subr.mxu0 0.0
        %1144 = vmatpush1.msra.mxu0 0.0
        %1145 = vmatprep.subr.mxu0 0.0
        %1146 = vmatpush1.msra.mxu0 0.0
        %1147 = vmatprep.subr.mxu0 0.0
        %1148 = vmatpush1.msra.mxu0 0.0
        %1149 = vmatprep.subr.mxu0 0.0
        %1150 = vmatpush1.msra.mxu0 0.0
        %1151 = vmatprep.subr.mxu0 0.0
        %1152 = vmatpush1.msra.mxu0 0.0
        %1153 = vmatprep.subr.mxu0 0.0
        %1154 = vmatpush1.msra.mxu0 0.0
        %1155 = vmatprep.subr.mxu0 0.0
        %1156 = vmatpush1.msra.mxu0 0.0
        %1157 = vmatprep.subr.mxu0 0.0
        %1158 = vmatpush1.msra.mxu0 0.0
        %1159 = vmatprep.subr.mxu0 0.0
        %1160 = vmatpush1.msra.mxu0 0.0
        %1161 = vmatprep.subr.mxu0 0.0
        %1162 = vmatpush1.msra.mxu0 0.0
        %1163 = vmatprep.subr.mxu0 0.0
        %1164 = vmatpush1.msra.mxu0 0.0
        %1165 = vmatprep.subr.mxu0 0.0
        %1166 = vmatpush1.msra.mxu0 0.0
        %1167 = vmatprep.subr.mxu0 0.0
        %1168 = vmatpush1.msra.mxu0 0.0
        %1169 = vmatprep.subr.mxu0 0.0
        %1170 = vmatpush1.msra.mxu0 0.0
        %1171 = vmatprep.subr.mxu0 0.0
        %1172 = vmatpush1.msra.mxu0 0.0
        %1173 = vmatprep.subr.mxu0 0.0
        %1174 = vmatpush1.msra.mxu0 0.0
        %1175 = vmatprep.subr.mxu0 0.0
        %1176 = vmatpush1.msra.mxu0 0.0
        %1177 = vmatprep.subr.mxu0 0.0
        %1178 = vmatpush1.msra.mxu0 0.0
        %1179 = vmatprep.subr.mxu0 0.0
        %1180 = vmatpush1.msra.mxu0 0.0
        %1181 = vmatprep.mubr.f32.mxu0 0.0
        %1182 = vmatmul.mubr.f32.gmra.mrb[0].mxu0 %v1115
        %v1183 = vpop.f32.mrb[0].mxu0
        %v1184 = vadd.f32 0.0, %v1183
        %v1185 = vpop.f32.mrb[0].mxu0
        %1186 = vdwg.mxu0
        %v1187 = vadd.f32 %v1110, %v1184
        %v1188 = vmul.f32 %v1187, 0.5
        %v1189 = vtanh.pop %v1188
        %v1190 = vadd.f32 %v1189, 1.0
        %v1191 = vmul.f32 %v1190, 0.5
        %v1192 = vtanh.pop %v1187
        %v1193 = vld [vmem:[#allocation4] sm:$0xff]
        %1195 = vrot.lane.b32.xlu0 %v1193, 16
        %v1196 = vpop.permute.xlu0 %1195
        %v1198 = vmul.f32 %v1191, %v1196
        %1200 = vrot.lane.b32.xlu0 %v1192, 96
        %v1201 = vpop.permute.xlu0 %1200
        %v1203 = vmul.f32 %v1191, %v1201
        %1205 = vrot.lane.b32.xlu0 %v1203, 16
        %v1206 = vpop.permute.xlu0 %1205
        %v1208 = vadd.f32 %v1198, %v1206
        %v1209 = vtanh.pop %v1208
        %1211 = vrot.lane.b32.xlu0 %v1209, 32
        %v1212 = vpop.permute.xlu0 %1211
        %v1214 = vmul.f32 %v1191, %v1212
        %1216 = vset.pattern.permute.xlu0 0
        %1217 = vperm.xlu0 %1216, %v1108
        %v1218 = vpop.permute.xlu0 %1217
        %v1220 = vmul.f32 %v1218, %v1208
        %v1221 = vsub.f32 1.0, %v1108
        %1223 = vset.pattern.permute.xlu0 0
        %1224 = vperm.xlu0 %1223, %v1221
        %v1225 = vpop.permute.xlu0 %1224
        %v1227 = vmul.f32 %v1225, %v1193
        %1229 = vrot.lane.b32.xlu0 %v1227, 16
        %v1230 = vpop.permute.xlu0 %1229
        %v1232 = vadd.f32 %v1220, %v1230
        %1234 = vrot.lane.b32.xlu0 %v1232, 112
        %v1235 = vpop.permute.xlu0 %1234
        %1237 = vst.msk [vmem:[#allocation4] sm:$0xff] %vm355, %v1235
        %v1238 = vmul.f32 %v1218, %v1214
        %v1239 = vld [vmem:[#allocation3] sm:$0xff]
        %v1240 = vmul.f32 %v1225, %v1239
        %1242 = vrot.lane.b32.xlu0 %v1240, 48
        %v1243 = vpop.permute.xlu0 %1242
        %v1245 = vadd.f32 %v1238, %v1243
        %1247 = vrot.lane.b32.xlu0 %v1245, 80
        %v1248 = vpop.permute.xlu0 %1247
        %1250 = vst.msk [vmem:[#allocation3] sm:$0xff] %vm355, %v1248
        %1252 = vrot.lane.b32.xlu0 %v1238, 80
        %v1253 = vpop.permute.xlu0 %1252
        %s1255 = scalar_lea.vmem %s337, %s1106 [#allocation13]
        %1256 = vst.msk [vmem:[%s1255] sm:$0xff] %vm355, %v1253
        %s1257 = scalar_select %p496, 5, 2
        %s1258 = smul.u32 %s1257, 8
        %s1259 = scalar_lea.vmem [#allocation8], %s1258
        %v1260 = vld [vmem:[%s1259] sm:$0xff]
        %s1261 = scalar_lea.vmem [#allocation2], %s1258
        %v1262 = vld [vmem:[%s1261] sm:$0xff]
        %v1263 = vld [vmem:[#allocation3] sm:$0xff]
        %v1264 = vld [vmem:[%s294] sm:$0xff]
        %v1265 = vld [vmem:[%s294 + $0x8] sm:$0xff]
        %v1267 = vsel %vm355, %v1263, 0
        %1269 = vmatprep.subr.mxu0 0.0
        %1270 = vmatpush1.msra.mxu0 %v1264
        %1271 = vmatprep.subr.mxu0 0.0
        %1272 = vmatpush1.msra.mxu0 %v1265
        %1273 = vmatprep.subr.mxu0 0.0
        %1274 = vmatpush1.msra.mxu0 0.0
        %1275 = vmatprep.subr.mxu0 0.0
        %1276 = vmatpush1.msra.mxu0 0.0
        %1277 = vmatprep.subr.mxu0 0.0
        %1278 = vmatpush1.msra.mxu0 0.0
        %1279 = vmatprep.subr.mxu0 0.0
        %1280 = vmatpush1.msra.mxu0 0.0
        %1281 = vmatprep.subr.mxu0 0.0
        %1282 = vmatpush1.msra.mxu0 0.0
        %1283 = vmatprep.subr.mxu0 0.0
        %1284 = vmatpush1.msra.mxu0 0.0
        %1285 = vmatprep.subr.mxu0 0.0
        %1286 = vmatpush1.msra.mxu0 0.0
        %1287 = vmatprep.subr.mxu0 0.0
        %1288 = vmatpush1.msra.mxu0 0.0
        %1289 = vmatprep.subr.mxu0 0.0
        %1290 = vmatpush1.msra.mxu0 0.0
        %1291 = vmatprep.subr.mxu0 0.0
        %1292 = vmatpush1.msra.mxu0 0.0
        %1293 = vmatprep.subr.mxu0 0.0
        %1294 = vmatpush1.msra.mxu0 0.0
        %1295 = vmatprep.subr.mxu0 0.0
        %1296 = vmatpush1.msra.mxu0 0.0
        %1297 = vmatprep.subr.mxu0 0.0
        %1298 = vmatpush1.msra.mxu0 0.0
        %1299 = vmatprep.subr.mxu0 0.0
        %1300 = vmatpush1.msra.mxu0 0.0
        %1301 = vmatprep.subr.mxu0 0.0
        %1302 = vmatpush1.msra.mxu0 0.0
        %1303 = vmatprep.subr.mxu0 0.0
        %1304 = vmatpush1.msra.mxu0 0.0
        %1305 = vmatprep.subr.mxu0 0.0
        %1306 = vmatpush1.msra.mxu0 0.0
        %1307 = vmatprep.subr.mxu0 0.0
        %1308 = vmatpush1.msra.mxu0 0.0
        %1309 = vmatprep.subr.mxu0 0.0
        %1310 = vmatpush1.msra.mxu0 0.0
        %1311 = vmatprep.subr.mxu0 0.0
        %1312 = vmatpush1.msra.mxu0 0.0
        %1313 = vmatprep.subr.mxu0 0.0
        %1314 = vmatpush1.msra.mxu0 0.0
        %1315 = vmatprep.subr.mxu0 0.0
        %1316 = vmatpush1.msra.mxu0 0.0
        %1317 = vmatprep.subr.mxu0 0.0
        %1318 = vmatpush1.msra.mxu0 0.0
        %1319 = vmatprep.subr.mxu0 0.0
        %1320 = vmatpush1.msra.mxu0 0.0
        %1321 = vmatprep.subr.mxu0 0.0
        %1322 = vmatpush1.msra.mxu0 0.0
        %1323 = vmatprep.subr.mxu0 0.0
        %1324 = vmatpush1.msra.mxu0 0.0
        %1325 = vmatprep.subr.mxu0 0.0
        %1326 = vmatpush1.msra.mxu0 0.0
        %1327 = vmatprep.subr.mxu0 0.0
        %1328 = vmatpush1.msra.mxu0 0.0
        %1329 = vmatprep.subr.mxu0 0.0
        %1330 = vmatpush1.msra.mxu0 0.0
        %1331 = vmatprep.subr.mxu0 0.0
        %1332 = vmatpush1.msra.mxu0 0.0
        %1333 = vmatprep.mubr.f32.mxu0 0.0
        %1334 = vmatmul.mubr.f32.gmra.mrb[0].mxu0 %v1267
        %v1335 = vpop.f32.mrb[0].mxu0
        %v1336 = vadd.f32 0.0, %v1335
        %v1337 = vpop.f32.mrb[0].mxu0
        %1338 = vdwg.mxu0
        %v1339 = vadd.f32 %v1262, %v1336
        %v1340 = vmul.f32 %v1339, 0.5
        %v1341 = vtanh.pop %v1340
        %v1342 = vadd.f32 %v1341, 1.0
        %v1343 = vmul.f32 %v1342, 0.5
        %v1344 = vtanh.pop %v1339
        %v1345 = vld [vmem:[#allocation4] sm:$0xff]
        %1347 = vrot.lane.b32.xlu0 %v1345, 16
        %v1348 = vpop.permute.xlu0 %1347
        %v1350 = vmul.f32 %v1343, %v1348
        %1352 = vrot.lane.b32.xlu0 %v1344, 96
        %v1353 = vpop.permute.xlu0 %1352
        %v1355 = vmul.f32 %v1343, %v1353
        %1357 = vrot.lane.b32.xlu0 %v1355, 16
        %v1358 = vpop.permute.xlu0 %1357
        %v1360 = vadd.f32 %v1350, %v1358
        %v1361 = vtanh.pop %v1360
        %1363 = vrot.lane.b32.xlu0 %v1361, 32
        %v1364 = vpop.permute.xlu0 %1363
        %v1366 = vmul.f32 %v1343, %v1364
        %1368 = vset.pattern.permute.xlu0 0
        %1369 = vperm.xlu0 %1368, %v1260
        %v1370 = vpop.permute.xlu0 %1369
        %v1372 = vmul.f32 %v1370, %v1360
        %v1373 = vsub.f32 1.0, %v1260
        %1375 = vset.pattern.permute.xlu0 0
        %1376 = vperm.xlu0 %1375, %v1373
        %v1377 = vpop.permute.xlu0 %1376
        %v1379 = vmul.f32 %v1377, %v1345
        %1381 = vrot.lane.b32.xlu0 %v1379, 16
        %v1382 = vpop.permute.xlu0 %1381
        %v1384 = vadd.f32 %v1372, %v1382
        %1386 = vrot.lane.b32.xlu0 %v1384, 112
        %v1387 = vpop.permute.xlu0 %1386
        %1389 = vst.msk [vmem:[#allocation4] sm:$0xff] %vm355, %v1387
        %v1390 = vmul.f32 %v1370, %v1366
        %v1391 = vld [vmem:[#allocation3] sm:$0xff]
        %v1392 = vmul.f32 %v1377, %v1391
        %1394 = vrot.lane.b32.xlu0 %v1392, 48
        %v1395 = vpop.permute.xlu0 %1394
        %v1397 = vadd.f32 %v1390, %v1395
        %1399 = vrot.lane.b32.xlu0 %v1397, 80
        %v1400 = vpop.permute.xlu0 %1399
        %1402 = vst.msk [vmem:[#allocation3] sm:$0xff] %vm355, %v1400
        %1404 = vrot.lane.b32.xlu0 %v1390, 80
        %v1405 = vpop.permute.xlu0 %1404
        %s1407 = scalar_lea.vmem %s337, %s1258 [#allocation13]
        %1408 = vst.msk [vmem:[%s1407] sm:$0xff] %vm355, %v1405
        %s1409 = scalar_select %p496, 6, 1
        %s1410 = smul.u32 %s1409, 8
        %s1411 = scalar_lea.vmem [#allocation8], %s1410
        %v1412 = vld [vmem:[%s1411] sm:$0xff]
        %s1413 = scalar_lea.vmem [#allocation2], %s1410
        %v1414 = vld [vmem:[%s1413] sm:$0xff]
        %v1415 = vld [vmem:[#allocation3] sm:$0xff]
        %v1416 = vld [vmem:[%s294] sm:$0xff]
        %v1417 = vld [vmem:[%s294 + $0x8] sm:$0xff]
        %v1419 = vsel %vm355, %v1415, 0
        %1421 = vmatprep.subr.mxu0 0.0
        %1422 = vmatpush1.msra.mxu0 %v1416
        %1423 = vmatprep.subr.mxu0 0.0
        %1424 = vmatpush1.msra.mxu0 %v1417
        %1425 = vmatprep.subr.mxu0 0.0
        %1426 = vmatpush1.msra.mxu0 0.0
        %1427 = vmatprep.subr.mxu0 0.0
        %1428 = vmatpush1.msra.mxu0 0.0
        %1429 = vmatprep.subr.mxu0 0.0
        %1430 = vmatpush1.msra.mxu0 0.0
        %1431 = vmatprep.subr.mxu0 0.0
        %1432 = vmatpush1.msra.mxu0 0.0
        %1433 = vmatprep.subr.mxu0 0.0
        %1434 = vmatpush1.msra.mxu0 0.0
        %1435 = vmatprep.subr.mxu0 0.0
        %1436 = vmatpush1.msra.mxu0 0.0
        %1437 = vmatprep.subr.mxu0 0.0
        %1438 = vmatpush1.msra.mxu0 0.0
        %1439 = vmatprep.subr.mxu0 0.0
        %1440 = vmatpush1.msra.mxu0 0.0
        %1441 = vmatprep.subr.mxu0 0.0
        %1442 = vmatpush1.msra.mxu0 0.0
        %1443 = vmatprep.subr.mxu0 0.0
        %1444 = vmatpush1.msra.mxu0 0.0
        %1445 = vmatprep.subr.mxu0 0.0
        %1446 = vmatpush1.msra.mxu0 0.0
        %1447 = vmatprep.subr.mxu0 0.0
        %1448 = vmatpush1.msra.mxu0 0.0
        %1449 = vmatprep.subr.mxu0 0.0
        %1450 = vmatpush1.msra.mxu0 0.0
        %1451 = vmatprep.subr.mxu0 0.0
        %1452 = vmatpush1.msra.mxu0 0.0
        %1453 = vmatprep.subr.mxu0 0.0
        %1454 = vmatpush1.msra.mxu0 0.0
        %1455 = vmatprep.subr.mxu0 0.0
        %1456 = vmatpush1.msra.mxu0 0.0
        %1457 = vmatprep.subr.mxu0 0.0
        %1458 = vmatpush1.msra.mxu0 0.0
        %1459 = vmatprep.subr.mxu0 0.0
        %1460 = vmatpush1.msra.mxu0 0.0
        %1461 = vmatprep.subr.mxu0 0.0
        %1462 = vmatpush1.msra.mxu0 0.0
        %1463 = vmatprep.subr.mxu0 0.0
        %1464 = vmatpush1.msra.mxu0 0.0
        %1465 = vmatprep.subr.mxu0 0.0
        %1466 = vmatpush1.msra.mxu0 0.0
        %1467 = vmatprep.subr.mxu0 0.0
        %1468 = vmatpush1.msra.mxu0 0.0
        %1469 = vmatprep.subr.mxu0 0.0
        %1470 = vmatpush1.msra.mxu0 0.0
        %1471 = vmatprep.subr.mxu0 0.0
        %1472 = vmatpush1.msra.mxu0 0.0
        %1473 = vmatprep.subr.mxu0 0.0
        %1474 = vmatpush1.msra.mxu0 0.0
        %1475 = vmatprep.subr.mxu0 0.0
        %1476 = vmatpush1.msra.mxu0 0.0
        %1477 = vmatprep.subr.mxu0 0.0
        %1478 = vmatpush1.msra.mxu0 0.0
        %1479 = vmatprep.subr.mxu0 0.0
        %1480 = vmatpush1.msra.mxu0 0.0
        %1481 = vmatprep.subr.mxu0 0.0
        %1482 = vmatpush1.msra.mxu0 0.0
        %1483 = vmatprep.subr.mxu0 0.0
        %1484 = vmatpush1.msra.mxu0 0.0
        %1485 = vmatprep.mubr.f32.mxu0 0.0
        %1486 = vmatmul.mubr.f32.gmra.mrb[0].mxu0 %v1419
        %v1487 = vpop.f32.mrb[0].mxu0
        %v1488 = vadd.f32 0.0, %v1487
        %v1489 = vpop.f32.mrb[0].mxu0
        %1490 = vdwg.mxu0
        %v1491 = vadd.f32 %v1414, %v1488
        %v1492 = vmul.f32 %v1491, 0.5
        %v1493 = vtanh.pop %v1492
        %v1494 = vadd.f32 %v1493, 1.0
        %v1495 = vmul.f32 %v1494, 0.5
        %v1496 = vtanh.pop %v1491
        %v1497 = vld [vmem:[#allocation4] sm:$0xff]
        %1499 = vrot.lane.b32.xlu0 %v1497, 16
        %v1500 = vpop.permute.xlu0 %1499
        %v1502 = vmul.f32 %v1495, %v1500
        %1504 = vrot.lane.b32.xlu0 %v1496, 96
        %v1505 = vpop.permute.xlu0 %1504
        %v1507 = vmul.f32 %v1495, %v1505
        %1509 = vrot.lane.b32.xlu0 %v1507, 16
        %v1510 = vpop.permute.xlu0 %1509
        %v1512 = vadd.f32 %v1502, %v1510
        %v1513 = vtanh.pop %v1512
        %1515 = vrot.lane.b32.xlu0 %v1513, 32
        %v1516 = vpop.permute.xlu0 %1515
        %v1518 = vmul.f32 %v1495, %v1516
        %1520 = vset.pattern.permute.xlu0 0
        %1521 = vperm.xlu0 %1520, %v1412
        %v1522 = vpop.permute.xlu0 %1521
        %v1524 = vmul.f32 %v1522, %v1512
        %v1525 = vsub.f32 1.0, %v1412
        %1527 = vset.pattern.permute.xlu0 0
        %1528 = vperm.xlu0 %1527, %v1525
        %v1529 = vpop.permute.xlu0 %1528
        %v1531 = vmul.f32 %v1529, %v1497
        %1533 = vrot.lane.b32.xlu0 %v1531, 16
        %v1534 = vpop.permute.xlu0 %1533
        %v1536 = vadd.f32 %v1524, %v1534
        %1538 = vrot.lane.b32.xlu0 %v1536, 112
        %v1539 = vpop.permute.xlu0 %1538
        %1541 = vst.msk [vmem:[#allocation4] sm:$0xff] %vm355, %v1539
        %v1542 = vmul.f32 %v1522, %v1518
        %v1543 = vld [vmem:[#allocation3] sm:$0xff]
        %v1544 = vmul.f32 %v1529, %v1543
        %1546 = vrot.lane.b32.xlu0 %v1544, 48
        %v1547 = vpop.permute.xlu0 %1546
        %v1549 = vadd.f32 %v1542, %v1547
        %1551 = vrot.lane.b32.xlu0 %v1549, 80
        %v1552 = vpop.permute.xlu0 %1551
        %1554 = vst.msk [vmem:[#allocation3] sm:$0xff] %vm355, %v1552
        %1556 = vrot.lane.b32.xlu0 %v1542, 80
        %v1557 = vpop.permute.xlu0 %1556
        %s1559 = scalar_lea.vmem %s337, %s1410 [#allocation13]
        %1560 = vst.msk [vmem:[%s1559] sm:$0xff] %vm355, %v1557
        %s1561 = scalar_select %p496, 7, 0
        %s1562 = smul.u32 %s1561, 8
        %s1563 = scalar_lea.vmem [#allocation8], %s1562
        %v1564 = vld [vmem:[%s1563] sm:$0xff]
        %s1565 = scalar_lea.vmem [#allocation2], %s1562
        %v1566 = vld [vmem:[%s1565] sm:$0xff]
        %v1567 = vld [vmem:[#allocation3] sm:$0xff]
        %v1568 = vld [vmem:[%s294] sm:$0xff]
        %v1569 = vld [vmem:[%s294 + $0x8] sm:$0xff]
        %v1571 = vsel %vm355, %v1567, 0
        %1573 = vmatprep.subr.mxu0 0.0
        %1574 = vmatpush1.msra.mxu0 %v1568
        %1575 = vmatprep.subr.mxu0 0.0
        %1576 = vmatpush1.msra.mxu0 %v1569
        %1577 = vmatprep.subr.mxu0 0.0
        %1578 = vmatpush1.msra.mxu0 0.0
        %1579 = vmatprep.subr.mxu0 0.0
        %1580 = vmatpush1.msra.mxu0 0.0
        %1581 = vmatprep.subr.mxu0 0.0
        %1582 = vmatpush1.msra.mxu0 0.0
        %1583 = vmatprep.subr.mxu0 0.0
        %1584 = vmatpush1.msra.mxu0 0.0
        %1585 = vmatprep.subr.mxu0 0.0
        %1586 = vmatpush1.msra.mxu0 0.0
        %1587 = vmatprep.subr.mxu0 0.0
        %1588 = vmatpush1.msra.mxu0 0.0
        %1589 = vmatprep.subr.mxu0 0.0
        %1590 = vmatpush1.msra.mxu0 0.0
        %1591 = vmatprep.subr.mxu0 0.0
        %1592 = vmatpush1.msra.mxu0 0.0
        %1593 = vmatprep.subr.mxu0 0.0
        %1594 = vmatpush1.msra.mxu0 0.0
        %1595 = vmatprep.subr.mxu0 0.0
        %1596 = vmatpush1.msra.mxu0 0.0
        %1597 = vmatprep.subr.mxu0 0.0
        %1598 = vmatpush1.msra.mxu0 0.0
        %1599 = vmatprep.subr.mxu0 0.0
        %1600 = vmatpush1.msra.mxu0 0.0
        %1601 = vmatprep.subr.mxu0 0.0
        %1602 = vmatpush1.msra.mxu0 0.0
        %1603 = vmatprep.subr.mxu0 0.0
        %1604 = vmatpush1.msra.mxu0 0.0
        %1605 = vmatprep.subr.mxu0 0.0
        %1606 = vmatpush1.msra.mxu0 0.0
        %1607 = vmatprep.subr.mxu0 0.0
        %1608 = vmatpush1.msra.mxu0 0.0
        %1609 = vmatprep.subr.mxu0 0.0
        %1610 = vmatpush1.msra.mxu0 0.0
        %1611 = vmatprep.subr.mxu0 0.0
        %1612 = vmatpush1.msra.mxu0 0.0
        %1613 = vmatprep.subr.mxu0 0.0
        %1614 = vmatpush1.msra.mxu0 0.0
        %1615 = vmatprep.subr.mxu0 0.0
        %1616 = vmatpush1.msra.mxu0 0.0
        %1617 = vmatprep.subr.mxu0 0.0
        %1618 = vmatpush1.msra.mxu0 0.0
        %1619 = vmatprep.subr.mxu0 0.0
        %1620 = vmatpush1.msra.mxu0 0.0
        %1621 = vmatprep.subr.mxu0 0.0
        %1622 = vmatpush1.msra.mxu0 0.0
        %1623 = vmatprep.subr.mxu0 0.0
        %1624 = vmatpush1.msra.mxu0 0.0
        %1625 = vmatprep.subr.mxu0 0.0
        %1626 = vmatpush1.msra.mxu0 0.0
        %1627 = vmatprep.subr.mxu0 0.0
        %1628 = vmatpush1.msra.mxu0 0.0
        %1629 = vmatprep.subr.mxu0 0.0
        %1630 = vmatpush1.msra.mxu0 0.0
        %1631 = vmatprep.subr.mxu0 0.0
        %1632 = vmatpush1.msra.mxu0 0.0
        %1633 = vmatprep.subr.mxu0 0.0
        %1634 = vmatpush1.msra.mxu0 0.0
        %1635 = vmatprep.subr.mxu0 0.0
        %1636 = vmatpush1.msra.mxu0 0.0
        %1637 = vmatprep.mubr.f32.mxu0 0.0
        %1638 = vmatmul.mubr.f32.gmra.mrb[0].mxu0 %v1571
        %v1639 = vpop.f32.mrb[0].mxu0
        %v1640 = vadd.f32 0.0, %v1639
        %v1641 = vpop.f32.mrb[0].mxu0
        %1642 = vdwg.mxu0
        %v1643 = vadd.f32 %v1566, %v1640
        %v1644 = vmul.f32 %v1643, 0.5
        %v1645 = vtanh.pop %v1644
        %v1646 = vadd.f32 %v1645, 1.0
        %v1647 = vmul.f32 %v1646, 0.5
        %v1648 = vtanh.pop %v1643
        %v1649 = vld [vmem:[#allocation4] sm:$0xff]
        %1651 = vrot.lane.b32.xlu0 %v1649, 16
        %v1652 = vpop.permute.xlu0 %1651
        %v1654 = vmul.f32 %v1647, %v1652
        %1656 = vrot.lane.b32.xlu0 %v1648, 96
        %v1657 = vpop.permute.xlu0 %1656
        %v1659 = vmul.f32 %v1647, %v1657
        %1661 = vrot.lane.b32.xlu0 %v1659, 16
        %v1662 = vpop.permute.xlu0 %1661
        %v1664 = vadd.f32 %v1654, %v1662
        %v1665 = vtanh.pop %v1664
        %1667 = vrot.lane.b32.xlu0 %v1665, 32
        %v1668 = vpop.permute.xlu0 %1667
        %v1670 = vmul.f32 %v1647, %v1668
        %1672 = vset.pattern.permute.xlu0 0
        %1673 = vperm.xlu0 %1672, %v1564
        %v1674 = vpop.permute.xlu0 %1673
        %v1676 = vmul.f32 %v1674, %v1664
        %v1677 = vsub.f32 1.0, %v1564
        %1679 = vset.pattern.permute.xlu0 0
        %1680 = vperm.xlu0 %1679, %v1677
        %v1681 = vpop.permute.xlu0 %1680
        %v1683 = vmul.f32 %v1681, %v1649
        %1685 = vrot.lane.b32.xlu0 %v1683, 16
        %v1686 = vpop.permute.xlu0 %1685
        %v1688 = vadd.f32 %v1676, %v1686
        %1690 = vrot.lane.b32.xlu0 %v1688, 112
        %v1691 = vpop.permute.xlu0 %1690
        %1693 = vst.msk [vmem:[#allocation4] sm:$0xff] %vm355, %v1691
        %v1694 = vmul.f32 %v1674, %v1670
        %v1695 = vld [vmem:[#allocation3] sm:$0xff]
        %v1696 = vmul.f32 %v1681, %v1695
        %1698 = vrot.lane.b32.xlu0 %v1696, 48
        %v1699 = vpop.permute.xlu0 %1698
        %v1701 = vadd.f32 %v1694, %v1699
        %1703 = vrot.lane.b32.xlu0 %v1701, 80
        %v1704 = vpop.permute.xlu0 %1703
        %1706 = vst.msk [vmem:[#allocation3] sm:$0xff] %vm355, %v1704
        %1708 = vrot.lane.b32.xlu0 %v1694, 80
        %v1709 = vpop.permute.xlu0 %1708
        %s1711 = scalar_lea.vmem %s337, %s1562 [#allocation13]
        %1712 = vst.msk [vmem:[%s1711] sm:$0xff] %vm355, %v1709
        %s1713 = sand.u32 %s149, 1
        %s1714 = scalar_lea.sflag [#allocation7], %s1713
        %s1715 = sand.u32 %s149, 1
        %s1716 = smul.addr %s1715, 64
        %s1717 = scalar_lea.vmem [#allocation13], %s1716
        // Predicated region
        $region61: #{hierarchical_attention_forward.5} parent=39 // pred_check
          %p1718 = pneg %p159
        $region62: #{hierarchical_attention_forward.5} parent=39 // pred_check_branch
          %1720 = sbr.rel (%p1718) target = $region64
        $region63: #{hierarchical_attention_forward.5} parent=39 // pred_region
          %s1722 = ssub.s32 1024, 1024
          %1723 = vsyncadd %s1714, %s1722
          %s1724 = smul.addr %s21, 8
          %s1725 = smul.addr %s1724, 128
          %s1726 = scalar_lea.hbm %s5, %s1725
          %s1727 = sshll.u32 %s1717, 4
          %s1728 = int_to_ptr.vmem [resolvable:$true] %s1727
          %1733 = dma.vmem_to_hbm [thread:$0]  %s1728, 1024, %s1726, %s1714, 128, 128, 8
        $region64: #{hierarchical_attention_forward.5} parent=39 // pred_fallthru
          _
      $region40: #{hierarchical_attention_forward.5} parent=5 // pred_fallthru
        _
      %p1734 = scmp.le.s32.totalorder 2, %s16
      // Predicated region
      $region65: #{hierarchical_attention_forward.5} parent=5 // pred_check
        %p1735 = pneg %p1734
      $region66: #{hierarchical_attention_forward.5} parent=5 // pred_check_branch
        %1737 = sbr.rel (%p1735) target = $region68
      $region67: #{hierarchical_attention_forward.5} parent=5 // pred_region
        %s1738 = ssub.s32 %s16, 2
        // Predicated region
        $region69: #{hierarchical_attention_forward.5} parent=67 // pred_check
          %p1739 = pneg %p165
        $region70: #{hierarchical_attention_forward.5} parent=67 // pred_check_branch
          %1741 = sbr.rel (%p1739) target = $region72
        $region71: #{hierarchical_attention_forward.5} parent=67 // pred_region
          %s1742 = sand.u32 %s150, 1
          %s1743 = scalar_lea.sflag [#allocation7], %s1742
          %s1744 = sand.u32 %s150, 1
          %s1745 = smul.addr %s1744, 64
          %s1746 = scalar_lea.vmem [#allocation13], %s1745
          %1747 = dma.done %s1743, 1024
        $region72: #{hierarchical_attention_forward.5} parent=67 // pred_fallthru
          _
      $region68: #{hierarchical_attention_forward.5} parent=5 // pred_fallthru
        _
    $region6: #{hierarchical_attention_forward.5} parent=1 // loop_footer
      %s20 = sadd.s32 1, %s16
    $region7: #{hierarchical_attention_forward.5} parent=1 // loop_footer_branch
      %15 = sbr.rel target = $region3
    $region8: #{hierarchical_attention_forward.5} parent=1 // loop_exit
      _
    %1748 = vsyncpa [#allocation6], 1
    %s1749 = scalar_lea.sflag [#allocation6], 1
    %1750 = vsyncpa %s1749, 1
    %1751 = vsyncpa [#allocation9], 1
    %1752 = vsyncpa [#allocation7], 1
    %s1753 = scalar_lea.sflag [#allocation7], 1
    %1754 = vsyncpa %s1753, 1

// kernel: hierarchical_attention_forward.9
$region0: #{hierarchical_attention_forward.9}
  #allocation0 [shape = 'u32[]', space=smem, size = 0x4, offset = 0x4, fixed_abs, tag = 'smem constant byte address 0x4 - core index']
  #allocation1 [shape = 'u32[144,128]{1,0:T(1,128)}', space=vmem, size = 0x12000, scoped, tag = 'internal scratch']
  %s0 = inlined_call_operand.vmem [shape: f32[2,32], index: 0, kind: input, shape index: {}]
  %s1 = inlined_call_operand.vmem [shape: f32[32,64], index: 1, kind: input, shape index: {}]
  %s2 = inlined_call_operand.vmem [shape: f32[1,64], index: 2, kind: input, shape index: {}]
  %s3 = inlined_call_operand.vmem [shape: f32[2,64], index: 3, kind: output, shape index: {}]
  %s4 = sld [smem:[#allocation0]]
  $region22: #{hierarchical_attention_forward.9} parent=0
    _
  %s6 = ssub.s32 1, %s4
  %s7 = scalar_select 0, %s6, %s4
  // Predicated region
  $region2: #{hierarchical_attention_forward.9} parent=0 // pred_check
    _
  $region3: #{hierarchical_attention_forward.9} parent=0 // pred_check_branch
    %9 = sbr.rel (0) target = $region5
  $region4: #{hierarchical_attention_forward.9} parent=0 // pred_region
    _
  $region5: #{hierarchical_attention_forward.9} parent=0 // pred_fallthru
    _
  // Predicated region
  $region6: #{hierarchical_attention_forward.9} parent=0 // pred_check
    _
  $region7: #{hierarchical_attention_forward.9} parent=0 // pred_check_branch
    %11 = sbr.rel (0) target = $region9
  $region8: #{hierarchical_attention_forward.9} parent=0 // pred_region
    _
  $region9: #{hierarchical_attention_forward.9} parent=0 // pred_fallthru
    _
  // Predicated region
  $region10: #{hierarchical_attention_forward.9} parent=0 // pred_check
    _
  $region11: #{hierarchical_attention_forward.9} parent=0 // pred_check_branch
    %13 = sbr.rel (0) target = $region13
  $region12: #{hierarchical_attention_forward.9} parent=0 // pred_region
    _
  $region13: #{hierarchical_attention_forward.9} parent=0 // pred_fallthru
    _
  %v14 = vld [vmem:[%s0] sm:$0x3]
  %v15 = vld [vmem:[%s1] sm:$0xff]
  %v16 = vld [vmem:[%s1 + $0x8] sm:$0xff]
  %v17 = vld [vmem:[%s1 + $0x10] sm:$0xff]
  %v18 = vld [vmem:[%s1 + $0x18] sm:$0xff]
  %v19 = vld [vmem:[%s2] sm:$0x1]
  %v21 = vlaneseq
  %v22 = vshrl.u32 %v21, 7
  %v23 = vsub.s32 0, %v22
  %v24 = vrot.slane %v19, %v23
  %vm26 = vcmask 261120
  %v28 = vsel %vm26, %v14, 0
  %30 = vmatprep.subr.mxu0 0.0
  %31 = vmatpush1.msra.mxu0 %v15
  %32 = vmatprep.subr.mxu0 0.0
  %33 = vmatpush1.msra.mxu0 %v16
  %34 = vmatprep.subr.mxu0 0.0
  %35 = vmatpush1.msra.mxu0 %v17
  %36 = vmatprep.subr.mxu0 0.0
  %37 = vmatpush1.msra.mxu0 %v18
  %38 = vmatprep.subr.mxu0 0.0
  %39 = vmatpush1.msra.mxu0 0.0
  %40 = vmatprep.subr.mxu0 0.0
  %41 = vmatpush1.msra.mxu0 0.0
  %42 = vmatprep.subr.mxu0 0.0
  %43 = vmatpush1.msra.mxu0 0.0
  %44 = vmatprep.subr.mxu0 0.0
  %45 = vmatpush1.msra.mxu0 0.0
  %46 = vmatprep.subr.mxu0 0.0
  %47 = vmatpush1.msra.mxu0 0.0
  %48 = vmatprep.subr.mxu0 0.0
  %49 = vmatpush1.msra.mxu0 0.0
  %50 = vmatprep.subr.mxu0 0.0
  %51 = vmatpush1.msra.mxu0 0.0
  %52 = vmatprep.subr.mxu0 0.0
  %53 = vmatpush1.msra.mxu0 0.0
  %54 = vmatprep.subr.mxu0 0.0
  %55 = vmatpush1.msra.mxu0 0.0
  %56 = vmatprep.subr.mxu0 0.0
  %57 = vmatpush1.msra.mxu0 0.0
  %58 = vmatprep.subr.mxu0 0.0
  %59 = vmatpush1.msra.mxu0 0.0
  %60 = vmatprep.subr.mxu0 0.0
  %61 = vmatpush1.msra.mxu0 0.0
  %62 = vmatprep.subr.mxu0 0.0
  %63 = vmatpush1.msra.mxu0 0.0
  %64 = vmatprep.subr.mxu0 0.0
  %65 = vmatpush1.msra.mxu0 0.0
  %66 = vmatprep.subr.mxu0 0.0
  %67 = vmatpush1.msra.mxu0 0.0
  %68 = vmatprep.subr.mxu0 0.0
  %69 = vmatpush1.msra.mxu0 0.0
  %70 = vmatprep.subr.mxu0 0.0
  %71 = vmatpush1.msra.mxu0 0.0
  %72 = vmatprep.subr.mxu0 0.0
  %73 = vmatpush1.msra.mxu0 0.0
  %74 = vmatprep.subr.mxu0 0.0
  %75 = vmatpush1.msra.mxu0 0.0
  %76 = vmatprep.subr.mxu0 0.0
  %77 = vmatpush1.msra.mxu0 0.0
  %78 = vmatprep.subr.mxu0 0.0
  %79 = vmatpush1.msra.mxu0 0.0
  %80 = vmatprep.subr.mxu0 0.0
  %81 = vmatpush1.msra.mxu0 0.0
  %82 = vmatprep.subr.mxu0 0.0
  %83 = vmatpush1.msra.mxu0 0.0
  %84 = vmatprep.subr.mxu0 0.0
  %85 = vmatpush1.msra.mxu0 0.0
  %86 = vmatprep.subr.mxu0 0.0
  %87 = vmatpush1.msra.mxu0 0.0
  %88 = vmatprep.subr.mxu0 0.0
  %89 = vmatpush1.msra.mxu0 0.0
  %90 = vmatprep.subr.mxu0 0.0
  %91 = vmatpush1.msra.mxu0 0.0
  %92 = vmatprep.subr.mxu0 0.0
  %93 = vmatpush1.msra.mxu0 0.0
  %94 = vmatprep.mubr.f32.mxu0 0.0
  %95 = vmatmul.mubr.f32.gmra.mrb[0].mxu0 %v28
  %v96 = vpop.f32.mrb[0].mxu0
  %v97 = vadd.f32 %v24, %v96
  %v98 = vpop.f32.mrb[0].mxu0
  %99 = vdwg.mxu0
  %v100 = vtanh.pop %v97
  %vm101 = vcmask 517120
  %102 = vst.msk [vmem:[%s3] sm:$0x3] %vm101, %v100
  // Predicated region
  $region14: #{hierarchical_attention_forward.9} parent=0 // pred_check
    _
  $region15: #{hierarchical_attention_forward.9} parent=0 // pred_check_branch
    %104 = sbr.rel (0) target = $region17
  $region16: #{hierarchical_attention_forward.9} parent=0 // pred_region
    _
  $region17: #{hierarchical_attention_forward.9} parent=0 // pred_fallthru
    _
  // Predicated region
  $region18: #{hierarchical_attention_forward.9} parent=0 // pred_check
    _
  $region19: #{hierarchical_attention_forward.9} parent=0 // pred_check_branch
    %106 = sbr.rel (0) target = $region21
  $region20: #{hierarchical_attention_forward.9} parent=0 // pred_region
    _
  $region21: #{hierarchical_attention_forward.9} parent=0 // pred_fallthru
    _

</llo_original>
